<compile_context>
chip_gen: v6e
topology: v6e:2x2x1
jax: 0.10.0
libtpu: 0.0.40
codegen_flags: <defaults>
</compile_context>

<pallas_src>
import functools

import jax
import jax.numpy as jnp
from jax.experimental import pallas as pl
from jax.experimental.pallas import tpu as pltpu

_H1, _H2, _H3 = 256, 512, 1024


def _mlp_kernel(x_ref,
                w1_ref, b1_ref,
                w2_ref, b2_ref,
                w3_ref, b3_ref,
                w4_ref, b4_ref,
                o_ref,
                h3_ref):
    """Fused generator MLP on one (batch tile, layer-4 output tile)."""
    n = pl.program_id(1)

    # Layers 1-3 depend only on the batch tile: compute them once per batch
    # tile (first n step) and keep h3 resident in VMEM scratch across n.
    @pl.when(n == 0)
    def _():
        x = x_ref[...]                                      # bf16 noise tile
        h1 = jnp.dot(x, w1_ref[...], preferred_element_type=jnp.float32)
        h1 = jnp.maximum(h1 + b1_ref[...], 0.0)             # f32 elementwise
        h2 = jnp.dot(h1.astype(w2_ref.dtype), w2_ref[...],
                     preferred_element_type=jnp.float32)
        h2 = jnp.maximum(h2 + b2_ref[...], 0.0)
        h3 = jnp.dot(h2.astype(w3_ref.dtype), w3_ref[...],
                     preferred_element_type=jnp.float32)
        h3 = jnp.maximum(h3 + b3_ref[...], 0.0)
        h3_ref[...] = h3.astype(h3_ref.dtype)

    # Layer 4 on the current output-feature tile, then sigmoid.
    logits = jnp.dot(h3_ref[...], w4_ref[...],
                     preferred_element_type=jnp.float32)
    logits = logits + b4_ref[...]
    # exp and approximate reciprocal both issue on the EUP slot (rel err ~2^-12).
    o_ref[...] = pl.reciprocal(1.0 + jnp.exp(-logits),
                               approx=True).astype(o_ref.dtype)


def _pick_block_b(batch):
    # Fill the MXU rows; for B > 256 this also gives >= 2 batch tiles so the
    # "parallel" axis can shard across both v7x TensorCores.
    return batch if batch <= 256 else 256


def _pick_block_n(item_count):
    # Keep the (1024, block_n) w4 tile modest so huge item counts fit VMEM.
    return item_count if item_count <= 2048 else 1024


@functools.partial(jax.jit,
                   static_argnames=("block_b", "block_n", "weight_dtype"))
def generator_no_user_info(noise, params, *, block_b=None, block_n=None,
                           weight_dtype=jnp.bfloat16):
    """noise: (B, itemCount). params: dict w1..w4 (in,out) f32, b1..b4 (1,out) f32."""
    B, item_count = noise.shape
    out_dtype = noise.dtype
    if block_b is None:
        block_b = _pick_block_b(B)
    if block_n is None:
        block_n = _pick_block_n(item_count)

    # bf16 matmul operands, f32 accumulation: halves weight DMA traffic and
    # roughly doubles MXU throughput vs f32 operands.
    x = noise.astype(weight_dtype)
    w1 = params["w1"].astype(weight_dtype)
    w2 = params["w2"].astype(weight_dtype)
    w3 = params["w3"].astype(weight_dtype)
    w4 = params["w4"].astype(weight_dtype)
    b1 = params["b1"].astype(jnp.float32)
    b2 = params["b2"].astype(jnp.float32)
    b3 = params["b3"].astype(jnp.float32)
    b4 = params["b4"].astype(jnp.float32)

    grid = (pl.cdiv(B, block_b), pl.cdiv(item_count, block_n))

    wd_bytes = jnp.dtype(weight_dtype).itemsize
    flops = 2 * B * (item_count * _H1 + _H1 * _H2 + _H2 * _H3
                     + _H3 * item_count)
    bytes_accessed = (
        B * item_count * wd_bytes                                    # noise
        + (item_count * _H1 + _H1 * _H2 + _H2 * _H3
           + _H3 * item_count) * wd_bytes                            # weights
        + (_H1 + _H2 + _H3 + item_count) * 4                         # biases
        + B * item_count * jnp.dtype(out_dtype).itemsize)            # output
    cost = pl.CostEstimate(flops=flops,
                           transcendentals=B * item_count,
                           bytes_accessed=bytes_accessed)

    rep = lambda i, n: (0, 0)   # weights/biases resident: constant block index

    # TODO(synk): for extremely large itemCount, also tile w1 along K (extra
    # grid axis) and consider pl.Buffered(1) on the resident weight specs to
    # drop their double-buffer copies.
    return pl.pallas_call(
        _mlp_kernel,
        out_shape=jax.ShapeDtypeStruct((B, item_count), out_dtype),
        grid_spec=pltpu.PrefetchScalarGridSpec(
            num_scalar_prefetch=0,
            grid=grid,
            in_specs=[
                pl.BlockSpec((block_b, item_count), lambda i, n: (i, 0)),  # noise
                pl.BlockSpec(w1.shape, rep), pl.BlockSpec(b1.shape, rep),
                pl.BlockSpec(w2.shape, rep), pl.BlockSpec(b2.shape, rep),
                pl.BlockSpec(w3.shape, rep), pl.BlockSpec(b3.shape, rep),
                pl.BlockSpec((_H3, block_n), lambda i, n: (0, n)),         # w4 tile
                pl.BlockSpec((1, block_n), lambda i, n: (0, n)),           # b4 tile
            ],
            out_specs=pl.BlockSpec((block_b, block_n), lambda i, n: (i, n)),
            scratch_shapes=[pltpu.VMEM((block_b, _H3), weight_dtype)],     # h3
        ),
        compiler_params=pltpu.CompilerParams(
            dimension_semantics=("parallel", "arbitrary"),
            vmem_limit_bytes=64 * 1024 * 1024),
        cost_estimate=cost,
    )(x, w1, b1, w2, b2, w3, b3, w4, b4)


def init_params(key, item_count, dtype=jnp.float32):
    """Deterministic synthetic parameter init (matches nn.Linear shapes/init)."""
    dims = [item_count, _H1, _H2, _H3, item_count]
    params = {}
    keys = jax.random.split(key, len(dims) - 1)
    for li, (fan_in, fan_out) in enumerate(zip(dims[:-1], dims[1:]), start=1):
        kw, kb = jax.random.split(keys[li - 1])
        bound = 1.0 / jnp.sqrt(fan_in)
        # Stored as (in, out): kernel computes x @ W == x @ W_torch.T
        params[f"w{li}"] = jax.random.uniform(
            kw, (fan_in, fan_out), dtype, minval=-bound, maxval=bound)
        params[f"b{li}"] = jax.random.uniform(
            kb, (1, fan_out), dtype, minval=-bound, maxval=bound)
    return params


def _reference_f32(noise, params):
    """Pure-f32 reference (original module semantics)."""
    h = noise.astype(jnp.float32)
    for li in range(1, 4):
        h = jnp.maximum(h @ params[f"w{li}"] + params[f"b{li}"], 0.0)
    return jax.nn.sigmoid(h @ params["w4"] + params["b4"])


def _reference_matched(noise, params, weight_dtype=jnp.bfloat16):
    """Same bf16-operand / f32-accumulate math as the kernel (tight check)."""
    h = noise.astype(weight_dtype)
    for li in range(1, 4):
        w = params[f"w{li}"].astype(weight_dtype)
        h = jnp.dot(h, w, preferred_element_type=jnp.float32) + params[f"b{li}"]
        h = jnp.maximum(h, 0.0).astype(weight_dtype)
    w4 = params["w4"].astype(weight_dtype)
    logits = jnp.dot(h, w4, preferred_element_type=jnp.float32) + params["b4"]
    return jax.nn.sigmoid(logits)


if __name__ == "__main__":
    ITEM_COUNT = 128   # itemCount (feature dim); small demo size
    BATCH = 32

    key = jax.random.PRNGKey(0)
    k_noise, k_params = jax.random.split(key)
    noise = jax.random.normal(k_noise, (BATCH, ITEM_COUNT), jnp.float32)
    params = init_params(k_params, ITEM_COUNT)

    out = generator_no_user_info(noise, params)
    out = jax.block_until_ready(out)
    assert out.shape == (BATCH, ITEM_COUNT), out.shape

    ref_matched = _reference_matched(noise, params)
    ref_f32 = _reference_f32(noise, params)
    err_m = float(jnp.max(jnp.abs(out - ref_matched)))
    err_f = float(jnp.max(jnp.abs(out - ref_f32)))
    assert jnp.allclose(out, ref_matched, atol=5e-3, rtol=5e-3), err_m
    assert jnp.allclose(out, ref_f32, atol=2e-2, rtol=2e-2), err_f

    print("KERNEL_OK")
</pallas_src>

<mosaic_0001>
module attributes {stable_mosaic.version = 11 : i64} {
  func.func @_mlp_kernel(%arg0: i32, %arg1: i32, %arg2: memref<32x128xbf16, #tpu.memory_space<vmem>>, %arg3: memref<128x256xbf16, #tpu.memory_space<vmem>>, %arg4: memref<1x256xf32, #tpu.memory_space<vmem>>, %arg5: memref<256x512xbf16, #tpu.memory_space<vmem>>, %arg6: memref<1x512xf32, #tpu.memory_space<vmem>>, %arg7: memref<512x1024xbf16, #tpu.memory_space<vmem>>, %arg8: memref<1x1024xf32, #tpu.memory_space<vmem>>, %arg9: memref<1024x128xbf16, #tpu.memory_space<vmem>>, %arg10: memref<1x128xf32, #tpu.memory_space<vmem>>, %arg11: memref<32x128xf32, #tpu.memory_space<vmem>>, %arg12: memref<32x1024xbf16, #tpu.memory_space<vmem>>) attributes {dimension_semantics = [#tpu.dimension_semantics<parallel>, #tpu.dimension_semantics<arbitrary>], iteration_bounds = array<i64: 1, 1>, scalar_prefetch = 0 : i64, scratch_operands = 1 : i64, tpu.core_type = #tpu.core_type<tc>, window_params = [{transform_indices = @transform_0, window_bounds = array<i64: 32, 128>}, {pipeline_mode = #tpu.pipeline_mode<synchronous>, transform_indices = @transform_1, window_bounds = array<i64: 128, 256>}, {pipeline_mode = #tpu.pipeline_mode<synchronous>, transform_indices = @transform_2, window_bounds = array<i64: 1, 256>}, {pipeline_mode = #tpu.pipeline_mode<synchronous>, transform_indices = @transform_3, window_bounds = array<i64: 256, 512>}, {pipeline_mode = #tpu.pipeline_mode<synchronous>, transform_indices = @transform_4, window_bounds = array<i64: 1, 512>}, {pipeline_mode = #tpu.pipeline_mode<synchronous>, transform_indices = @transform_5, window_bounds = array<i64: 512, 1024>}, {pipeline_mode = #tpu.pipeline_mode<synchronous>, transform_indices = @transform_6, window_bounds = array<i64: 1, 1024>}, {transform_indices = @transform_7, window_bounds = array<i64: 1024, 128>}, {transform_indices = @transform_8, window_bounds = array<i64: 1, 128>}, {transform_indices = @transform_9, window_bounds = array<i64: 32, 128>}]} {
    %c0_i32 = arith.constant 0 : i32
    %0 = arith.cmpi eq, %arg1, %c0_i32 : i32
    %1 = arith.extui %0 : i1 to i32
    %c0_i32_0 = arith.constant 0 : i32
    %2 = arith.cmpi ne, %1, %c0_i32_0 : i32
    scf.if %2 {
      %c0_10 = arith.constant 0 : index
      %c0_11 = arith.constant 0 : index
      %16 = vector.load %arg2[%c0_10, %c0_11] : memref<32x128xbf16, #tpu.memory_space<vmem>>, vector<32x128xbf16>
      %c0_12 = arith.constant 0 : index
      %c0_13 = arith.constant 0 : index
      %17 = vector.load %arg3[%c0_12, %c0_13] : memref<128x256xbf16, #tpu.memory_space<vmem>>, vector<128x256xbf16>
      %cst_14 = arith.constant dense<0.000000e+00> : vector<32x256xf32>
      %18 = tpu.matmul %16, %17, %cst_14 {dimension_numbers = #tpu.dot_dimension_numbers<[1], [0], [0], [1], [0, 0, 1, 1], [], []>} : vector<32x128xbf16>, vector<128x256xbf16>, vector<32x256xf32> -> vector<32x256xf32>
      %c0_15 = arith.constant 0 : index
      %c0_16 = arith.constant 0 : index
      %19 = vector.load %arg4[%c0_15, %c0_16] : memref<1x256xf32, #tpu.memory_space<vmem>>, vector<1x256xf32>
      %20 = vector.broadcast %19 : vector<1x256xf32> to vector<32x256xf32>
      %21 = arith.addf %18, %20 : vector<32x256xf32>
      %cst_17 = arith.constant 0.000000e+00 : f32
      %22 = vector.broadcast %cst_17 : f32 to vector<32x256xf32>
      %23 = arith.maximumf %21, %22 : vector<32x256xf32>
      %24 = arith.truncf %23 : vector<32x256xf32> to vector<32x256xbf16>
      %c0_18 = arith.constant 0 : index
      %c0_19 = arith.constant 0 : index
      %25 = vector.load %arg5[%c0_18, %c0_19] : memref<256x512xbf16, #tpu.memory_space<vmem>>, vector<256x512xbf16>
      %cst_20 = arith.constant dense<0.000000e+00> : vector<32x512xf32>
      %26 = tpu.matmul %24, %25, %cst_20 {dimension_numbers = #tpu.dot_dimension_numbers<[1], [0], [0], [1], [0, 0, 1, 1], [], []>} : vector<32x256xbf16>, vector<256x512xbf16>, vector<32x512xf32> -> vector<32x512xf32>
      %c0_21 = arith.constant 0 : index
      %c0_22 = arith.constant 0 : index
      %27 = vector.load %arg6[%c0_21, %c0_22] : memref<1x512xf32, #tpu.memory_space<vmem>>, vector<1x512xf32>
      %28 = vector.broadcast %27 : vector<1x512xf32> to vector<32x512xf32>
      %29 = arith.addf %26, %28 : vector<32x512xf32>
      %cst_23 = arith.constant 0.000000e+00 : f32
      %30 = vector.broadcast %cst_23 : f32 to vector<32x512xf32>
      %31 = arith.maximumf %29, %30 : vector<32x512xf32>
      %32 = arith.truncf %31 : vector<32x512xf32> to vector<32x512xbf16>
      %c0_24 = arith.constant 0 : index
      %c0_25 = arith.constant 0 : index
      %33 = vector.load %arg7[%c0_24, %c0_25] : memref<512x1024xbf16, #tpu.memory_space<vmem>>, vector<512x1024xbf16>
      %cst_26 = arith.constant dense<0.000000e+00> : vector<32x1024xf32>
      %34 = tpu.matmul %32, %33, %cst_26 {dimension_numbers = #tpu.dot_dimension_numbers<[1], [0], [0], [1], [0, 0, 1, 1], [], []>} : vector<32x512xbf16>, vector<512x1024xbf16>, vector<32x1024xf32> -> vector<32x1024xf32>
      %c0_27 = arith.constant 0 : index
      %c0_28 = arith.constant 0 : index
      %35 = vector.load %arg8[%c0_27, %c0_28] : memref<1x1024xf32, #tpu.memory_space<vmem>>, vector<1x1024xf32>
      %36 = vector.broadcast %35 : vector<1x1024xf32> to vector<32x1024xf32>
      %37 = arith.addf %34, %36 : vector<32x1024xf32>
      %cst_29 = arith.constant 0.000000e+00 : f32
      %38 = vector.broadcast %cst_29 : f32 to vector<32x1024xf32>
      %39 = arith.maximumf %37, %38 : vector<32x1024xf32>
      %40 = arith.truncf %39 : vector<32x1024xf32> to vector<32x1024xbf16>
      %c0_30 = arith.constant 0 : index
      %c0_31 = arith.constant 0 : index
      %41 = vector.load %arg12[%c0_30, %c0_31] : memref<32x1024xbf16, #tpu.memory_space<vmem>>, vector<32x1024xbf16>
      tpu.vector_store %arg12[%c0_30, %c0_31], %40 {strides = array<i32>} : memref<32x1024xbf16, #tpu.memory_space<vmem>>, vector<32x1024xbf16>,
    } else {
    }
    %c0 = arith.constant 0 : index
    %c0_1 = arith.constant 0 : index
    %3 = vector.load %arg12[%c0, %c0_1] : memref<32x1024xbf16, #tpu.memory_space<vmem>>, vector<32x1024xbf16>
    %c0_2 = arith.constant 0 : index
    %c0_3 = arith.constant 0 : index
    %4 = vector.load %arg9[%c0_2, %c0_3] : memref<1024x128xbf16, #tpu.memory_space<vmem>>, vector<1024x128xbf16>
    %cst = arith.constant dense<0.000000e+00> : vector<32x128xf32>
    %5 = tpu.matmul %3, %4, %cst {dimension_numbers = #tpu.dot_dimension_numbers<[1], [0], [0], [1], [0, 0, 1, 1], [], []>} : vector<32x1024xbf16>, vector<1024x128xbf16>, vector<32x128xf32> -> vector<32x128xf32>
    %c0_4 = arith.constant 0 : index
    %c0_5 = arith.constant 0 : index
    %6 = vector.load %arg10[%c0_4, %c0_5] : memref<1x128xf32, #tpu.memory_space<vmem>>, vector<1x128xf32>
    %7 = vector.broadcast %6 : vector<1x128xf32> to vector<32x128xf32>
    %8 = arith.addf %5, %7 : vector<32x128xf32>
    %cst_6 = arith.constant 0.000000e+00 : f32
    %9 = vector.broadcast %cst_6 : f32 to vector<32x128xf32>
    %10 = arith.subf %9, %8 : vector<32x128xf32>
    %11 = math.exp %10 : vector<32x128xf32>
    %cst_7 = arith.constant 1.000000e+00 : f32
    %12 = vector.broadcast %cst_7 : f32 to vector<32x128xf32>
    %13 = arith.addf %12, %11 : vector<32x128xf32>
    %14 = tpu.reciprocal %13 {approx = true} : vector<32x128xf32> -> vector<32x128xf32>
    %c0_8 = arith.constant 0 : index
    %c0_9 = arith.constant 0 : index
    %15 = vector.load %arg11[%c0_8, %c0_9] : memref<32x128xf32, #tpu.memory_space<vmem>>, vector<32x128xf32>
    tpu.vector_store %arg11[%c0_8, %c0_9], %14 {strides = array<i32>} : memref<32x128xf32, #tpu.memory_space<vmem>>, vector<32x128xf32>,
    return
  }
  func.func @transform_0(%arg0: i32, %arg1: i32) -> (i32, i32) {
    %c0_i32 = arith.constant 0 : i32
    %c0_i32_0 = arith.constant 0 : i32
    return %arg0, %c0_i32 : i32, i32
  }
  func.func @transform_1(%arg0: i32, %arg1: i32) -> (i32, i32) {
    %c0_i32 = arith.constant 0 : i32
    %c0_i32_0 = arith.constant 0 : i32
    %c0_i32_1 = arith.constant 0 : i32
    return %c0_i32, %c0_i32_0 : i32, i32
  }
  func.func @transform_2(%arg0: i32, %arg1: i32) -> (i32, i32) {
    %c0_i32 = arith.constant 0 : i32
    %c0_i32_0 = arith.constant 0 : i32
    %c0_i32_1 = arith.constant 0 : i32
    return %c0_i32, %c0_i32_0 : i32, i32
  }
  func.func @transform_3(%arg0: i32, %arg1: i32) -> (i32, i32) {
    %c0_i32 = arith.constant 0 : i32
    %c0_i32_0 = arith.constant 0 : i32
    %c0_i32_1 = arith.constant 0 : i32
    return %c0_i32, %c0_i32_0 : i32, i32
  }
  func.func @transform_4(%arg0: i32, %arg1: i32) -> (i32, i32) {
    %c0_i32 = arith.constant 0 : i32
    %c0_i32_0 = arith.constant 0 : i32
    %c0_i32_1 = arith.constant 0 : i32
    return %c0_i32, %c0_i32_0 : i32, i32
  }
  func.func @transform_5(%arg0: i32, %arg1: i32) -> (i32, i32) {
    %c0_i32 = arith.constant 0 : i32
    %c0_i32_0 = arith.constant 0 : i32
    %c0_i32_1 = arith.constant 0 : i32
    return %c0_i32, %c0_i32_0 : i32, i32
  }
  func.func @transform_6(%arg0: i32, %arg1: i32) -> (i32, i32) {
    %c0_i32 = arith.constant 0 : i32
    %c0_i32_0 = arith.constant 0 : i32
    %c0_i32_1 = arith.constant 0 : i32
    return %c0_i32, %c0_i32_0 : i32, i32
  }
  func.func @transform_7(%arg0: i32, %arg1: i32) -> (i32, i32) {
    %c0_i32 = arith.constant 0 : i32
    %c0_i32_0 = arith.constant 0 : i32
    return %c0_i32, %arg1 : i32, i32
  }
  func.func @transform_8(%arg0: i32, %arg1: i32) -> (i32, i32) {
    %c0_i32 = arith.constant 0 : i32
    %c0_i32_0 = arith.constant 0 : i32
    return %c0_i32, %arg1 : i32, i32
  }
  func.func @transform_9(%arg0: i32, %arg1: i32) -> (i32, i32) {
    %c0_i32 = arith.constant 0 : i32
    return %arg0, %arg1 : i32, i32
  }
}

</mosaic_0001>

<llo_original>
// kernel: generator_no_user_info.1
$region0: #{generator_no_user_info.1}
  #allocation0 [shape = 'u32[]', space=smem, size = 0x4, offset = 0x4, fixed_abs, tag = 'smem constant byte address 0x4 - core index']
  #allocation1 [shape = 'u32[144,128]{1,0:T(1,128)}', space=vmem, size = 0x12000, scoped, tag = 'internal scratch']
  #allocation2 [shape = 'bf16[32,1024]{1,0:T(8,128)(2,1)}', space=vmem, size = 0x10000, scoped, tag = 'scratch operand']
  %s0 = inlined_call_operand.vmem [shape: bf16[32,128], index: 0, kind: input, shape index: {}]
  %s1 = inlined_call_operand.vmem [shape: bf16[128,256], index: 1, kind: input, shape index: {}]
  %s2 = inlined_call_operand.vmem [shape: f32[1,256], index: 2, kind: input, shape index: {}]
  %s3 = inlined_call_operand.vmem [shape: bf16[256,512], index: 3, kind: input, shape index: {}]
  %s4 = inlined_call_operand.vmem [shape: f32[1,512], index: 4, kind: input, shape index: {}]
  %s5 = inlined_call_operand.vmem [shape: bf16[512,1024], index: 5, kind: input, shape index: {}]
  %s6 = inlined_call_operand.vmem [shape: f32[1,1024], index: 6, kind: input, shape index: {}]
  %s7 = inlined_call_operand.vmem [shape: bf16[1024,128], index: 7, kind: input, shape index: {}]
  %s8 = inlined_call_operand.vmem [shape: f32[1,128], index: 8, kind: input, shape index: {}]
  %s9 = inlined_call_operand.hbm [shape: f32[32,128], index: 9, kind: output, shape index: {}]
  %s10 = sld [smem:[#allocation0]]
  $region50: #{generator_no_user_info.1} parent=0
    _
  %s12 = ssub.s32 1, %s10
  %s13 = scalar_select 0, %s12, %s10
  $region1: #{generator_no_user_info.1} parent=0
    #allocation3 [shape = 'u8[16384]{0}', space=vmem, size = 0x4000, scoped, tag = 'output window, operand 0, single buffered']
    #allocation4 [shape = 's32[1]{0}', space=sflag, size = 0x4, scoped, tag = 'scoped memory for generator_no_user_info.1']
    %14 = vsyncpa [#allocation4], 0
    // Predicated region
    $region2: #{generator_no_user_info.1} parent=1 // pred_check
      _
    $region3: #{generator_no_user_info.1} parent=1 // pred_check_branch
      %16 = sbr.rel (0) target = $region5
    $region4: #{generator_no_user_info.1} parent=1 // pred_region
      _
    $region5: #{generator_no_user_info.1} parent=1 // pred_fallthru
      _
    // Predicated region
    $region6: #{generator_no_user_info.1} parent=1 // pred_check
      _
    $region7: #{generator_no_user_info.1} parent=1 // pred_check_branch
      %18 = sbr.rel (0) target = $region9
    $region8: #{generator_no_user_info.1} parent=1 // pred_region
      _
    $region9: #{generator_no_user_info.1} parent=1 // pred_fallthru
      _
    // Predicated region
    $region10: #{generator_no_user_info.1} parent=1 // pred_check
      _
    $region11: #{generator_no_user_info.1} parent=1 // pred_check_branch
      %20 = sbr.rel (0) target = $region13
    $region12: #{generator_no_user_info.1} parent=1 // pred_region
      _
    $region13: #{generator_no_user_info.1} parent=1 // pred_fallthru
      _
    // Predicated region
    $region14: #{generator_no_user_info.1} parent=1 // pred_check
      _
    $region15: #{generator_no_user_info.1} parent=1 // pred_check_branch
      %22 = sbr.rel (0) target = $region17
    $region16: #{generator_no_user_info.1} parent=1 // pred_region
      _
    $region17: #{generator_no_user_info.1} parent=1 // pred_fallthru
      _
    // Predicated region
    $region18: #{generator_no_user_info.1} parent=1 // pred_check
      _
    $region19: #{generator_no_user_info.1} parent=1 // pred_check_branch
      %24 = sbr.rel (0) target = $region21
    $region20: #{generator_no_user_info.1} parent=1 // pred_region
      _
    $region21: #{generator_no_user_info.1} parent=1 // pred_fallthru
      _
    // Predicated region
    $region22: #{generator_no_user_info.1} parent=1 // pred_check
      _
    $region23: #{generator_no_user_info.1} parent=1 // pred_check_branch
      %26 = sbr.rel (0) target = $region25
    $region24: #{generator_no_user_info.1} parent=1 // pred_region
      _
    $region25: #{generator_no_user_info.1} parent=1 // pred_fallthru
      _
    // Predicated region
    $region26: #{generator_no_user_info.1} parent=1 // pred_check
      _
    $region27: #{generator_no_user_info.1} parent=1 // pred_check_branch
      %28 = sbr.rel (0) target = $region29
    $region28: #{generator_no_user_info.1} parent=1 // pred_region
      _
    $region29: #{generator_no_user_info.1} parent=1 // pred_fallthru
      _
    // Predicated region
    $region30: #{generator_no_user_info.1} parent=1 // pred_check
      _
    $region31: #{generator_no_user_info.1} parent=1 // pred_check_branch
      %30 = sbr.rel (0) target = $region33
    $region32: #{generator_no_user_info.1} parent=1 // pred_region
      _
    $region33: #{generator_no_user_info.1} parent=1 // pred_fallthru
      _
    // Predicated region
    $region34: #{generator_no_user_info.1} parent=1 // pred_check
      _
    $region35: #{generator_no_user_info.1} parent=1 // pred_check_branch
      %32 = sbr.rel (0) target = $region37
    $region36: #{generator_no_user_info.1} parent=1 // pred_region
      _
    $region37: #{generator_no_user_info.1} parent=1 // pred_fallthru
      _
    %p34 = scmp.eq.s32.totalorder 0, 0
    // Predicated region
    $region38: #{generator_no_user_info.1} parent=1 // pred_check
      %p35 = pneg %p34
    $region39: #{generator_no_user_info.1} parent=1 // pred_check_branch
      %37 = sbr.rel (%p35) target = $region41
    $region40: #{generator_no_user_info.1} parent=1 // pred_region
      %v38 = vld [vmem:[%s0] sm:$0xf]
      %v39 = vld [vmem:[%s0 + $0x4] sm:$0xf]
      %v40 = vld [vmem:[%s0 + $0x8] sm:$0xf]
      %v41 = vld [vmem:[%s0 + $0xc] sm:$0xf]
      %v42 = vld [vmem:[%s1] sm:$0xff]
      %v43 = vld [vmem:[%s1 + $0x8] sm:$0xff]
      %v44 = vld [vmem:[%s1 + $0x10] sm:$0xff]
      %v45 = vld [vmem:[%s1 + $0x18] sm:$0xff]
      %v46 = vld [vmem:[%s1 + $0x20] sm:$0xff]
      %v47 = vld [vmem:[%s1 + $0x28] sm:$0xff]
      %v48 = vld [vmem:[%s1 + $0x30] sm:$0xff]
      %v49 = vld [vmem:[%s1 + $0x38] sm:$0xff]
      %v50 = vld [vmem:[%s1 + $0x40] sm:$0xff]
      %v51 = vld [vmem:[%s1 + $0x48] sm:$0xff]
      %v52 = vld [vmem:[%s1 + $0x50] sm:$0xff]
      %v53 = vld [vmem:[%s1 + $0x58] sm:$0xff]
      %v54 = vld [vmem:[%s1 + $0x60] sm:$0xff]
      %v55 = vld [vmem:[%s1 + $0x68] sm:$0xff]
      %v56 = vld [vmem:[%s1 + $0x70] sm:$0xff]
      %v57 = vld [vmem:[%s1 + $0x78] sm:$0xff]
      %v58 = vld [vmem:[%s2] sm:$0x3]
      %v60 = vlaneseq
      %v61 = vshrl.u32 %v60, 7
      %v62 = vsub.s32 0, %v61
      %v63 = vrot.slane %v58, %v62
      %v64 = vlaneseq
      %v65 = vshrl.u32 %v64, 7
      %v66 = vsub.s32 1, %v65
      %v67 = vrot.slane %v58, %v66
      %v74 = vunpack.c.l.b16 %v38
      %v75 = vunpack.c.l.b16 %v39
      %v76 = vunpack.c.l.b16 %v40
      %v77 = vunpack.c.l.b16 %v41
      %v78 = vpack.c.b16 %v75, %v74
      %v79 = vpack.c.b16 %v77, %v76
      %v98 = vunpack.c.l.b16 %v42
      %v99 = vunpack.c.h.b16 %v42
      %v100 = vunpack.c.l.b16 %v43
      %v101 = vunpack.c.h.b16 %v43
      %v102 = vunpack.c.l.b16 %v44
      %v103 = vunpack.c.h.b16 %v44
      %v104 = vunpack.c.l.b16 %v45
      %v105 = vunpack.c.h.b16 %v45
      %v106 = vunpack.c.l.b16 %v46
      %v107 = vunpack.c.h.b16 %v46
      %v108 = vunpack.c.l.b16 %v47
      %v109 = vunpack.c.h.b16 %v47
      %v110 = vunpack.c.l.b16 %v48
      %v111 = vunpack.c.h.b16 %v48
      %v112 = vunpack.c.l.b16 %v49
      %v113 = vunpack.c.h.b16 %v49
      %v114 = vunpack.c.l.b16 %v50
      %v115 = vunpack.c.h.b16 %v50
      %v116 = vunpack.c.l.b16 %v51
      %v117 = vunpack.c.h.b16 %v51
      %v118 = vunpack.c.l.b16 %v52
      %v119 = vunpack.c.h.b16 %v52
      %v120 = vunpack.c.l.b16 %v53
      %v121 = vunpack.c.h.b16 %v53
      %v122 = vunpack.c.l.b16 %v54
      %v123 = vunpack.c.h.b16 %v54
      %v124 = vunpack.c.l.b16 %v55
      %v125 = vunpack.c.h.b16 %v55
      %v126 = vunpack.c.l.b16 %v56
      %v127 = vunpack.c.h.b16 %v56
      %v128 = vunpack.c.l.b16 %v57
      %v129 = vunpack.c.h.b16 %v57
      %v130 = vpack.c.b16 %v100, %v98
      %v131 = vpack.c.b16 %v101, %v99
      %v132 = vpack.c.b16 %v104, %v102
      %v133 = vpack.c.b16 %v105, %v103
      %v134 = vpack.c.b16 %v108, %v106
      %v135 = vpack.c.b16 %v109, %v107
      %v136 = vpack.c.b16 %v112, %v110
      %v137 = vpack.c.b16 %v113, %v111
      %v138 = vpack.c.b16 %v116, %v114
      %v139 = vpack.c.b16 %v117, %v115
      %v140 = vpack.c.b16 %v120, %v118
      %v141 = vpack.c.b16 %v121, %v119
      %v142 = vpack.c.b16 %v124, %v122
      %v143 = vpack.c.b16 %v125, %v123
      %v144 = vpack.c.b16 %v128, %v126
      %v145 = vpack.c.b16 %v129, %v127
      %162 = vmatprep.subr.bf16.mxu0 %v145
      %163 = vmatpush1.bf16.msra.mxu0 %v144
      %164 = vmatprep.subr.bf16.mxu0 %v143
      %165 = vmatpush1.bf16.msra.mxu0 %v142
      %166 = vmatprep.subr.bf16.mxu0 %v141
      %167 = vmatpush1.bf16.msra.mxu0 %v140
      %168 = vmatprep.subr.bf16.mxu0 %v139
      %169 = vmatpush1.bf16.msra.mxu0 %v138
      %170 = vmatprep.subr.bf16.mxu0 %v137
      %171 = vmatpush1.bf16.msra.mxu0 %v136
      %172 = vmatprep.subr.bf16.mxu0 %v135
      %173 = vmatpush1.bf16.msra.mxu0 %v134
      %174 = vmatprep.subr.bf16.mxu0 %v133
      %175 = vmatpush1.bf16.msra.mxu0 %v132
      %176 = vmatprep.subr.bf16.mxu0 %v131
      %177 = vmatpush1.bf16.msra.mxu0 %v130
      %178 = vmatprep.subr.bf16.mxu0 0
      %179 = vmatpush2.bf16.msra.mxu0 0
      %180 = vmatprep.subr.bf16.mxu0 0
      %181 = vmatpush2.bf16.msra.mxu0 0
      %182 = vmatprep.subr.bf16.mxu0 0
      %183 = vmatpush2.bf16.msra.mxu0 0
      %184 = vmatprep.subr.bf16.mxu0 0
      %185 = vmatpush2.bf16.msra.mxu0 0
      %186 = vmatprep.subr.bf16.mxu0 0
      %187 = vmatpush2.bf16.msra.mxu0 0
      %188 = vmatprep.subr.bf16.mxu0 0
      %189 = vmatpush2.bf16.msra.mxu0 0
      %190 = vmatprep.subr.bf16.mxu0 0
      %191 = vmatpush2.bf16.msra.mxu0 0
      %192 = vmatprep.subr.bf16.mxu0 0
      %193 = vmatpush2.bf16.msra.mxu0 0
      %194 = vmatprep.mubr.bf16.mxu0 0
      %195 = vmatmul.mubr.bf16.gmra.mxu0 %v78
      %v196 = vpop.f32.mrf.mxu0
      %v197 = vadd.f32 %v63, %v196
      %v198 = vpop.f32.mrf.mxu0
      %v199 = vadd.f32 %v67, %v198
      %v200 = vpop.f32.mrf.mxu0
      %v201 = vadd.f32 %v63, %v200
      %v202 = vpop.f32.mrf.mxu0
      %v203 = vadd.f32 %v67, %v202
      %204 = vmatprep.mubr.bf16.mxu0 0
      %205 = vmatmul.mubr.bf16.gmra.mxu0 %v79
      %v206 = vpop.f32.mrf.mxu0
      %v207 = vadd.f32 %v63, %v206
      %v208 = vpop.f32.mrf.mxu0
      %v209 = vadd.f32 %v67, %v208
      %v210 = vpop.f32.mrf.mxu0
      %v211 = vadd.f32 %v63, %v210
      %v212 = vpop.f32.mrf.mxu0
      %v213 = vadd.f32 %v67, %v212
      %214 = vdwg.mxu0
      %v215 = vmax.f32 %v197, 0.0
      %v216 = vmax.f32 %v199, 0.0
      %v217 = vmax.f32 %v201, 0.0
      %v218 = vmax.f32 %v203, 0.0
      %v219 = vmax.f32 %v207, 0.0
      %v220 = vmax.f32 %v209, 0.0
      %v221 = vmax.f32 %v211, 0.0
      %v222 = vmax.f32 %v213, 0.0
      %v223 = vpack.c.bf16 %v217, %v215
      %v224 = vpack.c.bf16 %v218, %v216
      %v225 = vpack.c.bf16 %v221, %v219
      %v226 = vpack.c.bf16 %v222, %v220
      %v227 = vld [vmem:[%s3] sm:$0xff]
      %v228 = vld [vmem:[%s3 + $0x8] sm:$0xff]
      %v229 = vld [vmem:[%s3 + $0x10] sm:$0xff]
      %v230 = vld [vmem:[%s3 + $0x18] sm:$0xff]
      %v231 = vld [vmem:[%s3 + $0x20] sm:$0xff]
      %v232 = vld [vmem:[%s3 + $0x28] sm:$0xff]
      %v233 = vld [vmem:[%s3 + $0x30] sm:$0xff]
      %v234 = vld [vmem:[%s3 + $0x38] sm:$0xff]
      %v235 = vld [vmem:[%s3 + $0x40] sm:$0xff]
      %v236 = vld [vmem:[%s3 + $0x48] sm:$0xff]
      %v237 = vld [vmem:[%s3 + $0x50] sm:$0xff]
      %v238 = vld [vmem:[%s3 + $0x58] sm:$0xff]
      %v239 = vld [vmem:[%s3 + $0x60] sm:$0xff]
      %v240 = vld [vmem:[%s3 + $0x68] sm:$0xff]
      %v241 = vld [vmem:[%s3 + $0x70] sm:$0xff]
      %v242 = vld [vmem:[%s3 + $0x78] sm:$0xff]
      %v243 = vld [vmem:[%s3 + $0x80] sm:$0xff]
      %v244 = vld [vmem:[%s3 + $0x88] sm:$0xff]
      %v245 = vld [vmem:[%s3 + $0x90] sm:$0xff]
      %v246 = vld [vmem:[%s3 + $0x98] sm:$0xff]
      %v247 = vld [vmem:[%s3 + $0xa0] sm:$0xff]
      %v248 = vld [vmem:[%s3 + $0xa8] sm:$0xff]
      %v249 = vld [vmem:[%s3 + $0xb0] sm:$0xff]
      %v250 = vld [vmem:[%s3 + $0xb8] sm:$0xff]
      %v251 = vld [vmem:[%s3 + $0xc0] sm:$0xff]
      %v252 = vld [vmem:[%s3 + $0xc8] sm:$0xff]
      %v253 = vld [vmem:[%s3 + $0xd0] sm:$0xff]
      %v254 = vld [vmem:[%s3 + $0xd8] sm:$0xff]
      %v255 = vld [vmem:[%s3 + $0xe0] sm:$0xff]
      %v256 = vld [vmem:[%s3 + $0xe8] sm:$0xff]
      %v257 = vld [vmem:[%s3 + $0xf0] sm:$0xff]
      %v258 = vld [vmem:[%s3 + $0xf8] sm:$0xff]
      %v259 = vld [vmem:[%s3 + $0x100] sm:$0xff]
      %v260 = vld [vmem:[%s3 + $0x108] sm:$0xff]
      %v261 = vld [vmem:[%s3 + $0x110] sm:$0xff]
      %v262 = vld [vmem:[%s3 + $0x118] sm:$0xff]
      %v263 = vld [vmem:[%s3 + $0x120] sm:$0xff]
      %v264 = vld [vmem:[%s3 + $0x128] sm:$0xff]
      %v265 = vld [vmem:[%s3 + $0x130] sm:$0xff]
      %v266 = vld [vmem:[%s3 + $0x138] sm:$0xff]
      %v267 = vld [vmem:[%s3 + $0x140] sm:$0xff]
      %v268 = vld [vmem:[%s3 + $0x148] sm:$0xff]
      %v269 = vld [vmem:[%s3 + $0x150] sm:$0xff]
      %v270 = vld [vmem:[%s3 + $0x158] sm:$0xff]
      %v271 = vld [vmem:[%s3 + $0x160] sm:$0xff]
      %v272 = vld [vmem:[%s3 + $0x168] sm:$0xff]
      %v273 = vld [vmem:[%s3 + $0x170] sm:$0xff]
      %v274 = vld [vmem:[%s3 + $0x178] sm:$0xff]
      %v275 = vld [vmem:[%s3 + $0x180] sm:$0xff]
      %v276 = vld [vmem:[%s3 + $0x188] sm:$0xff]
      %v277 = vld [vmem:[%s3 + $0x190] sm:$0xff]
      %v278 = vld [vmem:[%s3 + $0x198] sm:$0xff]
      %v279 = vld [vmem:[%s3 + $0x1a0] sm:$0xff]
      %v280 = vld [vmem:[%s3 + $0x1a8] sm:$0xff]
      %v281 = vld [vmem:[%s3 + $0x1b0] sm:$0xff]
      %v282 = vld [vmem:[%s3 + $0x1b8] sm:$0xff]
      %v283 = vld [vmem:[%s3 + $0x1c0] sm:$0xff]
      %v284 = vld [vmem:[%s3 + $0x1c8] sm:$0xff]
      %v285 = vld [vmem:[%s3 + $0x1d0] sm:$0xff]
      %v286 = vld [vmem:[%s3 + $0x1d8] sm:$0xff]
      %v287 = vld [vmem:[%s3 + $0x1e0] sm:$0xff]
      %v288 = vld [vmem:[%s3 + $0x1e8] sm:$0xff]
      %v289 = vld [vmem:[%s3 + $0x1f0] sm:$0xff]
      %v290 = vld [vmem:[%s3 + $0x1f8] sm:$0xff]
      %v291 = vld [vmem:[%s4] sm:$0xf]
      %v293 = vlaneseq
      %v294 = vshrl.u32 %v293, 7
      %v295 = vsub.s32 0, %v294
      %v296 = vrot.slane %v291, %v295
      %v297 = vlaneseq
      %v298 = vshrl.u32 %v297, 7
      %v299 = vsub.s32 1, %v298
      %v300 = vrot.slane %v291, %v299
      %v301 = vlaneseq
      %v302 = vshrl.u32 %v301, 7
      %v303 = vsub.s32 2, %v302
      %v304 = vrot.slane %v291, %v303
      %v305 = vlaneseq
      %v306 = vshrl.u32 %v305, 7
      %v307 = vsub.s32 3, %v306
      %v308 = vrot.slane %v291, %v307
      %v377 = vunpack.c.l.b16 %v227
      %v378 = vunpack.c.h.b16 %v227
      %v379 = vunpack.c.l.b16 %v228
      %v380 = vunpack.c.h.b16 %v228
      %v381 = vunpack.c.l.b16 %v229
      %v382 = vunpack.c.h.b16 %v229
      %v383 = vunpack.c.l.b16 %v230
      %v384 = vunpack.c.h.b16 %v230
      %v385 = vunpack.c.l.b16 %v231
      %v386 = vunpack.c.h.b16 %v231
      %v387 = vunpack.c.l.b16 %v232
      %v388 = vunpack.c.h.b16 %v232
      %v389 = vunpack.c.l.b16 %v233
      %v390 = vunpack.c.h.b16 %v233
      %v391 = vunpack.c.l.b16 %v234
      %v392 = vunpack.c.h.b16 %v234
      %v393 = vunpack.c.l.b16 %v235
      %v394 = vunpack.c.h.b16 %v235
      %v395 = vunpack.c.l.b16 %v236
      %v396 = vunpack.c.h.b16 %v236
      %v397 = vunpack.c.l.b16 %v237
      %v398 = vunpack.c.h.b16 %v237
      %v399 = vunpack.c.l.b16 %v238
      %v400 = vunpack.c.h.b16 %v238
      %v401 = vunpack.c.l.b16 %v239
      %v402 = vunpack.c.h.b16 %v239
      %v403 = vunpack.c.l.b16 %v240
      %v404 = vunpack.c.h.b16 %v240
      %v405 = vunpack.c.l.b16 %v241
      %v406 = vunpack.c.h.b16 %v241
      %v407 = vunpack.c.l.b16 %v242
      %v408 = vunpack.c.h.b16 %v242
      %v409 = vunpack.c.l.b16 %v243
      %v410 = vunpack.c.h.b16 %v243
      %v411 = vunpack.c.l.b16 %v244
      %v412 = vunpack.c.h.b16 %v244
      %v413 = vunpack.c.l.b16 %v245
      %v414 = vunpack.c.h.b16 %v245
      %v415 = vunpack.c.l.b16 %v246
      %v416 = vunpack.c.h.b16 %v246
      %v417 = vunpack.c.l.b16 %v247
      %v418 = vunpack.c.h.b16 %v247
      %v419 = vunpack.c.l.b16 %v248
      %v420 = vunpack.c.h.b16 %v248
      %v421 = vunpack.c.l.b16 %v249
      %v422 = vunpack.c.h.b16 %v249
      %v423 = vunpack.c.l.b16 %v250
      %v424 = vunpack.c.h.b16 %v250
      %v425 = vunpack.c.l.b16 %v251
      %v426 = vunpack.c.h.b16 %v251
      %v427 = vunpack.c.l.b16 %v252
      %v428 = vunpack.c.h.b16 %v252
      %v429 = vunpack.c.l.b16 %v253
      %v430 = vunpack.c.h.b16 %v253
      %v431 = vunpack.c.l.b16 %v254
      %v432 = vunpack.c.h.b16 %v254
      %v433 = vunpack.c.l.b16 %v255
      %v434 = vunpack.c.h.b16 %v255
      %v435 = vunpack.c.l.b16 %v256
      %v436 = vunpack.c.h.b16 %v256
      %v437 = vunpack.c.l.b16 %v257
      %v438 = vunpack.c.h.b16 %v257
      %v439 = vunpack.c.l.b16 %v258
      %v440 = vunpack.c.h.b16 %v258
      %v441 = vunpack.c.l.b16 %v259
      %v442 = vunpack.c.h.b16 %v259
      %v443 = vunpack.c.l.b16 %v260
      %v444 = vunpack.c.h.b16 %v260
      %v445 = vunpack.c.l.b16 %v261
      %v446 = vunpack.c.h.b16 %v261
      %v447 = vunpack.c.l.b16 %v262
      %v448 = vunpack.c.h.b16 %v262
      %v449 = vunpack.c.l.b16 %v263
      %v450 = vunpack.c.h.b16 %v263
      %v451 = vunpack.c.l.b16 %v264
      %v452 = vunpack.c.h.b16 %v264
      %v453 = vunpack.c.l.b16 %v265
      %v454 = vunpack.c.h.b16 %v265
      %v455 = vunpack.c.l.b16 %v266
      %v456 = vunpack.c.h.b16 %v266
      %v457 = vunpack.c.l.b16 %v267
      %v458 = vunpack.c.h.b16 %v267
      %v459 = vunpack.c.l.b16 %v268
      %v460 = vunpack.c.h.b16 %v268
      %v461 = vunpack.c.l.b16 %v269
      %v462 = vunpack.c.h.b16 %v269
      %v463 = vunpack.c.l.b16 %v270
      %v464 = vunpack.c.h.b16 %v270
      %v465 = vunpack.c.l.b16 %v271
      %v466 = vunpack.c.h.b16 %v271
      %v467 = vunpack.c.l.b16 %v272
      %v468 = vunpack.c.h.b16 %v272
      %v469 = vunpack.c.l.b16 %v273
      %v470 = vunpack.c.h.b16 %v273
      %v471 = vunpack.c.l.b16 %v274
      %v472 = vunpack.c.h.b16 %v274
      %v473 = vunpack.c.l.b16 %v275
      %v474 = vunpack.c.h.b16 %v275
      %v475 = vunpack.c.l.b16 %v276
      %v476 = vunpack.c.h.b16 %v276
      %v477 = vunpack.c.l.b16 %v277
      %v478 = vunpack.c.h.b16 %v277
      %v479 = vunpack.c.l.b16 %v278
      %v480 = vunpack.c.h.b16 %v278
      %v481 = vunpack.c.l.b16 %v279
      %v482 = vunpack.c.h.b16 %v279
      %v483 = vunpack.c.l.b16 %v280
      %v484 = vunpack.c.h.b16 %v280
      %v485 = vunpack.c.l.b16 %v281
      %v486 = vunpack.c.h.b16 %v281
      %v487 = vunpack.c.l.b16 %v282
      %v488 = vunpack.c.h.b16 %v282
      %v489 = vunpack.c.l.b16 %v283
      %v490 = vunpack.c.h.b16 %v283
      %v491 = vunpack.c.l.b16 %v284
      %v492 = vunpack.c.h.b16 %v284
      %v493 = vunpack.c.l.b16 %v285
      %v494 = vunpack.c.h.b16 %v285
      %v495 = vunpack.c.l.b16 %v286
      %v496 = vunpack.c.h.b16 %v286
      %v497 = vunpack.c.l.b16 %v287
      %v498 = vunpack.c.h.b16 %v287
      %v499 = vunpack.c.l.b16 %v288
      %v500 = vunpack.c.h.b16 %v288
      %v501 = vunpack.c.l.b16 %v289
      %v502 = vunpack.c.h.b16 %v289
      %v503 = vunpack.c.l.b16 %v290
      %v504 = vunpack.c.h.b16 %v290
      %v505 = vpack.c.b16 %v381, %v377
      %v506 = vpack.c.b16 %v382, %v378
      %v507 = vpack.c.b16 %v383, %v379
      %v508 = vpack.c.b16 %v384, %v380
      %v509 = vpack.c.b16 %v389, %v385
      %v510 = vpack.c.b16 %v390, %v386
      %v511 = vpack.c.b16 %v391, %v387
      %v512 = vpack.c.b16 %v392, %v388
      %v513 = vpack.c.b16 %v397, %v393
      %v514 = vpack.c.b16 %v398, %v394
      %v515 = vpack.c.b16 %v399, %v395
      %v516 = vpack.c.b16 %v400, %v396
      %v517 = vpack.c.b16 %v405, %v401
      %v518 = vpack.c.b16 %v406, %v402
      %v519 = vpack.c.b16 %v407, %v403
      %v520 = vpack.c.b16 %v408, %v404
      %v521 = vpack.c.b16 %v413, %v409
      %v522 = vpack.c.b16 %v414, %v410
      %v523 = vpack.c.b16 %v415, %v411
      %v524 = vpack.c.b16 %v416, %v412
      %v525 = vpack.c.b16 %v421, %v417
      %v526 = vpack.c.b16 %v422, %v418
      %v527 = vpack.c.b16 %v423, %v419
      %v528 = vpack.c.b16 %v424, %v420
      %v529 = vpack.c.b16 %v429, %v425
      %v530 = vpack.c.b16 %v430, %v426
      %v531 = vpack.c.b16 %v431, %v427
      %v532 = vpack.c.b16 %v432, %v428
      %v533 = vpack.c.b16 %v437, %v433
      %v534 = vpack.c.b16 %v438, %v434
      %v535 = vpack.c.b16 %v439, %v435
      %v536 = vpack.c.b16 %v440, %v436
      %v537 = vpack.c.b16 %v445, %v441
      %v538 = vpack.c.b16 %v446, %v442
      %v539 = vpack.c.b16 %v447, %v443
      %v540 = vpack.c.b16 %v448, %v444
      %v541 = vpack.c.b16 %v453, %v449
      %v542 = vpack.c.b16 %v454, %v450
      %v543 = vpack.c.b16 %v455, %v451
      %v544 = vpack.c.b16 %v456, %v452
      %v545 = vpack.c.b16 %v461, %v457
      %v546 = vpack.c.b16 %v462, %v458
      %v547 = vpack.c.b16 %v463, %v459
      %v548 = vpack.c.b16 %v464, %v460
      %v549 = vpack.c.b16 %v469, %v465
      %v550 = vpack.c.b16 %v470, %v466
      %v551 = vpack.c.b16 %v471, %v467
      %v552 = vpack.c.b16 %v472, %v468
      %v553 = vpack.c.b16 %v477, %v473
      %v554 = vpack.c.b16 %v478, %v474
      %v555 = vpack.c.b16 %v479, %v475
      %v556 = vpack.c.b16 %v480, %v476
      %v557 = vpack.c.b16 %v485, %v481
      %v558 = vpack.c.b16 %v486, %v482
      %v559 = vpack.c.b16 %v487, %v483
      %v560 = vpack.c.b16 %v488, %v484
      %v561 = vpack.c.b16 %v493, %v489
      %v562 = vpack.c.b16 %v494, %v490
      %v563 = vpack.c.b16 %v495, %v491
      %v564 = vpack.c.b16 %v496, %v492
      %v565 = vpack.c.b16 %v501, %v497
      %v566 = vpack.c.b16 %v502, %v498
      %v567 = vpack.c.b16 %v503, %v499
      %v568 = vpack.c.b16 %v504, %v500
      %633 = vmatprep.subr.bf16.mxu0 %v534
      %634 = vmatpush1.bf16.msra.mxu0 %v533
      %635 = vmatprep.subr.bf16.mxu0 %v530
      %636 = vmatpush1.bf16.msra.mxu0 %v529
      %637 = vmatprep.subr.bf16.mxu0 %v526
      %638 = vmatpush1.bf16.msra.mxu0 %v525
      %639 = vmatprep.subr.bf16.mxu0 %v522
      %640 = vmatpush1.bf16.msra.mxu0 %v521
      %641 = vmatprep.subr.bf16.mxu0 %v518
      %642 = vmatpush1.bf16.msra.mxu0 %v517
      %643 = vmatprep.subr.bf16.mxu0 %v514
      %644 = vmatpush1.bf16.msra.mxu0 %v513
      %645 = vmatprep.subr.bf16.mxu0 %v510
      %646 = vmatpush1.bf16.msra.mxu0 %v509
      %647 = vmatprep.subr.bf16.mxu0 %v506
      %648 = vmatpush1.bf16.msra.mxu0 %v505
      %649 = vmatprep.subr.bf16.mxu0 %v566
      %650 = vmatpush2.bf16.msra.mxu0 %v565
      %651 = vmatprep.subr.bf16.mxu0 %v562
      %652 = vmatpush2.bf16.msra.mxu0 %v561
      %653 = vmatprep.subr.bf16.mxu0 %v558
      %654 = vmatpush2.bf16.msra.mxu0 %v557
      %655 = vmatprep.subr.bf16.mxu0 %v554
      %656 = vmatpush2.bf16.msra.mxu0 %v553
      %657 = vmatprep.subr.bf16.mxu0 %v550
      %658 = vmatpush2.bf16.msra.mxu0 %v549
      %659 = vmatprep.subr.bf16.mxu0 %v546
      %660 = vmatpush2.bf16.msra.mxu0 %v545
      %661 = vmatprep.subr.bf16.mxu0 %v542
      %662 = vmatpush2.bf16.msra.mxu0 %v541
      %663 = vmatprep.subr.bf16.mxu0 %v538
      %664 = vmatpush2.bf16.msra.mxu0 %v537
      %665 = vmatprep.mubr.bf16.mxu0 %v224
      %666 = vmatmul.mubr.bf16.gmra.mxu0 %v223
      %v667 = vpop.f32.mrf.mxu0
      %v668 = vadd.f32 %v296, %v667
      %v669 = vpop.f32.mrf.mxu0
      %v670 = vadd.f32 %v300, %v669
      %v671 = vpop.f32.mrf.mxu0
      %v672 = vadd.f32 %v296, %v671
      %v673 = vpop.f32.mrf.mxu0
      %v674 = vadd.f32 %v300, %v673
      %675 = vmatprep.mubr.bf16.mxu0 %v226
      %676 = vmatmul.mubr.bf16.gmra.mxu0 %v225
      %v677 = vpop.f32.mrf.mxu0
      %v678 = vadd.f32 %v296, %v677
      %v679 = vpop.f32.mrf.mxu0
      %v680 = vadd.f32 %v300, %v679
      %v681 = vpop.f32.mrf.mxu0
      %v682 = vadd.f32 %v296, %v681
      %v683 = vpop.f32.mrf.mxu0
      %v684 = vadd.f32 %v300, %v683
      %685 = vdwg.mxu0
      %686 = vmatprep.subr.bf16.mxu0 %v536
      %687 = vmatpush1.bf16.msra.mxu0 %v535
      %688 = vmatprep.subr.bf16.mxu0 %v532
      %689 = vmatpush1.bf16.msra.mxu0 %v531
      %690 = vmatprep.subr.bf16.mxu0 %v528
      %691 = vmatpush1.bf16.msra.mxu0 %v527
      %692 = vmatprep.subr.bf16.mxu0 %v524
      %693 = vmatpush1.bf16.msra.mxu0 %v523
      %694 = vmatprep.subr.bf16.mxu0 %v520
      %695 = vmatpush1.bf16.msra.mxu0 %v519
      %696 = vmatprep.subr.bf16.mxu0 %v516
      %697 = vmatpush1.bf16.msra.mxu0 %v515
      %698 = vmatprep.subr.bf16.mxu0 %v512
      %699 = vmatpush1.bf16.msra.mxu0 %v511
      %700 = vmatprep.subr.bf16.mxu0 %v508
      %701 = vmatpush1.bf16.msra.mxu0 %v507
      %702 = vmatprep.subr.bf16.mxu0 %v568
      %703 = vmatpush2.bf16.msra.mxu0 %v567
      %704 = vmatprep.subr.bf16.mxu0 %v564
      %705 = vmatpush2.bf16.msra.mxu0 %v563
      %706 = vmatprep.subr.bf16.mxu0 %v560
      %707 = vmatpush2.bf16.msra.mxu0 %v559
      %708 = vmatprep.subr.bf16.mxu0 %v556
      %709 = vmatpush2.bf16.msra.mxu0 %v555
      %710 = vmatprep.subr.bf16.mxu0 %v552
      %711 = vmatpush2.bf16.msra.mxu0 %v551
      %712 = vmatprep.subr.bf16.mxu0 %v548
      %713 = vmatpush2.bf16.msra.mxu0 %v547
      %714 = vmatprep.subr.bf16.mxu0 %v544
      %715 = vmatpush2.bf16.msra.mxu0 %v543
      %716 = vmatprep.subr.bf16.mxu0 %v540
      %717 = vmatpush2.bf16.msra.mxu0 %v539
      %718 = vmatprep.mubr.bf16.mxu0 %v224
      %719 = vmatmul.mubr.bf16.gmra.mxu0 %v223
      %v720 = vpop.f32.mrf.mxu0
      %v721 = vadd.f32 %v304, %v720
      %v722 = vpop.f32.mrf.mxu0
      %v723 = vadd.f32 %v308, %v722
      %v724 = vpop.f32.mrf.mxu0
      %v725 = vadd.f32 %v304, %v724
      %v726 = vpop.f32.mrf.mxu0
      %v727 = vadd.f32 %v308, %v726
      %728 = vmatprep.mubr.bf16.mxu0 %v226
      %729 = vmatmul.mubr.bf16.gmra.mxu0 %v225
      %v730 = vpop.f32.mrf.mxu0
      %v731 = vadd.f32 %v304, %v730
      %v732 = vpop.f32.mrf.mxu0
      %v733 = vadd.f32 %v308, %v732
      %v734 = vpop.f32.mrf.mxu0
      %v735 = vadd.f32 %v304, %v734
      %v736 = vpop.f32.mrf.mxu0
      %v737 = vadd.f32 %v308, %v736
      %738 = vdwg.mxu0
      %v739 = vmax.f32 %v668, 0.0
      %v740 = vmax.f32 %v670, 0.0
      %v741 = vmax.f32 %v721, 0.0
      %v742 = vmax.f32 %v723, 0.0
      %v743 = vmax.f32 %v672, 0.0
      %v744 = vmax.f32 %v674, 0.0
      %v745 = vmax.f32 %v725, 0.0
      %v746 = vmax.f32 %v727, 0.0
      %v747 = vmax.f32 %v678, 0.0
      %v748 = vmax.f32 %v680, 0.0
      %v749 = vmax.f32 %v731, 0.0
      %v750 = vmax.f32 %v733, 0.0
      %v751 = vmax.f32 %v682, 0.0
      %v752 = vmax.f32 %v684, 0.0
      %v753 = vmax.f32 %v735, 0.0
      %v754 = vmax.f32 %v737, 0.0
      %v755 = vpack.c.bf16 %v743, %v739
      %v756 = vpack.c.bf16 %v744, %v740
      %v757 = vpack.c.bf16 %v745, %v741
      %v758 = vpack.c.bf16 %v746, %v742
      %v759 = vpack.c.bf16 %v751, %v747
      %v760 = vpack.c.bf16 %v752, %v748
      %v761 = vpack.c.bf16 %v753, %v749
      %v762 = vpack.c.bf16 %v754, %v750
      %v763 = vld [vmem:[%s5] sm:$0xff]
      %v764 = vld [vmem:[%s5 + $0x8] sm:$0xff]
      %v765 = vld [vmem:[%s5 + $0x10] sm:$0xff]
      %v766 = vld [vmem:[%s5 + $0x18] sm:$0xff]
      %v767 = vld [vmem:[%s5 + $0x20] sm:$0xff]
      %v768 = vld [vmem:[%s5 + $0x28] sm:$0xff]
      %v769 = vld [vmem:[%s5 + $0x30] sm:$0xff]
      %v770 = vld [vmem:[%s5 + $0x38] sm:$0xff]
      %v771 = vld [vmem:[%s5 + $0x40] sm:$0xff]
      %v772 = vld [vmem:[%s5 + $0x48] sm:$0xff]
      %v773 = vld [vmem:[%s5 + $0x50] sm:$0xff]
      %v774 = vld [vmem:[%s5 + $0x58] sm:$0xff]
      %v775 = vld [vmem:[%s5 + $0x60] sm:$0xff]
      %v776 = vld [vmem:[%s5 + $0x68] sm:$0xff]
      %v777 = vld [vmem:[%s5 + $0x70] sm:$0xff]
      %v778 = vld [vmem:[%s5 + $0x78] sm:$0xff]
      %v779 = vld [vmem:[%s5 + $0x80] sm:$0xff]
      %v780 = vld [vmem:[%s5 + $0x88] sm:$0xff]
      %v781 = vld [vmem:[%s5 + $0x90] sm:$0xff]
      %v782 = vld [vmem:[%s5 + $0x98] sm:$0xff]
      %v783 = vld [vmem:[%s5 + $0xa0] sm:$0xff]
      %v784 = vld [vmem:[%s5 + $0xa8] sm:$0xff]
      %v785 = vld [vmem:[%s5 + $0xb0] sm:$0xff]
      %v786 = vld [vmem:[%s5 + $0xb8] sm:$0xff]
      %v787 = vld [vmem:[%s5 + $0xc0] sm:$0xff]
      %v788 = vld [vmem:[%s5 + $0xc8] sm:$0xff]
      %v789 = vld [vmem:[%s5 + $0xd0] sm:$0xff]
      %v790 = vld [vmem:[%s5 + $0xd8] sm:$0xff]
      %v791 = vld [vmem:[%s5 + $0xe0] sm:$0xff]
      %v792 = vld [vmem:[%s5 + $0xe8] sm:$0xff]
      %v793 = vld [vmem:[%s5 + $0xf0] sm:$0xff]
      %v794 = vld [vmem:[%s5 + $0xf8] sm:$0xff]
      %v795 = vld [vmem:[%s5 + $0x100] sm:$0xff]
      %v796 = vld [vmem:[%s5 + $0x108] sm:$0xff]
      %v797 = vld [vmem:[%s5 + $0x110] sm:$0xff]
      %v798 = vld [vmem:[%s5 + $0x118] sm:$0xff]
      %v799 = vld [vmem:[%s5 + $0x120] sm:$0xff]
      %v800 = vld [vmem:[%s5 + $0x128] sm:$0xff]
      %v801 = vld [vmem:[%s5 + $0x130] sm:$0xff]
      %v802 = vld [vmem:[%s5 + $0x138] sm:$0xff]
      %v803 = vld [vmem:[%s5 + $0x140] sm:$0xff]
      %v804 = vld [vmem:[%s5 + $0x148] sm:$0xff]
      %v805 = vld [vmem:[%s5 + $0x150] sm:$0xff]
      %v806 = vld [vmem:[%s5 + $0x158] sm:$0xff]
      %v807 = vld [vmem:[%s5 + $0x160] sm:$0xff]
      %v808 = vld [vmem:[%s5 + $0x168] sm:$0xff]
      %v809 = vld [vmem:[%s5 + $0x170] sm:$0xff]
      %v810 = vld [vmem:[%s5 + $0x178] sm:$0xff]
      %v811 = vld [vmem:[%s5 + $0x180] sm:$0xff]
      %v812 = vld [vmem:[%s5 + $0x188] sm:$0xff]
      %v813 = vld [vmem:[%s5 + $0x190] sm:$0xff]
      %v814 = vld [vmem:[%s5 + $0x198] sm:$0xff]
      %v815 = vld [vmem:[%s5 + $0x1a0] sm:$0xff]
      %v816 = vld [vmem:[%s5 + $0x1a8] sm:$0xff]
      %v817 = vld [vmem:[%s5 + $0x1b0] sm:$0xff]
      %v818 = vld [vmem:[%s5 + $0x1b8] sm:$0xff]
      %v819 = vld [vmem:[%s5 + $0x1c0] sm:$0xff]
      %v820 = vld [vmem:[%s5 + $0x1c8] sm:$0xff]
      %v821 = vld [vmem:[%s5 + $0x1d0] sm:$0xff]
      %v822 = vld [vmem:[%s5 + $0x1d8] sm:$0xff]
      %v823 = vld [vmem:[%s5 + $0x1e0] sm:$0xff]
      %v824 = vld [vmem:[%s5 + $0x1e8] sm:$0xff]
      %v825 = vld [vmem:[%s5 + $0x1f0] sm:$0xff]
      %v826 = vld [vmem:[%s5 + $0x1f8] sm:$0xff]
      %v827 = vld [vmem:[%s5 + $0x200] sm:$0xff]
      %v828 = vld [vmem:[%s5 + $0x208] sm:$0xff]
      %v829 = vld [vmem:[%s5 + $0x210] sm:$0xff]
      %v830 = vld [vmem:[%s5 + $0x218] sm:$0xff]
      %v831 = vld [vmem:[%s5 + $0x220] sm:$0xff]
      %v832 = vld [vmem:[%s5 + $0x228] sm:$0xff]
      %v833 = vld [vmem:[%s5 + $0x230] sm:$0xff]
      %v834 = vld [vmem:[%s5 + $0x238] sm:$0xff]
      %v835 = vld [vmem:[%s5 + $0x240] sm:$0xff]
      %v836 = vld [vmem:[%s5 + $0x248] sm:$0xff]
      %v837 = vld [vmem:[%s5 + $0x250] sm:$0xff]
      %v838 = vld [vmem:[%s5 + $0x258] sm:$0xff]
      %v839 = vld [vmem:[%s5 + $0x260] sm:$0xff]
      %v840 = vld [vmem:[%s5 + $0x268] sm:$0xff]
      %v841 = vld [vmem:[%s5 + $0x270] sm:$0xff]
      %v842 = vld [vmem:[%s5 + $0x278] sm:$0xff]
      %v843 = vld [vmem:[%s5 + $0x280] sm:$0xff]
      %v844 = vld [vmem:[%s5 + $0x288] sm:$0xff]
      %v845 = vld [vmem:[%s5 + $0x290] sm:$0xff]
      %v846 = vld [vmem:[%s5 + $0x298] sm:$0xff]
      %v847 = vld [vmem:[%s5 + $0x2a0] sm:$0xff]
      %v848 = vld [vmem:[%s5 + $0x2a8] sm:$0xff]
      %v849 = vld [vmem:[%s5 + $0x2b0] sm:$0xff]
      %v850 = vld [vmem:[%s5 + $0x2b8] sm:$0xff]
      %v851 = vld [vmem:[%s5 + $0x2c0] sm:$0xff]
      %v852 = vld [vmem:[%s5 + $0x2c8] sm:$0xff]
      %v853 = vld [vmem:[%s5 + $0x2d0] sm:$0xff]
      %v854 = vld [vmem:[%s5 + $0x2d8] sm:$0xff]
      %v855 = vld [vmem:[%s5 + $0x2e0] sm:$0xff]
      %v856 = vld [vmem:[%s5 + $0x2e8] sm:$0xff]
      %v857 = vld [vmem:[%s5 + $0x2f0] sm:$0xff]
      %v858 = vld [vmem:[%s5 + $0x2f8] sm:$0xff]
      %v859 = vld [vmem:[%s5 + $0x300] sm:$0xff]
      %v860 = vld [vmem:[%s5 + $0x308] sm:$0xff]
      %v861 = vld [vmem:[%s5 + $0x310] sm:$0xff]
      %v862 = vld [vmem:[%s5 + $0x318] sm:$0xff]
      %v863 = vld [vmem:[%s5 + $0x320] sm:$0xff]
      %v864 = vld [vmem:[%s5 + $0x328] sm:$0xff]
      %v865 = vld [vmem:[%s5 + $0x330] sm:$0xff]
      %v866 = vld [vmem:[%s5 + $0x338] sm:$0xff]
      %v867 = vld [vmem:[%s5 + $0x340] sm:$0xff]
      %v868 = vld [vmem:[%s5 + $0x348] sm:$0xff]
      %v869 = vld [vmem:[%s5 + $0x350] sm:$0xff]
      %v870 = vld [vmem:[%s5 + $0x358] sm:$0xff]
      %v871 = vld [vmem:[%s5 + $0x360] sm:$0xff]
      %v872 = vld [vmem:[%s5 + $0x368] sm:$0xff]
      %v873 = vld [vmem:[%s5 + $0x370] sm:$0xff]
      %v874 = vld [vmem:[%s5 + $0x378] sm:$0xff]
      %v875 = vld [vmem:[%s5 + $0x380] sm:$0xff]
      %v876 = vld [vmem:[%s5 + $0x388] sm:$0xff]
      %v877 = vld [vmem:[%s5 + $0x390] sm:$0xff]
      %v878 = vld [vmem:[%s5 + $0x398] sm:$0xff]
      %v879 = vld [vmem:[%s5 + $0x3a0] sm:$0xff]
      %v880 = vld [vmem:[%s5 + $0x3a8] sm:$0xff]
      %v881 = vld [vmem:[%s5 + $0x3b0] sm:$0xff]
      %v882 = vld [vmem:[%s5 + $0x3b8] sm:$0xff]
      %v883 = vld [vmem:[%s5 + $0x3c0] sm:$0xff]
      %v884 = vld [vmem:[%s5 + $0x3c8] sm:$0xff]
      %v885 = vld [vmem:[%s5 + $0x3d0] sm:$0xff]
      %v886 = vld [vmem:[%s5 + $0x3d8] sm:$0xff]
      %v887 = vld [vmem:[%s5 + $0x3e0] sm:$0xff]
      %v888 = vld [vmem:[%s5 + $0x3e8] sm:$0xff]
      %v889 = vld [vmem:[%s5 + $0x3f0] sm:$0xff]
      %v890 = vld [vmem:[%s5 + $0x3f8] sm:$0xff]
      %v891 = vld [vmem:[%s5 + $0x400] sm:$0xff]
      %v892 = vld [vmem:[%s5 + $0x408] sm:$0xff]
      %v893 = vld [vmem:[%s5 + $0x410] sm:$0xff]
      %v894 = vld [vmem:[%s5 + $0x418] sm:$0xff]
      %v895 = vld [vmem:[%s5 + $0x420] sm:$0xff]
      %v896 = vld [vmem:[%s5 + $0x428] sm:$0xff]
      %v897 = vld [vmem:[%s5 + $0x430] sm:$0xff]
      %v898 = vld [vmem:[%s5 + $0x438] sm:$0xff]
      %v899 = vld [vmem:[%s5 + $0x440] sm:$0xff]
      %v900 = vld [vmem:[%s5 + $0x448] sm:$0xff]
      %v901 = vld [vmem:[%s5 + $0x450] sm:$0xff]
      %v902 = vld [vmem:[%s5 + $0x458] sm:$0xff]
      %v903 = vld [vmem:[%s5 + $0x460] sm:$0xff]
      %v904 = vld [vmem:[%s5 + $0x468] sm:$0xff]
      %v905 = vld [vmem:[%s5 + $0x470] sm:$0xff]
      %v906 = vld [vmem:[%s5 + $0x478] sm:$0xff]
      %v907 = vld [vmem:[%s5 + $0x480] sm:$0xff]
      %v908 = vld [vmem:[%s5 + $0x488] sm:$0xff]
      %v909 = vld [vmem:[%s5 + $0x490] sm:$0xff]
      %v910 = vld [vmem:[%s5 + $0x498] sm:$0xff]
      %v911 = vld [vmem:[%s5 + $0x4a0] sm:$0xff]
      %v912 = vld [vmem:[%s5 + $0x4a8] sm:$0xff]
      %v913 = vld [vmem:[%s5 + $0x4b0] sm:$0xff]
      %v914 = vld [vmem:[%s5 + $0x4b8] sm:$0xff]
      %v915 = vld [vmem:[%s5 + $0x4c0] sm:$0xff]
      %v916 = vld [vmem:[%s5 + $0x4c8] sm:$0xff]
      %v917 = vld [vmem:[%s5 + $0x4d0] sm:$0xff]
      %v918 = vld [vmem:[%s5 + $0x4d8] sm:$0xff]
      %v919 = vld [vmem:[%s5 + $0x4e0] sm:$0xff]
      %v920 = vld [vmem:[%s5 + $0x4e8] sm:$0xff]
      %v921 = vld [vmem:[%s5 + $0x4f0] sm:$0xff]
      %v922 = vld [vmem:[%s5 + $0x4f8] sm:$0xff]
      %v923 = vld [vmem:[%s5 + $0x500] sm:$0xff]
      %v924 = vld [vmem:[%s5 + $0x508] sm:$0xff]
      %v925 = vld [vmem:[%s5 + $0x510] sm:$0xff]
      %v926 = vld [vmem:[%s5 + $0x518] sm:$0xff]
      %v927 = vld [vmem:[%s5 + $0x520] sm:$0xff]
      %v928 = vld [vmem:[%s5 + $0x528] sm:$0xff]
      %v929 = vld [vmem:[%s5 + $0x530] sm:$0xff]
      %v930 = vld [vmem:[%s5 + $0x538] sm:$0xff]
      %v931 = vld [vmem:[%s5 + $0x540] sm:$0xff]
      %v932 = vld [vmem:[%s5 + $0x548] sm:$0xff]
      %v933 = vld [vmem:[%s5 + $0x550] sm:$0xff]
      %v934 = vld [vmem:[%s5 + $0x558] sm:$0xff]
      %v935 = vld [vmem:[%s5 + $0x560] sm:$0xff]
      %v936 = vld [vmem:[%s5 + $0x568] sm:$0xff]
      %v937 = vld [vmem:[%s5 + $0x570] sm:$0xff]
      %v938 = vld [vmem:[%s5 + $0x578] sm:$0xff]
      %v939 = vld [vmem:[%s5 + $0x580] sm:$0xff]
      %v940 = vld [vmem:[%s5 + $0x588] sm:$0xff]
      %v941 = vld [vmem:[%s5 + $0x590] sm:$0xff]
      %v942 = vld [vmem:[%s5 + $0x598] sm:$0xff]
      %v943 = vld [vmem:[%s5 + $0x5a0] sm:$0xff]
      %v944 = vld [vmem:[%s5 + $0x5a8] sm:$0xff]
      %v945 = vld [vmem:[%s5 + $0x5b0] sm:$0xff]
      %v946 = vld [vmem:[%s5 + $0x5b8] sm:$0xff]
      %v947 = vld [vmem:[%s5 + $0x5c0] sm:$0xff]
      %v948 = vld [vmem:[%s5 + $0x5c8] sm:$0xff]
      %v949 = vld [vmem:[%s5 + $0x5d0] sm:$0xff]
      %v950 = vld [vmem:[%s5 + $0x5d8] sm:$0xff]
      %v951 = vld [vmem:[%s5 + $0x5e0] sm:$0xff]
      %v952 = vld [vmem:[%s5 + $0x5e8] sm:$0xff]
      %v953 = vld [vmem:[%s5 + $0x5f0] sm:$0xff]
      %v954 = vld [vmem:[%s5 + $0x5f8] sm:$0xff]
      %v955 = vld [vmem:[%s5 + $0x600] sm:$0xff]
      %v956 = vld [vmem:[%s5 + $0x608] sm:$0xff]
      %v957 = vld [vmem:[%s5 + $0x610] sm:$0xff]
      %v958 = vld [vmem:[%s5 + $0x618] sm:$0xff]
      %v959 = vld [vmem:[%s5 + $0x620] sm:$0xff]
      %v960 = vld [vmem:[%s5 + $0x628] sm:$0xff]
      %v961 = vld [vmem:[%s5 + $0x630] sm:$0xff]
      %v962 = vld [vmem:[%s5 + $0x638] sm:$0xff]
      %v963 = vld [vmem:[%s5 + $0x640] sm:$0xff]
      %v964 = vld [vmem:[%s5 + $0x648] sm:$0xff]
      %v965 = vld [vmem:[%s5 + $0x650] sm:$0xff]
      %v966 = vld [vmem:[%s5 + $0x658] sm:$0xff]
      %v967 = vld [vmem:[%s5 + $0x660] sm:$0xff]
      %v968 = vld [vmem:[%s5 + $0x668] sm:$0xff]
      %v969 = vld [vmem:[%s5 + $0x670] sm:$0xff]
      %v970 = vld [vmem:[%s5 + $0x678] sm:$0xff]
      %v971 = vld [vmem:[%s5 + $0x680] sm:$0xff]
      %v972 = vld [vmem:[%s5 + $0x688] sm:$0xff]
      %v973 = vld [vmem:[%s5 + $0x690] sm:$0xff]
      %v974 = vld [vmem:[%s5 + $0x698] sm:$0xff]
      %v975 = vld [vmem:[%s5 + $0x6a0] sm:$0xff]
      %v976 = vld [vmem:[%s5 + $0x6a8] sm:$0xff]
      %v977 = vld [vmem:[%s5 + $0x6b0] sm:$0xff]
      %v978 = vld [vmem:[%s5 + $0x6b8] sm:$0xff]
      %v979 = vld [vmem:[%s5 + $0x6c0] sm:$0xff]
      %v980 = vld [vmem:[%s5 + $0x6c8] sm:$0xff]
      %v981 = vld [vmem:[%s5 + $0x6d0] sm:$0xff]
      %v982 = vld [vmem:[%s5 + $0x6d8] sm:$0xff]
      %v983 = vld [vmem:[%s5 + $0x6e0] sm:$0xff]
      %v984 = vld [vmem:[%s5 + $0x6e8] sm:$0xff]
      %v985 = vld [vmem:[%s5 + $0x6f0] sm:$0xff]
      %v986 = vld [vmem:[%s5 + $0x6f8] sm:$0xff]
      %v987 = vld [vmem:[%s5 + $0x700] sm:$0xff]
      %v988 = vld [vmem:[%s5 + $0x708] sm:$0xff]
      %v989 = vld [vmem:[%s5 + $0x710] sm:$0xff]
      %v990 = vld [vmem:[%s5 + $0x718] sm:$0xff]
      %v991 = vld [vmem:[%s5 + $0x720] sm:$0xff]
      %v992 = vld [vmem:[%s5 + $0x728] sm:$0xff]
      %v993 = vld [vmem:[%s5 + $0x730] sm:$0xff]
      %v994 = vld [vmem:[%s5 + $0x738] sm:$0xff]
      %v995 = vld [vmem:[%s5 + $0x740] sm:$0xff]
      %v996 = vld [vmem:[%s5 + $0x748] sm:$0xff]
      %v997 = vld [vmem:[%s5 + $0x750] sm:$0xff]
      %v998 = vld [vmem:[%s5 + $0x758] sm:$0xff]
      %v999 = vld [vmem:[%s5 + $0x760] sm:$0xff]
      %v1000 = vld [vmem:[%s5 + $0x768] sm:$0xff]
      %v1001 = vld [vmem:[%s5 + $0x770] sm:$0xff]
      %v1002 = vld [vmem:[%s5 + $0x778] sm:$0xff]
      %v1003 = vld [vmem:[%s5 + $0x780] sm:$0xff]
      %v1004 = vld [vmem:[%s5 + $0x788] sm:$0xff]
      %v1005 = vld [vmem:[%s5 + $0x790] sm:$0xff]
      %v1006 = vld [vmem:[%s5 + $0x798] sm:$0xff]
      %v1007 = vld [vmem:[%s5 + $0x7a0] sm:$0xff]
      %v1008 = vld [vmem:[%s5 + $0x7a8] sm:$0xff]
      %v1009 = vld [vmem:[%s5 + $0x7b0] sm:$0xff]
      %v1010 = vld [vmem:[%s5 + $0x7b8] sm:$0xff]
      %v1011 = vld [vmem:[%s5 + $0x7c0] sm:$0xff]
      %v1012 = vld [vmem:[%s5 + $0x7c8] sm:$0xff]
      %v1013 = vld [vmem:[%s5 + $0x7d0] sm:$0xff]
      %v1014 = vld [vmem:[%s5 + $0x7d8] sm:$0xff]
      %v1015 = vld [vmem:[%s5 + $0x7e0] sm:$0xff]
      %v1016 = vld [vmem:[%s5 + $0x7e8] sm:$0xff]
      %v1017 = vld [vmem:[%s5 + $0x7f0] sm:$0xff]
      %v1018 = vld [vmem:[%s5 + $0x7f8] sm:$0xff]
      %v1019 = vld [vmem:[%s6] sm:$0xff]
      %v1021 = vlaneseq
      %v1022 = vshrl.u32 %v1021, 7
      %v1023 = vsub.s32 0, %v1022
      %v1024 = vrot.slane %v1019, %v1023
      %v1025 = vlaneseq
      %v1026 = vshrl.u32 %v1025, 7
      %v1027 = vsub.s32 1, %v1026
      %v1028 = vrot.slane %v1019, %v1027
      %v1029 = vlaneseq
      %v1030 = vshrl.u32 %v1029, 7
      %v1031 = vsub.s32 2, %v1030
      %v1032 = vrot.slane %v1019, %v1031
      %v1033 = vlaneseq
      %v1034 = vshrl.u32 %v1033, 7
      %v1035 = vsub.s32 3, %v1034
      %v1036 = vrot.slane %v1019, %v1035
      %v1037 = vlaneseq
      %v1038 = vshrl.u32 %v1037, 7
      %v1039 = vsub.s32 4, %v1038
      %v1040 = vrot.slane %v1019, %v1039
      %v1041 = vlaneseq
      %v1042 = vshrl.u32 %v1041, 7
      %v1043 = vsub.s32 5, %v1042
      %v1044 = vrot.slane %v1019, %v1043
      %v1045 = vlaneseq
      %v1046 = vshrl.u32 %v1045, 7
      %v1047 = vsub.s32 6, %v1046
      %v1048 = vrot.slane %v1019, %v1047
      %v1049 = vlaneseq
      %v1050 = vshrl.u32 %v1049, 7
      %v1051 = vsub.s32 7, %v1050
      %v1052 = vrot.slane %v1019, %v1051
      %v1317 = vunpack.c.l.b16 %v763
      %v1318 = vunpack.c.h.b16 %v763
      %v1319 = vunpack.c.l.b16 %v764
      %v1320 = vunpack.c.h.b16 %v764
      %v1321 = vunpack.c.l.b16 %v765
      %v1322 = vunpack.c.h.b16 %v765
      %v1323 = vunpack.c.l.b16 %v766
      %v1324 = vunpack.c.h.b16 %v766
      %v1325 = vunpack.c.l.b16 %v767
      %v1326 = vunpack.c.h.b16 %v767
      %v1327 = vunpack.c.l.b16 %v768
      %v1328 = vunpack.c.h.b16 %v768
      %v1329 = vunpack.c.l.b16 %v769
      %v1330 = vunpack.c.h.b16 %v769
      %v1331 = vunpack.c.l.b16 %v770
      %v1332 = vunpack.c.h.b16 %v770
      %v1333 = vunpack.c.l.b16 %v771
      %v1334 = vunpack.c.h.b16 %v771
      %v1335 = vunpack.c.l.b16 %v772
      %v1336 = vunpack.c.h.b16 %v772
      %v1337 = vunpack.c.l.b16 %v773
      %v1338 = vunpack.c.h.b16 %v773
      %v1339 = vunpack.c.l.b16 %v774
      %v1340 = vunpack.c.h.b16 %v774
      %v1341 = vunpack.c.l.b16 %v775
      %v1342 = vunpack.c.h.b16 %v775
      %v1343 = vunpack.c.l.b16 %v776
      %v1344 = vunpack.c.h.b16 %v776
      %v1345 = vunpack.c.l.b16 %v777
      %v1346 = vunpack.c.h.b16 %v777
      %v1347 = vunpack.c.l.b16 %v778
      %v1348 = vunpack.c.h.b16 %v778
      %v1349 = vunpack.c.l.b16 %v779
      %v1350 = vunpack.c.h.b16 %v779
      %v1351 = vunpack.c.l.b16 %v780
      %v1352 = vunpack.c.h.b16 %v780
      %v1353 = vunpack.c.l.b16 %v781
      %v1354 = vunpack.c.h.b16 %v781
      %v1355 = vunpack.c.l.b16 %v782
      %v1356 = vunpack.c.h.b16 %v782
      %v1357 = vunpack.c.l.b16 %v783
      %v1358 = vunpack.c.h.b16 %v783
      %v1359 = vunpack.c.l.b16 %v784
      %v1360 = vunpack.c.h.b16 %v784
      %v1361 = vunpack.c.l.b16 %v785
      %v1362 = vunpack.c.h.b16 %v785
      %v1363 = vunpack.c.l.b16 %v786
      %v1364 = vunpack.c.h.b16 %v786
      %v1365 = vunpack.c.l.b16 %v787
      %v1366 = vunpack.c.h.b16 %v787
      %v1367 = vunpack.c.l.b16 %v788
      %v1368 = vunpack.c.h.b16 %v788
      %v1369 = vunpack.c.l.b16 %v789
      %v1370 = vunpack.c.h.b16 %v789
      %v1371 = vunpack.c.l.b16 %v790
      %v1372 = vunpack.c.h.b16 %v790
      %v1373 = vunpack.c.l.b16 %v791
      %v1374 = vunpack.c.h.b16 %v791
      %v1375 = vunpack.c.l.b16 %v792
      %v1376 = vunpack.c.h.b16 %v792
      %v1377 = vunpack.c.l.b16 %v793
      %v1378 = vunpack.c.h.b16 %v793
      %v1379 = vunpack.c.l.b16 %v794
      %v1380 = vunpack.c.h.b16 %v794
      %v1381 = vunpack.c.l.b16 %v795
      %v1382 = vunpack.c.h.b16 %v795
      %v1383 = vunpack.c.l.b16 %v796
      %v1384 = vunpack.c.h.b16 %v796
      %v1385 = vunpack.c.l.b16 %v797
      %v1386 = vunpack.c.h.b16 %v797
      %v1387 = vunpack.c.l.b16 %v798
      %v1388 = vunpack.c.h.b16 %v798
      %v1389 = vunpack.c.l.b16 %v799
      %v1390 = vunpack.c.h.b16 %v799
      %v1391 = vunpack.c.l.b16 %v800
      %v1392 = vunpack.c.h.b16 %v800
      %v1393 = vunpack.c.l.b16 %v801
      %v1394 = vunpack.c.h.b16 %v801
      %v1395 = vunpack.c.l.b16 %v802
      %v1396 = vunpack.c.h.b16 %v802
      %v1397 = vunpack.c.l.b16 %v803
      %v1398 = vunpack.c.h.b16 %v803
      %v1399 = vunpack.c.l.b16 %v804
      %v1400 = vunpack.c.h.b16 %v804
      %v1401 = vunpack.c.l.b16 %v805
      %v1402 = vunpack.c.h.b16 %v805
      %v1403 = vunpack.c.l.b16 %v806
      %v1404 = vunpack.c.h.b16 %v806
      %v1405 = vunpack.c.l.b16 %v807
      %v1406 = vunpack.c.h.b16 %v807
      %v1407 = vunpack.c.l.b16 %v808
      %v1408 = vunpack.c.h.b16 %v808
      %v1409 = vunpack.c.l.b16 %v809
      %v1410 = vunpack.c.h.b16 %v809
      %v1411 = vunpack.c.l.b16 %v810
      %v1412 = vunpack.c.h.b16 %v810
      %v1413 = vunpack.c.l.b16 %v811
      %v1414 = vunpack.c.h.b16 %v811
      %v1415 = vunpack.c.l.b16 %v812
      %v1416 = vunpack.c.h.b16 %v812
      %v1417 = vunpack.c.l.b16 %v813
      %v1418 = vunpack.c.h.b16 %v813
      %v1419 = vunpack.c.l.b16 %v814
      %v1420 = vunpack.c.h.b16 %v814
      %v1421 = vunpack.c.l.b16 %v815
      %v1422 = vunpack.c.h.b16 %v815
      %v1423 = vunpack.c.l.b16 %v816
      %v1424 = vunpack.c.h.b16 %v816
      %v1425 = vunpack.c.l.b16 %v817
      %v1426 = vunpack.c.h.b16 %v817
      %v1427 = vunpack.c.l.b16 %v818
      %v1428 = vunpack.c.h.b16 %v818
      %v1429 = vunpack.c.l.b16 %v819
      %v1430 = vunpack.c.h.b16 %v819
      %v1431 = vunpack.c.l.b16 %v820
      %v1432 = vunpack.c.h.b16 %v820
      %v1433 = vunpack.c.l.b16 %v821
      %v1434 = vunpack.c.h.b16 %v821
      %v1435 = vunpack.c.l.b16 %v822
      %v1436 = vunpack.c.h.b16 %v822
      %v1437 = vunpack.c.l.b16 %v823
      %v1438 = vunpack.c.h.b16 %v823
      %v1439 = vunpack.c.l.b16 %v824
      %v1440 = vunpack.c.h.b16 %v824
      %v1441 = vunpack.c.l.b16 %v825
      %v1442 = vunpack.c.h.b16 %v825
      %v1443 = vunpack.c.l.b16 %v826
      %v1444 = vunpack.c.h.b16 %v826
      %v1445 = vunpack.c.l.b16 %v827
      %v1446 = vunpack.c.h.b16 %v827
      %v1447 = vunpack.c.l.b16 %v828
      %v1448 = vunpack.c.h.b16 %v828
      %v1449 = vunpack.c.l.b16 %v829
      %v1450 = vunpack.c.h.b16 %v829
      %v1451 = vunpack.c.l.b16 %v830
      %v1452 = vunpack.c.h.b16 %v830
      %v1453 = vunpack.c.l.b16 %v831
      %v1454 = vunpack.c.h.b16 %v831
      %v1455 = vunpack.c.l.b16 %v832
      %v1456 = vunpack.c.h.b16 %v832
      %v1457 = vunpack.c.l.b16 %v833
      %v1458 = vunpack.c.h.b16 %v833
      %v1459 = vunpack.c.l.b16 %v834
      %v1460 = vunpack.c.h.b16 %v834
      %v1461 = vunpack.c.l.b16 %v835
      %v1462 = vunpack.c.h.b16 %v835
      %v1463 = vunpack.c.l.b16 %v836
      %v1464 = vunpack.c.h.b16 %v836
      %v1465 = vunpack.c.l.b16 %v837
      %v1466 = vunpack.c.h.b16 %v837
      %v1467 = vunpack.c.l.b16 %v838
      %v1468 = vunpack.c.h.b16 %v838
      %v1469 = vunpack.c.l.b16 %v839
      %v1470 = vunpack.c.h.b16 %v839
      %v1471 = vunpack.c.l.b16 %v840
      %v1472 = vunpack.c.h.b16 %v840
      %v1473 = vunpack.c.l.b16 %v841
      %v1474 = vunpack.c.h.b16 %v841
      %v1475 = vunpack.c.l.b16 %v842
      %v1476 = vunpack.c.h.b16 %v842
      %v1477 = vunpack.c.l.b16 %v843
      %v1478 = vunpack.c.h.b16 %v843
      %v1479 = vunpack.c.l.b16 %v844
      %v1480 = vunpack.c.h.b16 %v844
      %v1481 = vunpack.c.l.b16 %v845
      %v1482 = vunpack.c.h.b16 %v845
      %v1483 = vunpack.c.l.b16 %v846
      %v1484 = vunpack.c.h.b16 %v846
      %v1485 = vunpack.c.l.b16 %v847
      %v1486 = vunpack.c.h.b16 %v847
      %v1487 = vunpack.c.l.b16 %v848
      %v1488 = vunpack.c.h.b16 %v848
      %v1489 = vunpack.c.l.b16 %v849
      %v1490 = vunpack.c.h.b16 %v849
      %v1491 = vunpack.c.l.b16 %v850
      %v1492 = vunpack.c.h.b16 %v850
      %v1493 = vunpack.c.l.b16 %v851
      %v1494 = vunpack.c.h.b16 %v851
      %v1495 = vunpack.c.l.b16 %v852
      %v1496 = vunpack.c.h.b16 %v852
      %v1497 = vunpack.c.l.b16 %v853
      %v1498 = vunpack.c.h.b16 %v853
      %v1499 = vunpack.c.l.b16 %v854
      %v1500 = vunpack.c.h.b16 %v854
      %v1501 = vunpack.c.l.b16 %v855
      %v1502 = vunpack.c.h.b16 %v855
      %v1503 = vunpack.c.l.b16 %v856
      %v1504 = vunpack.c.h.b16 %v856
      %v1505 = vunpack.c.l.b16 %v857
      %v1506 = vunpack.c.h.b16 %v857
      %v1507 = vunpack.c.l.b16 %v858
      %v1508 = vunpack.c.h.b16 %v858
      %v1509 = vunpack.c.l.b16 %v859
      %v1510 = vunpack.c.h.b16 %v859
      %v1511 = vunpack.c.l.b16 %v860
      %v1512 = vunpack.c.h.b16 %v860
      %v1513 = vunpack.c.l.b16 %v861
      %v1514 = vunpack.c.h.b16 %v861
      %v1515 = vunpack.c.l.b16 %v862
      %v1516 = vunpack.c.h.b16 %v862
      %v1517 = vunpack.c.l.b16 %v863
      %v1518 = vunpack.c.h.b16 %v863
      %v1519 = vunpack.c.l.b16 %v864
      %v1520 = vunpack.c.h.b16 %v864
      %v1521 = vunpack.c.l.b16 %v865
      %v1522 = vunpack.c.h.b16 %v865
      %v1523 = vunpack.c.l.b16 %v866
      %v1524 = vunpack.c.h.b16 %v866
      %v1525 = vunpack.c.l.b16 %v867
      %v1526 = vunpack.c.h.b16 %v867
      %v1527 = vunpack.c.l.b16 %v868
      %v1528 = vunpack.c.h.b16 %v868
      %v1529 = vunpack.c.l.b16 %v869
      %v1530 = vunpack.c.h.b16 %v869
      %v1531 = vunpack.c.l.b16 %v870
      %v1532 = vunpack.c.h.b16 %v870
      %v1533 = vunpack.c.l.b16 %v871
      %v1534 = vunpack.c.h.b16 %v871
      %v1535 = vunpack.c.l.b16 %v872
      %v1536 = vunpack.c.h.b16 %v872
      %v1537 = vunpack.c.l.b16 %v873
      %v1538 = vunpack.c.h.b16 %v873
      %v1539 = vunpack.c.l.b16 %v874
      %v1540 = vunpack.c.h.b16 %v874
      %v1541 = vunpack.c.l.b16 %v875
      %v1542 = vunpack.c.h.b16 %v875
      %v1543 = vunpack.c.l.b16 %v876
      %v1544 = vunpack.c.h.b16 %v876
      %v1545 = vunpack.c.l.b16 %v877
      %v1546 = vunpack.c.h.b16 %v877
      %v1547 = vunpack.c.l.b16 %v878
      %v1548 = vunpack.c.h.b16 %v878
      %v1549 = vunpack.c.l.b16 %v879
      %v1550 = vunpack.c.h.b16 %v879
      %v1551 = vunpack.c.l.b16 %v880
      %v1552 = vunpack.c.h.b16 %v880
      %v1553 = vunpack.c.l.b16 %v881
      %v1554 = vunpack.c.h.b16 %v881
      %v1555 = vunpack.c.l.b16 %v882
      %v1556 = vunpack.c.h.b16 %v882
      %v1557 = vunpack.c.l.b16 %v883
      %v1558 = vunpack.c.h.b16 %v883
      %v1559 = vunpack.c.l.b16 %v884
      %v1560 = vunpack.c.h.b16 %v884
      %v1561 = vunpack.c.l.b16 %v885
      %v1562 = vunpack.c.h.b16 %v885
      %v1563 = vunpack.c.l.b16 %v886
      %v1564 = vunpack.c.h.b16 %v886
      %v1565 = vunpack.c.l.b16 %v887
      %v1566 = vunpack.c.h.b16 %v887
      %v1567 = vunpack.c.l.b16 %v888
      %v1568 = vunpack.c.h.b16 %v888
      %v1569 = vunpack.c.l.b16 %v889
      %v1570 = vunpack.c.h.b16 %v889
      %v1571 = vunpack.c.l.b16 %v890
      %v1572 = vunpack.c.h.b16 %v890
      %v1573 = vunpack.c.l.b16 %v891
      %v1574 = vunpack.c.h.b16 %v891
      %v1575 = vunpack.c.l.b16 %v892
      %v1576 = vunpack.c.h.b16 %v892
      %v1577 = vunpack.c.l.b16 %v893
      %v1578 = vunpack.c.h.b16 %v893
      %v1579 = vunpack.c.l.b16 %v894
      %v1580 = vunpack.c.h.b16 %v894
      %v1581 = vunpack.c.l.b16 %v895
      %v1582 = vunpack.c.h.b16 %v895
      %v1583 = vunpack.c.l.b16 %v896
      %v1584 = vunpack.c.h.b16 %v896
      %v1585 = vunpack.c.l.b16 %v897
      %v1586 = vunpack.c.h.b16 %v897
      %v1587 = vunpack.c.l.b16 %v898
      %v1588 = vunpack.c.h.b16 %v898
      %v1589 = vunpack.c.l.b16 %v899
      %v1590 = vunpack.c.h.b16 %v899
      %v1591 = vunpack.c.l.b16 %v900
      %v1592 = vunpack.c.h.b16 %v900
      %v1593 = vunpack.c.l.b16 %v901
      %v1594 = vunpack.c.h.b16 %v901
      %v1595 = vunpack.c.l.b16 %v902
      %v1596 = vunpack.c.h.b16 %v902
      %v1597 = vunpack.c.l.b16 %v903
      %v1598 = vunpack.c.h.b16 %v903
      %v1599 = vunpack.c.l.b16 %v904
      %v1600 = vunpack.c.h.b16 %v904
      %v1601 = vunpack.c.l.b16 %v905
      %v1602 = vunpack.c.h.b16 %v905
      %v1603 = vunpack.c.l.b16 %v906
      %v1604 = vunpack.c.h.b16 %v906
      %v1605 = vunpack.c.l.b16 %v907
      %v1606 = vunpack.c.h.b16 %v907
      %v1607 = vunpack.c.l.b16 %v908
      %v1608 = vunpack.c.h.b16 %v908
      %v1609 = vunpack.c.l.b16 %v909
      %v1610 = vunpack.c.h.b16 %v909
      %v1611 = vunpack.c.l.b16 %v910
      %v1612 = vunpack.c.h.b16 %v910
      %v1613 = vunpack.c.l.b16 %v911
      %v1614 = vunpack.c.h.b16 %v911
      %v1615 = vunpack.c.l.b16 %v912
      %v1616 = vunpack.c.h.b16 %v912
      %v1617 = vunpack.c.l.b16 %v913
      %v1618 = vunpack.c.h.b16 %v913
      %v1619 = vunpack.c.l.b16 %v914
      %v1620 = vunpack.c.h.b16 %v914
      %v1621 = vunpack.c.l.b16 %v915
      %v1622 = vunpack.c.h.b16 %v915
      %v1623 = vunpack.c.l.b16 %v916
      %v1624 = vunpack.c.h.b16 %v916
      %v1625 = vunpack.c.l.b16 %v917
      %v1626 = vunpack.c.h.b16 %v917
      %v1627 = vunpack.c.l.b16 %v918
      %v1628 = vunpack.c.h.b16 %v918
      %v1629 = vunpack.c.l.b16 %v919
      %v1630 = vunpack.c.h.b16 %v919
      %v1631 = vunpack.c.l.b16 %v920
      %v1632 = vunpack.c.h.b16 %v920
      %v1633 = vunpack.c.l.b16 %v921
      %v1634 = vunpack.c.h.b16 %v921
      %v1635 = vunpack.c.l.b16 %v922
      %v1636 = vunpack.c.h.b16 %v922
      %v1637 = vunpack.c.l.b16 %v923
      %v1638 = vunpack.c.h.b16 %v923
      %v1639 = vunpack.c.l.b16 %v924
      %v1640 = vunpack.c.h.b16 %v924
      %v1641 = vunpack.c.l.b16 %v925
      %v1642 = vunpack.c.h.b16 %v925
      %v1643 = vunpack.c.l.b16 %v926
      %v1644 = vunpack.c.h.b16 %v926
      %v1645 = vunpack.c.l.b16 %v927
      %v1646 = vunpack.c.h.b16 %v927
      %v1647 = vunpack.c.l.b16 %v928
      %v1648 = vunpack.c.h.b16 %v928
      %v1649 = vunpack.c.l.b16 %v929
      %v1650 = vunpack.c.h.b16 %v929
      %v1651 = vunpack.c.l.b16 %v930
      %v1652 = vunpack.c.h.b16 %v930
      %v1653 = vunpack.c.l.b16 %v931
      %v1654 = vunpack.c.h.b16 %v931
      %v1655 = vunpack.c.l.b16 %v932
      %v1656 = vunpack.c.h.b16 %v932
      %v1657 = vunpack.c.l.b16 %v933
      %v1658 = vunpack.c.h.b16 %v933
      %v1659 = vunpack.c.l.b16 %v934
      %v1660 = vunpack.c.h.b16 %v934
      %v1661 = vunpack.c.l.b16 %v935
      %v1662 = vunpack.c.h.b16 %v935
      %v1663 = vunpack.c.l.b16 %v936
      %v1664 = vunpack.c.h.b16 %v936
      %v1665 = vunpack.c.l.b16 %v937
      %v1666 = vunpack.c.h.b16 %v937
      %v1667 = vunpack.c.l.b16 %v938
      %v1668 = vunpack.c.h.b16 %v938
      %v1669 = vunpack.c.l.b16 %v939
      %v1670 = vunpack.c.h.b16 %v939
      %v1671 = vunpack.c.l.b16 %v940
      %v1672 = vunpack.c.h.b16 %v940
      %v1673 = vunpack.c.l.b16 %v941
      %v1674 = vunpack.c.h.b16 %v941
      %v1675 = vunpack.c.l.b16 %v942
      %v1676 = vunpack.c.h.b16 %v942
      %v1677 = vunpack.c.l.b16 %v943
      %v1678 = vunpack.c.h.b16 %v943
      %v1679 = vunpack.c.l.b16 %v944
      %v1680 = vunpack.c.h.b16 %v944
      %v1681 = vunpack.c.l.b16 %v945
      %v1682 = vunpack.c.h.b16 %v945
      %v1683 = vunpack.c.l.b16 %v946
      %v1684 = vunpack.c.h.b16 %v946
      %v1685 = vunpack.c.l.b16 %v947
      %v1686 = vunpack.c.h.b16 %v947
      %v1687 = vunpack.c.l.b16 %v948
      %v1688 = vunpack.c.h.b16 %v948
      %v1689 = vunpack.c.l.b16 %v949
      %v1690 = vunpack.c.h.b16 %v949
      %v1691 = vunpack.c.l.b16 %v950
      %v1692 = vunpack.c.h.b16 %v950
      %v1693 = vunpack.c.l.b16 %v951
      %v1694 = vunpack.c.h.b16 %v951
      %v1695 = vunpack.c.l.b16 %v952
      %v1696 = vunpack.c.h.b16 %v952
      %v1697 = vunpack.c.l.b16 %v953
      %v1698 = vunpack.c.h.b16 %v953
      %v1699 = vunpack.c.l.b16 %v954
      %v1700 = vunpack.c.h.b16 %v954
      %v1701 = vunpack.c.l.b16 %v955
      %v1702 = vunpack.c.h.b16 %v955
      %v1703 = vunpack.c.l.b16 %v956
      %v1704 = vunpack.c.h.b16 %v956
      %v1705 = vunpack.c.l.b16 %v957
      %v1706 = vunpack.c.h.b16 %v957
      %v1707 = vunpack.c.l.b16 %v958
      %v1708 = vunpack.c.h.b16 %v958
      %v1709 = vunpack.c.l.b16 %v959
      %v1710 = vunpack.c.h.b16 %v959
      %v1711 = vunpack.c.l.b16 %v960
      %v1712 = vunpack.c.h.b16 %v960
      %v1713 = vunpack.c.l.b16 %v961
      %v1714 = vunpack.c.h.b16 %v961
      %v1715 = vunpack.c.l.b16 %v962
      %v1716 = vunpack.c.h.b16 %v962
      %v1717 = vunpack.c.l.b16 %v963
      %v1718 = vunpack.c.h.b16 %v963
      %v1719 = vunpack.c.l.b16 %v964
      %v1720 = vunpack.c.h.b16 %v964
      %v1721 = vunpack.c.l.b16 %v965
      %v1722 = vunpack.c.h.b16 %v965
      %v1723 = vunpack.c.l.b16 %v966
      %v1724 = vunpack.c.h.b16 %v966
      %v1725 = vunpack.c.l.b16 %v967
      %v1726 = vunpack.c.h.b16 %v967
      %v1727 = vunpack.c.l.b16 %v968
      %v1728 = vunpack.c.h.b16 %v968
      %v1729 = vunpack.c.l.b16 %v969
      %v1730 = vunpack.c.h.b16 %v969
      %v1731 = vunpack.c.l.b16 %v970
      %v1732 = vunpack.c.h.b16 %v970
      %v1733 = vunpack.c.l.b16 %v971
      %v1734 = vunpack.c.h.b16 %v971
      %v1735 = vunpack.c.l.b16 %v972
      %v1736 = vunpack.c.h.b16 %v972
      %v1737 = vunpack.c.l.b16 %v973
      %v1738 = vunpack.c.h.b16 %v973
      %v1739 = vunpack.c.l.b16 %v974
      %v1740 = vunpack.c.h.b16 %v974
      %v1741 = vunpack.c.l.b16 %v975
      %v1742 = vunpack.c.h.b16 %v975
      %v1743 = vunpack.c.l.b16 %v976
      %v1744 = vunpack.c.h.b16 %v976
      %v1745 = vunpack.c.l.b16 %v977
      %v1746 = vunpack.c.h.b16 %v977
      %v1747 = vunpack.c.l.b16 %v978
      %v1748 = vunpack.c.h.b16 %v978
      %v1749 = vunpack.c.l.b16 %v979
      %v1750 = vunpack.c.h.b16 %v979
      %v1751 = vunpack.c.l.b16 %v980
      %v1752 = vunpack.c.h.b16 %v980
      %v1753 = vunpack.c.l.b16 %v981
      %v1754 = vunpack.c.h.b16 %v981
      %v1755 = vunpack.c.l.b16 %v982
      %v1756 = vunpack.c.h.b16 %v982
      %v1757 = vunpack.c.l.b16 %v983
      %v1758 = vunpack.c.h.b16 %v983
      %v1759 = vunpack.c.l.b16 %v984
      %v1760 = vunpack.c.h.b16 %v984
      %v1761 = vunpack.c.l.b16 %v985
      %v1762 = vunpack.c.h.b16 %v985
      %v1763 = vunpack.c.l.b16 %v986
      %v1764 = vunpack.c.h.b16 %v986
      %v1765 = vunpack.c.l.b16 %v987
      %v1766 = vunpack.c.h.b16 %v987
      %v1767 = vunpack.c.l.b16 %v988
      %v1768 = vunpack.c.h.b16 %v988
      %v1769 = vunpack.c.l.b16 %v989
      %v1770 = vunpack.c.h.b16 %v989
      %v1771 = vunpack.c.l.b16 %v990
      %v1772 = vunpack.c.h.b16 %v990
      %v1773 = vunpack.c.l.b16 %v991
      %v1774 = vunpack.c.h.b16 %v991
      %v1775 = vunpack.c.l.b16 %v992
      %v1776 = vunpack.c.h.b16 %v992
      %v1777 = vunpack.c.l.b16 %v993
      %v1778 = vunpack.c.h.b16 %v993
      %v1779 = vunpack.c.l.b16 %v994
      %v1780 = vunpack.c.h.b16 %v994
      %v1781 = vunpack.c.l.b16 %v995
      %v1782 = vunpack.c.h.b16 %v995
      %v1783 = vunpack.c.l.b16 %v996
      %v1784 = vunpack.c.h.b16 %v996
      %v1785 = vunpack.c.l.b16 %v997
      %v1786 = vunpack.c.h.b16 %v997
      %v1787 = vunpack.c.l.b16 %v998
      %v1788 = vunpack.c.h.b16 %v998
      %v1789 = vunpack.c.l.b16 %v999
      %v1790 = vunpack.c.h.b16 %v999
      %v1791 = vunpack.c.l.b16 %v1000
      %v1792 = vunpack.c.h.b16 %v1000
      %v1793 = vunpack.c.l.b16 %v1001
      %v1794 = vunpack.c.h.b16 %v1001
      %v1795 = vunpack.c.l.b16 %v1002
      %v1796 = vunpack.c.h.b16 %v1002
      %v1797 = vunpack.c.l.b16 %v1003
      %v1798 = vunpack.c.h.b16 %v1003
      %v1799 = vunpack.c.l.b16 %v1004
      %v1800 = vunpack.c.h.b16 %v1004
      %v1801 = vunpack.c.l.b16 %v1005
      %v1802 = vunpack.c.h.b16 %v1005
      %v1803 = vunpack.c.l.b16 %v1006
      %v1804 = vunpack.c.h.b16 %v1006
      %v1805 = vunpack.c.l.b16 %v1007
      %v1806 = vunpack.c.h.b16 %v1007
      %v1807 = vunpack.c.l.b16 %v1008
      %v1808 = vunpack.c.h.b16 %v1008
      %v1809 = vunpack.c.l.b16 %v1009
      %v1810 = vunpack.c.h.b16 %v1009
      %v1811 = vunpack.c.l.b16 %v1010
      %v1812 = vunpack.c.h.b16 %v1010
      %v1813 = vunpack.c.l.b16 %v1011
      %v1814 = vunpack.c.h.b16 %v1011
      %v1815 = vunpack.c.l.b16 %v1012
      %v1816 = vunpack.c.h.b16 %v1012
      %v1817 = vunpack.c.l.b16 %v1013
      %v1818 = vunpack.c.h.b16 %v1013
      %v1819 = vunpack.c.l.b16 %v1014
      %v1820 = vunpack.c.h.b16 %v1014
      %v1821 = vunpack.c.l.b16 %v1015
      %v1822 = vunpack.c.h.b16 %v1015
      %v1823 = vunpack.c.l.b16 %v1016
      %v1824 = vunpack.c.h.b16 %v1016
      %v1825 = vunpack.c.l.b16 %v1017
      %v1826 = vunpack.c.h.b16 %v1017
      %v1827 = vunpack.c.l.b16 %v1018
      %v1828 = vunpack.c.h.b16 %v1018
      %v1829 = vpack.c.b16 %v1325, %v1317
      %v1830 = vpack.c.b16 %v1326, %v1318
      %v1831 = vpack.c.b16 %v1327, %v1319
      %v1832 = vpack.c.b16 %v1328, %v1320
      %v1833 = vpack.c.b16 %v1329, %v1321
      %v1834 = vpack.c.b16 %v1330, %v1322
      %v1835 = vpack.c.b16 %v1331, %v1323
      %v1836 = vpack.c.b16 %v1332, %v1324
      %v1837 = vpack.c.b16 %v1341, %v1333
      %v1838 = vpack.c.b16 %v1342, %v1334
      %v1839 = vpack.c.b16 %v1343, %v1335
      %v1840 = vpack.c.b16 %v1344, %v1336
      %v1841 = vpack.c.b16 %v1345, %v1337
      %v1842 = vpack.c.b16 %v1346, %v1338
      %v1843 = vpack.c.b16 %v1347, %v1339
      %v1844 = vpack.c.b16 %v1348, %v1340
      %v1845 = vpack.c.b16 %v1357, %v1349
      %v1846 = vpack.c.b16 %v1358, %v1350
      %v1847 = vpack.c.b16 %v1359, %v1351
      %v1848 = vpack.c.b16 %v1360, %v1352
      %v1849 = vpack.c.b16 %v1361, %v1353
      %v1850 = vpack.c.b16 %v1362, %v1354
      %v1851 = vpack.c.b16 %v1363, %v1355
      %v1852 = vpack.c.b16 %v1364, %v1356
      %v1853 = vpack.c.b16 %v1373, %v1365
      %v1854 = vpack.c.b16 %v1374, %v1366
      %v1855 = vpack.c.b16 %v1375, %v1367
      %v1856 = vpack.c.b16 %v1376, %v1368
      %v1857 = vpack.c.b16 %v1377, %v1369
      %v1858 = vpack.c.b16 %v1378, %v1370
      %v1859 = vpack.c.b16 %v1379, %v1371
      %v1860 = vpack.c.b16 %v1380, %v1372
      %v1861 = vpack.c.b16 %v1389, %v1381
      %v1862 = vpack.c.b16 %v1390, %v1382
      %v1863 = vpack.c.b16 %v1391, %v1383
      %v1864 = vpack.c.b16 %v1392, %v1384
      %v1865 = vpack.c.b16 %v1393, %v1385
      %v1866 = vpack.c.b16 %v1394, %v1386
      %v1867 = vpack.c.b16 %v1395, %v1387
      %v1868 = vpack.c.b16 %v1396, %v1388
      %v1869 = vpack.c.b16 %v1405, %v1397
      %v1870 = vpack.c.b16 %v1406, %v1398
      %v1871 = vpack.c.b16 %v1407, %v1399
      %v1872 = vpack.c.b16 %v1408, %v1400
      %v1873 = vpack.c.b16 %v1409, %v1401
      %v1874 = vpack.c.b16 %v1410, %v1402
      %v1875 = vpack.c.b16 %v1411, %v1403
      %v1876 = vpack.c.b16 %v1412, %v1404
      %v1877 = vpack.c.b16 %v1421, %v1413
      %v1878 = vpack.c.b16 %v1422, %v1414
      %v1879 = vpack.c.b16 %v1423, %v1415
      %v1880 = vpack.c.b16 %v1424, %v1416
      %v1881 = vpack.c.b16 %v1425, %v1417
      %v1882 = vpack.c.b16 %v1426, %v1418
      %v1883 = vpack.c.b16 %v1427, %v1419
      %v1884 = vpack.c.b16 %v1428, %v1420
      %v1885 = vpack.c.b16 %v1437, %v1429
      %v1886 = vpack.c.b16 %v1438, %v1430
      %v1887 = vpack.c.b16 %v1439, %v1431
      %v1888 = vpack.c.b16 %v1440, %v1432
      %v1889 = vpack.c.b16 %v1441, %v1433
      %v1890 = vpack.c.b16 %v1442, %v1434
      %v1891 = vpack.c.b16 %v1443, %v1435
      %v1892 = vpack.c.b16 %v1444, %v1436
      %v1893 = vpack.c.b16 %v1453, %v1445
      %v1894 = vpack.c.b16 %v1454, %v1446
      %v1895 = vpack.c.b16 %v1455, %v1447
      %v1896 = vpack.c.b16 %v1456, %v1448
      %v1897 = vpack.c.b16 %v1457, %v1449
      %v1898 = vpack.c.b16 %v1458, %v1450
      %v1899 = vpack.c.b16 %v1459, %v1451
      %v1900 = vpack.c.b16 %v1460, %v1452
      %v1901 = vpack.c.b16 %v1469, %v1461
      %v1902 = vpack.c.b16 %v1470, %v1462
      %v1903 = vpack.c.b16 %v1471, %v1463
      %v1904 = vpack.c.b16 %v1472, %v1464
      %v1905 = vpack.c.b16 %v1473, %v1465
      %v1906 = vpack.c.b16 %v1474, %v1466
      %v1907 = vpack.c.b16 %v1475, %v1467
      %v1908 = vpack.c.b16 %v1476, %v1468
      %v1909 = vpack.c.b16 %v1485, %v1477
      %v1910 = vpack.c.b16 %v1486, %v1478
      %v1911 = vpack.c.b16 %v1487, %v1479
      %v1912 = vpack.c.b16 %v1488, %v1480
      %v1913 = vpack.c.b16 %v1489, %v1481
      %v1914 = vpack.c.b16 %v1490, %v1482
      %v1915 = vpack.c.b16 %v1491, %v1483
      %v1916 = vpack.c.b16 %v1492, %v1484
      %v1917 = vpack.c.b16 %v1501, %v1493
      %v1918 = vpack.c.b16 %v1502, %v1494
      %v1919 = vpack.c.b16 %v1503, %v1495
      %v1920 = vpack.c.b16 %v1504, %v1496
      %v1921 = vpack.c.b16 %v1505, %v1497
      %v1922 = vpack.c.b16 %v1506, %v1498
      %v1923 = vpack.c.b16 %v1507, %v1499
      %v1924 = vpack.c.b16 %v1508, %v1500
      %v1925 = vpack.c.b16 %v1517, %v1509
      %v1926 = vpack.c.b16 %v1518, %v1510
      %v1927 = vpack.c.b16 %v1519, %v1511
      %v1928 = vpack.c.b16 %v1520, %v1512
      %v1929 = vpack.c.b16 %v1521, %v1513
      %v1930 = vpack.c.b16 %v1522, %v1514
      %v1931 = vpack.c.b16 %v1523, %v1515
      %v1932 = vpack.c.b16 %v1524, %v1516
      %v1933 = vpack.c.b16 %v1533, %v1525
      %v1934 = vpack.c.b16 %v1534, %v1526
      %v1935 = vpack.c.b16 %v1535, %v1527
      %v1936 = vpack.c.b16 %v1536, %v1528
      %v1937 = vpack.c.b16 %v1537, %v1529
      %v1938 = vpack.c.b16 %v1538, %v1530
      %v1939 = vpack.c.b16 %v1539, %v1531
      %v1940 = vpack.c.b16 %v1540, %v1532
      %v1941 = vpack.c.b16 %v1549, %v1541
      %v1942 = vpack.c.b16 %v1550, %v1542
      %v1943 = vpack.c.b16 %v1551, %v1543
      %v1944 = vpack.c.b16 %v1552, %v1544
      %v1945 = vpack.c.b16 %v1553, %v1545
      %v1946 = vpack.c.b16 %v1554, %v1546
      %v1947 = vpack.c.b16 %v1555, %v1547
      %v1948 = vpack.c.b16 %v1556, %v1548
      %v1949 = vpack.c.b16 %v1565, %v1557
      %v1950 = vpack.c.b16 %v1566, %v1558
      %v1951 = vpack.c.b16 %v1567, %v1559
      %v1952 = vpack.c.b16 %v1568, %v1560
      %v1953 = vpack.c.b16 %v1569, %v1561
      %v1954 = vpack.c.b16 %v1570, %v1562
      %v1955 = vpack.c.b16 %v1571, %v1563
      %v1956 = vpack.c.b16 %v1572, %v1564
      %v1957 = vpack.c.b16 %v1581, %v1573
      %v1958 = vpack.c.b16 %v1582, %v1574
      %v1959 = vpack.c.b16 %v1583, %v1575
      %v1960 = vpack.c.b16 %v1584, %v1576
      %v1961 = vpack.c.b16 %v1585, %v1577
      %v1962 = vpack.c.b16 %v1586, %v1578
      %v1963 = vpack.c.b16 %v1587, %v1579
      %v1964 = vpack.c.b16 %v1588, %v1580
      %v1965 = vpack.c.b16 %v1597, %v1589
      %v1966 = vpack.c.b16 %v1598, %v1590
      %v1967 = vpack.c.b16 %v1599, %v1591
      %v1968 = vpack.c.b16 %v1600, %v1592
      %v1969 = vpack.c.b16 %v1601, %v1593
      %v1970 = vpack.c.b16 %v1602, %v1594
      %v1971 = vpack.c.b16 %v1603, %v1595
      %v1972 = vpack.c.b16 %v1604, %v1596
      %v1973 = vpack.c.b16 %v1613, %v1605
      %v1974 = vpack.c.b16 %v1614, %v1606
      %v1975 = vpack.c.b16 %v1615, %v1607
      %v1976 = vpack.c.b16 %v1616, %v1608
      %v1977 = vpack.c.b16 %v1617, %v1609
      %v1978 = vpack.c.b16 %v1618, %v1610
      %v1979 = vpack.c.b16 %v1619, %v1611
      %v1980 = vpack.c.b16 %v1620, %v1612
      %v1981 = vpack.c.b16 %v1629, %v1621
      %v1982 = vpack.c.b16 %v1630, %v1622
      %v1983 = vpack.c.b16 %v1631, %v1623
      %v1984 = vpack.c.b16 %v1632, %v1624
      %v1985 = vpack.c.b16 %v1633, %v1625
      %v1986 = vpack.c.b16 %v1634, %v1626
      %v1987 = vpack.c.b16 %v1635, %v1627
      %v1988 = vpack.c.b16 %v1636, %v1628
      %v1989 = vpack.c.b16 %v1645, %v1637
      %v1990 = vpack.c.b16 %v1646, %v1638
      %v1991 = vpack.c.b16 %v1647, %v1639
      %v1992 = vpack.c.b16 %v1648, %v1640
      %v1993 = vpack.c.b16 %v1649, %v1641
      %v1994 = vpack.c.b16 %v1650, %v1642
      %v1995 = vpack.c.b16 %v1651, %v1643
      %v1996 = vpack.c.b16 %v1652, %v1644
      %v1997 = vpack.c.b16 %v1661, %v1653
      %v1998 = vpack.c.b16 %v1662, %v1654
      %v1999 = vpack.c.b16 %v1663, %v1655
      %v2000 = vpack.c.b16 %v1664, %v1656
      %v2001 = vpack.c.b16 %v1665, %v1657
      %v2002 = vpack.c.b16 %v1666, %v1658
      %v2003 = vpack.c.b16 %v1667, %v1659
      %v2004 = vpack.c.b16 %v1668, %v1660
      %v2005 = vpack.c.b16 %v1677, %v1669
      %v2006 = vpack.c.b16 %v1678, %v1670
      %v2007 = vpack.c.b16 %v1679, %v1671
      %v2008 = vpack.c.b16 %v1680, %v1672
      %v2009 = vpack.c.b16 %v1681, %v1673
      %v2010 = vpack.c.b16 %v1682, %v1674
      %v2011 = vpack.c.b16 %v1683, %v1675
      %v2012 = vpack.c.b16 %v1684, %v1676
      %v2013 = vpack.c.b16 %v1693, %v1685
      %v2014 = vpack.c.b16 %v1694, %v1686
      %v2015 = vpack.c.b16 %v1695, %v1687
      %v2016 = vpack.c.b16 %v1696, %v1688
      %v2017 = vpack.c.b16 %v1697, %v1689
      %v2018 = vpack.c.b16 %v1698, %v1690
      %v2019 = vpack.c.b16 %v1699, %v1691
      %v2020 = vpack.c.b16 %v1700, %v1692
      %v2021 = vpack.c.b16 %v1709, %v1701
      %v2022 = vpack.c.b16 %v1710, %v1702
      %v2023 = vpack.c.b16 %v1711, %v1703
      %v2024 = vpack.c.b16 %v1712, %v1704
      %v2025 = vpack.c.b16 %v1713, %v1705
      %v2026 = vpack.c.b16 %v1714, %v1706
      %v2027 = vpack.c.b16 %v1715, %v1707
      %v2028 = vpack.c.b16 %v1716, %v1708
      %v2029 = vpack.c.b16 %v1725, %v1717
      %v2030 = vpack.c.b16 %v1726, %v1718
      %v2031 = vpack.c.b16 %v1727, %v1719
      %v2032 = vpack.c.b16 %v1728, %v1720
      %v2033 = vpack.c.b16 %v1729, %v1721
      %v2034 = vpack.c.b16 %v1730, %v1722
      %v2035 = vpack.c.b16 %v1731, %v1723
      %v2036 = vpack.c.b16 %v1732, %v1724
      %v2037 = vpack.c.b16 %v1741, %v1733
      %v2038 = vpack.c.b16 %v1742, %v1734
      %v2039 = vpack.c.b16 %v1743, %v1735
      %v2040 = vpack.c.b16 %v1744, %v1736
      %v2041 = vpack.c.b16 %v1745, %v1737
      %v2042 = vpack.c.b16 %v1746, %v1738
      %v2043 = vpack.c.b16 %v1747, %v1739
      %v2044 = vpack.c.b16 %v1748, %v1740
      %v2045 = vpack.c.b16 %v1757, %v1749
      %v2046 = vpack.c.b16 %v1758, %v1750
      %v2047 = vpack.c.b16 %v1759, %v1751
      %v2048 = vpack.c.b16 %v1760, %v1752
      %v2049 = vpack.c.b16 %v1761, %v1753
      %v2050 = vpack.c.b16 %v1762, %v1754
      %v2051 = vpack.c.b16 %v1763, %v1755
      %v2052 = vpack.c.b16 %v1764, %v1756
      %v2053 = vpack.c.b16 %v1773, %v1765
      %v2054 = vpack.c.b16 %v1774, %v1766
      %v2055 = vpack.c.b16 %v1775, %v1767
      %v2056 = vpack.c.b16 %v1776, %v1768
      %v2057 = vpack.c.b16 %v1777, %v1769
      %v2058 = vpack.c.b16 %v1778, %v1770
      %v2059 = vpack.c.b16 %v1779, %v1771
      %v2060 = vpack.c.b16 %v1780, %v1772
      %v2061 = vpack.c.b16 %v1789, %v1781
      %v2062 = vpack.c.b16 %v1790, %v1782
      %v2063 = vpack.c.b16 %v1791, %v1783
      %v2064 = vpack.c.b16 %v1792, %v1784
      %v2065 = vpack.c.b16 %v1793, %v1785
      %v2066 = vpack.c.b16 %v1794, %v1786
      %v2067 = vpack.c.b16 %v1795, %v1787
      %v2068 = vpack.c.b16 %v1796, %v1788
      %v2069 = vpack.c.b16 %v1805, %v1797
      %v2070 = vpack.c.b16 %v1806, %v1798
      %v2071 = vpack.c.b16 %v1807, %v1799
      %v2072 = vpack.c.b16 %v1808, %v1800
      %v2073 = vpack.c.b16 %v1809, %v1801
      %v2074 = vpack.c.b16 %v1810, %v1802
      %v2075 = vpack.c.b16 %v1811, %v1803
      %v2076 = vpack.c.b16 %v1812, %v1804
      %v2077 = vpack.c.b16 %v1821, %v1813
      %v2078 = vpack.c.b16 %v1822, %v1814
      %v2079 = vpack.c.b16 %v1823, %v1815
      %v2080 = vpack.c.b16 %v1824, %v1816
      %v2081 = vpack.c.b16 %v1825, %v1817
      %v2082 = vpack.c.b16 %v1826, %v1818
      %v2083 = vpack.c.b16 %v1827, %v1819
      %v2084 = vpack.c.b16 %v1828, %v1820
      %2341 = vmatprep.subr.bf16.mxu0 %v1886
      %2342 = vmatpush1.bf16.msra.mxu0 %v1885
      %2343 = vmatprep.subr.bf16.mxu0 %v1878
      %2344 = vmatpush1.bf16.msra.mxu0 %v1877
      %2345 = vmatprep.subr.bf16.mxu0 %v1870
      %2346 = vmatpush1.bf16.msra.mxu0 %v1869
      %2347 = vmatprep.subr.bf16.mxu0 %v1862
      %2348 = vmatpush1.bf16.msra.mxu0 %v1861
      %2349 = vmatprep.subr.bf16.mxu0 %v1854
      %2350 = vmatpush1.bf16.msra.mxu0 %v1853
      %2351 = vmatprep.subr.bf16.mxu0 %v1846
      %2352 = vmatpush1.bf16.msra.mxu0 %v1845
      %2353 = vmatprep.subr.bf16.mxu0 %v1838
      %2354 = vmatpush1.bf16.msra.mxu0 %v1837
      %2355 = vmatprep.subr.bf16.mxu0 %v1830
      %2356 = vmatpush1.bf16.msra.mxu0 %v1829
      %2357 = vmatprep.subr.bf16.mxu0 %v1950
      %2358 = vmatpush2.bf16.msra.mxu0 %v1949
      %2359 = vmatprep.subr.bf16.mxu0 %v1942
      %2360 = vmatpush2.bf16.msra.mxu0 %v1941
      %2361 = vmatprep.subr.bf16.mxu0 %v1934
      %2362 = vmatpush2.bf16.msra.mxu0 %v1933
      %2363 = vmatprep.subr.bf16.mxu0 %v1926
      %2364 = vmatpush2.bf16.msra.mxu0 %v1925
      %2365 = vmatprep.subr.bf16.mxu0 %v1918
      %2366 = vmatpush2.bf16.msra.mxu0 %v1917
      %2367 = vmatprep.subr.bf16.mxu0 %v1910
      %2368 = vmatpush2.bf16.msra.mxu0 %v1909
      %2369 = vmatprep.subr.bf16.mxu0 %v1902
      %2370 = vmatpush2.bf16.msra.mxu0 %v1901
      %2371 = vmatprep.subr.bf16.mxu0 %v1894
      %2372 = vmatpush2.bf16.msra.mxu0 %v1893
      %2373 = vmatprep.mubr.bf16.mxu0 %v756
      %2374 = vmatmul.mubr.bf16.gmra.mxu0 %v755
      %v2375 = vpop.f32.mrf.mxu0
      %v2376 = vadd.f32 %v1024, %v2375
      %v2377 = vpop.f32.mrf.mxu0
      %v2378 = vadd.f32 %v1028, %v2377
      %v2379 = vpop.f32.mrf.mxu0
      %v2380 = vadd.f32 %v1024, %v2379
      %v2381 = vpop.f32.mrf.mxu0
      %v2382 = vadd.f32 %v1028, %v2381
      %2383 = vmatprep.mubr.bf16.mxu0 %v760
      %2384 = vmatmul.mubr.bf16.gmra.mxu0 %v759
      %v2385 = vpop.f32.mrf.mxu0
      %v2386 = vadd.f32 %v1024, %v2385
      %v2387 = vpop.f32.mrf.mxu0
      %v2388 = vadd.f32 %v1028, %v2387
      %v2389 = vpop.f32.mrf.mxu0
      %v2390 = vadd.f32 %v1024, %v2389
      %v2391 = vpop.f32.mrf.mxu0
      %v2392 = vadd.f32 %v1028, %v2391
      %2393 = vdwg.mxu0
      %2394 = vmatprep.subr.bf16.mxu0 %v2014
      %2395 = vmatpush1.bf16.msra.mxu0 %v2013
      %2396 = vmatprep.subr.bf16.mxu0 %v2006
      %2397 = vmatpush1.bf16.msra.mxu0 %v2005
      %2398 = vmatprep.subr.bf16.mxu0 %v1998
      %2399 = vmatpush1.bf16.msra.mxu0 %v1997
      %2400 = vmatprep.subr.bf16.mxu0 %v1990
      %2401 = vmatpush1.bf16.msra.mxu0 %v1989
      %2402 = vmatprep.subr.bf16.mxu0 %v1982
      %2403 = vmatpush1.bf16.msra.mxu0 %v1981
      %2404 = vmatprep.subr.bf16.mxu0 %v1974
      %2405 = vmatpush1.bf16.msra.mxu0 %v1973
      %2406 = vmatprep.subr.bf16.mxu0 %v1966
      %2407 = vmatpush1.bf16.msra.mxu0 %v1965
      %2408 = vmatprep.subr.bf16.mxu0 %v1958
      %2409 = vmatpush1.bf16.msra.mxu0 %v1957
      %2410 = vmatprep.subr.bf16.mxu0 %v2078
      %2411 = vmatpush2.bf16.msra.mxu0 %v2077
      %2412 = vmatprep.subr.bf16.mxu0 %v2070
      %2413 = vmatpush2.bf16.msra.mxu0 %v2069
      %2414 = vmatprep.subr.bf16.mxu0 %v2062
      %2415 = vmatpush2.bf16.msra.mxu0 %v2061
      %2416 = vmatprep.subr.bf16.mxu0 %v2054
      %2417 = vmatpush2.bf16.msra.mxu0 %v2053
      %2418 = vmatprep.subr.bf16.mxu0 %v2046
      %2419 = vmatpush2.bf16.msra.mxu0 %v2045
      %2420 = vmatprep.subr.bf16.mxu0 %v2038
      %2421 = vmatpush2.bf16.msra.mxu0 %v2037
      %2422 = vmatprep.subr.bf16.mxu0 %v2030
      %2423 = vmatpush2.bf16.msra.mxu0 %v2029
      %2424 = vmatprep.subr.bf16.mxu0 %v2022
      %2425 = vmatpush2.bf16.msra.mxu0 %v2021
      %2426 = vmatprep.mubr.bf16.mxu0 %v758
      %2427 = vmatmul.mubr.bf16.gmra.mxu0 %v757
      %v2428 = vpop.f32.mrf.mxu0
      %v2429 = vadd.f32 %v2376, %v2428
      %v2430 = vpop.f32.mrf.mxu0
      %v2431 = vadd.f32 %v2378, %v2430
      %v2432 = vpop.f32.mrf.mxu0
      %v2433 = vadd.f32 %v2380, %v2432
      %v2434 = vpop.f32.mrf.mxu0
      %v2435 = vadd.f32 %v2382, %v2434
      %2436 = vmatprep.mubr.bf16.mxu0 %v762
      %2437 = vmatmul.mubr.bf16.gmra.mxu0 %v761
      %v2438 = vpop.f32.mrf.mxu0
      %v2439 = vadd.f32 %v2386, %v2438
      %v2440 = vpop.f32.mrf.mxu0
      %v2441 = vadd.f32 %v2388, %v2440
      %v2442 = vpop.f32.mrf.mxu0
      %v2443 = vadd.f32 %v2390, %v2442
      %v2444 = vpop.f32.mrf.mxu0
      %v2445 = vadd.f32 %v2392, %v2444
      %2446 = vdwg.mxu0
      %2447 = vmatprep.subr.bf16.mxu0 %v1888
      %2448 = vmatpush1.bf16.msra.mxu0 %v1887
      %2449 = vmatprep.subr.bf16.mxu0 %v1880
      %2450 = vmatpush1.bf16.msra.mxu0 %v1879
      %2451 = vmatprep.subr.bf16.mxu0 %v1872
      %2452 = vmatpush1.bf16.msra.mxu0 %v1871
      %2453 = vmatprep.subr.bf16.mxu0 %v1864
      %2454 = vmatpush1.bf16.msra.mxu0 %v1863
      %2455 = vmatprep.subr.bf16.mxu0 %v1856
      %2456 = vmatpush1.bf16.msra.mxu0 %v1855
      %2457 = vmatprep.subr.bf16.mxu0 %v1848
      %2458 = vmatpush1.bf16.msra.mxu0 %v1847
      %2459 = vmatprep.subr.bf16.mxu0 %v1840
      %2460 = vmatpush1.bf16.msra.mxu0 %v1839
      %2461 = vmatprep.subr.bf16.mxu0 %v1832
      %2462 = vmatpush1.bf16.msra.mxu0 %v1831
      %2463 = vmatprep.subr.bf16.mxu0 %v1952
      %2464 = vmatpush2.bf16.msra.mxu0 %v1951
      %2465 = vmatprep.subr.bf16.mxu0 %v1944
      %2466 = vmatpush2.bf16.msra.mxu0 %v1943
      %2467 = vmatprep.subr.bf16.mxu0 %v1936
      %2468 = vmatpush2.bf16.msra.mxu0 %v1935
      %2469 = vmatprep.subr.bf16.mxu0 %v1928
      %2470 = vmatpush2.bf16.msra.mxu0 %v1927
      %2471 = vmatprep.subr.bf16.mxu0 %v1920
      %2472 = vmatpush2.bf16.msra.mxu0 %v1919
      %2473 = vmatprep.subr.bf16.mxu0 %v1912
      %2474 = vmatpush2.bf16.msra.mxu0 %v1911
      %2475 = vmatprep.subr.bf16.mxu0 %v1904
      %2476 = vmatpush2.bf16.msra.mxu0 %v1903
      %2477 = vmatprep.subr.bf16.mxu0 %v1896
      %2478 = vmatpush2.bf16.msra.mxu0 %v1895
      %2479 = vmatprep.mubr.bf16.mxu0 %v756
      %2480 = vmatmul.mubr.bf16.gmra.mxu0 %v755
      %v2481 = vpop.f32.mrf.mxu0
      %v2482 = vadd.f32 %v1032, %v2481
      %v2483 = vpop.f32.mrf.mxu0
      %v2484 = vadd.f32 %v1036, %v2483
      %v2485 = vpop.f32.mrf.mxu0
      %v2486 = vadd.f32 %v1032, %v2485
      %v2487 = vpop.f32.mrf.mxu0
      %v2488 = vadd.f32 %v1036, %v2487
      %2489 = vmatprep.mubr.bf16.mxu0 %v760
      %2490 = vmatmul.mubr.bf16.gmra.mxu0 %v759
      %v2491 = vpop.f32.mrf.mxu0
      %v2492 = vadd.f32 %v1032, %v2491
      %v2493 = vpop.f32.mrf.mxu0
      %v2494 = vadd.f32 %v1036, %v2493
      %v2495 = vpop.f32.mrf.mxu0
      %v2496 = vadd.f32 %v1032, %v2495
      %v2497 = vpop.f32.mrf.mxu0
      %v2498 = vadd.f32 %v1036, %v2497
      %2499 = vdwg.mxu0
      %2500 = vmatprep.subr.bf16.mxu0 %v2016
      %2501 = vmatpush1.bf16.msra.mxu0 %v2015
      %2502 = vmatprep.subr.bf16.mxu0 %v2008
      %2503 = vmatpush1.bf16.msra.mxu0 %v2007
      %2504 = vmatprep.subr.bf16.mxu0 %v2000
      %2505 = vmatpush1.bf16.msra.mxu0 %v1999
      %2506 = vmatprep.subr.bf16.mxu0 %v1992
      %2507 = vmatpush1.bf16.msra.mxu0 %v1991
      %2508 = vmatprep.subr.bf16.mxu0 %v1984
      %2509 = vmatpush1.bf16.msra.mxu0 %v1983
      %2510 = vmatprep.subr.bf16.mxu0 %v1976
      %2511 = vmatpush1.bf16.msra.mxu0 %v1975
      %2512 = vmatprep.subr.bf16.mxu0 %v1968
      %2513 = vmatpush1.bf16.msra.mxu0 %v1967
      %2514 = vmatprep.subr.bf16.mxu0 %v1960
      %2515 = vmatpush1.bf16.msra.mxu0 %v1959
      %2516 = vmatprep.subr.bf16.mxu0 %v2080
      %2517 = vmatpush2.bf16.msra.mxu0 %v2079
      %2518 = vmatprep.subr.bf16.mxu0 %v2072
      %2519 = vmatpush2.bf16.msra.mxu0 %v2071
      %2520 = vmatprep.subr.bf16.mxu0 %v2064
      %2521 = vmatpush2.bf16.msra.mxu0 %v2063
      %2522 = vmatprep.subr.bf16.mxu0 %v2056
      %2523 = vmatpush2.bf16.msra.mxu0 %v2055
      %2524 = vmatprep.subr.bf16.mxu0 %v2048
      %2525 = vmatpush2.bf16.msra.mxu0 %v2047
      %2526 = vmatprep.subr.bf16.mxu0 %v2040
      %2527 = vmatpush2.bf16.msra.mxu0 %v2039
      %2528 = vmatprep.subr.bf16.mxu0 %v2032
      %2529 = vmatpush2.bf16.msra.mxu0 %v2031
      %2530 = vmatprep.subr.bf16.mxu0 %v2024
      %2531 = vmatpush2.bf16.msra.mxu0 %v2023
      %2532 = vmatprep.mubr.bf16.mxu0 %v758
      %2533 = vmatmul.mubr.bf16.gmra.mxu0 %v757
      %v2534 = vpop.f32.mrf.mxu0
      %v2535 = vadd.f32 %v2482, %v2534
      %v2536 = vpop.f32.mrf.mxu0
      %v2537 = vadd.f32 %v2484, %v2536
      %v2538 = vpop.f32.mrf.mxu0
      %v2539 = vadd.f32 %v2486, %v2538
      %v2540 = vpop.f32.mrf.mxu0
      %v2541 = vadd.f32 %v2488, %v2540
      %2542 = vmatprep.mubr.bf16.mxu0 %v762
      %2543 = vmatmul.mubr.bf16.gmra.mxu0 %v761
      %v2544 = vpop.f32.mrf.mxu0
      %v2545 = vadd.f32 %v2492, %v2544
      %v2546 = vpop.f32.mrf.mxu0
      %v2547 = vadd.f32 %v2494, %v2546
      %v2548 = vpop.f32.mrf.mxu0
      %v2549 = vadd.f32 %v2496, %v2548
      %v2550 = vpop.f32.mrf.mxu0
      %v2551 = vadd.f32 %v2498, %v2550
      %2552 = vdwg.mxu0
      %2553 = vmatprep.subr.bf16.mxu0 %v1890
      %2554 = vmatpush1.bf16.msra.mxu0 %v1889
      %2555 = vmatprep.subr.bf16.mxu0 %v1882
      %2556 = vmatpush1.bf16.msra.mxu0 %v1881
      %2557 = vmatprep.subr.bf16.mxu0 %v1874
      %2558 = vmatpush1.bf16.msra.mxu0 %v1873
      %2559 = vmatprep.subr.bf16.mxu0 %v1866
      %2560 = vmatpush1.bf16.msra.mxu0 %v1865
      %2561 = vmatprep.subr.bf16.mxu0 %v1858
      %2562 = vmatpush1.bf16.msra.mxu0 %v1857
      %2563 = vmatprep.subr.bf16.mxu0 %v1850
      %2564 = vmatpush1.bf16.msra.mxu0 %v1849
      %2565 = vmatprep.subr.bf16.mxu0 %v1842
      %2566 = vmatpush1.bf16.msra.mxu0 %v1841
      %2567 = vmatprep.subr.bf16.mxu0 %v1834
      %2568 = vmatpush1.bf16.msra.mxu0 %v1833
      %2569 = vmatprep.subr.bf16.mxu0 %v1954
      %2570 = vmatpush2.bf16.msra.mxu0 %v1953
      %2571 = vmatprep.subr.bf16.mxu0 %v1946
      %2572 = vmatpush2.bf16.msra.mxu0 %v1945
      %2573 = vmatprep.subr.bf16.mxu0 %v1938
      %2574 = vmatpush2.bf16.msra.mxu0 %v1937
      %2575 = vmatprep.subr.bf16.mxu0 %v1930
      %2576 = vmatpush2.bf16.msra.mxu0 %v1929
      %2577 = vmatprep.subr.bf16.mxu0 %v1922
      %2578 = vmatpush2.bf16.msra.mxu0 %v1921
      %2579 = vmatprep.subr.bf16.mxu0 %v1914
      %2580 = vmatpush2.bf16.msra.mxu0 %v1913
      %2581 = vmatprep.subr.bf16.mxu0 %v1906
      %2582 = vmatpush2.bf16.msra.mxu0 %v1905
      %2583 = vmatprep.subr.bf16.mxu0 %v1898
      %2584 = vmatpush2.bf16.msra.mxu0 %v1897
      %2585 = vmatprep.mubr.bf16.mxu0 %v756
      %2586 = vmatmul.mubr.bf16.gmra.mxu0 %v755
      %v2587 = vpop.f32.mrf.mxu0
      %v2588 = vadd.f32 %v1040, %v2587
      %v2589 = vpop.f32.mrf.mxu0
      %v2590 = vadd.f32 %v1044, %v2589
      %v2591 = vpop.f32.mrf.mxu0
      %v2592 = vadd.f32 %v1040, %v2591
      %v2593 = vpop.f32.mrf.mxu0
      %v2594 = vadd.f32 %v1044, %v2593
      %2595 = vmatprep.mubr.bf16.mxu0 %v760
      %2596 = vmatmul.mubr.bf16.gmra.mxu0 %v759
      %v2597 = vpop.f32.mrf.mxu0
      %v2598 = vadd.f32 %v1040, %v2597
      %v2599 = vpop.f32.mrf.mxu0
      %v2600 = vadd.f32 %v1044, %v2599
      %v2601 = vpop.f32.mrf.mxu0
      %v2602 = vadd.f32 %v1040, %v2601
      %v2603 = vpop.f32.mrf.mxu0
      %v2604 = vadd.f32 %v1044, %v2603
      %2605 = vdwg.mxu0
      %2606 = vmatprep.subr.bf16.mxu0 %v2018
      %2607 = vmatpush1.bf16.msra.mxu0 %v2017
      %2608 = vmatprep.subr.bf16.mxu0 %v2010
      %2609 = vmatpush1.bf16.msra.mxu0 %v2009
      %2610 = vmatprep.subr.bf16.mxu0 %v2002
      %2611 = vmatpush1.bf16.msra.mxu0 %v2001
      %2612 = vmatprep.subr.bf16.mxu0 %v1994
      %2613 = vmatpush1.bf16.msra.mxu0 %v1993
      %2614 = vmatprep.subr.bf16.mxu0 %v1986
      %2615 = vmatpush1.bf16.msra.mxu0 %v1985
      %2616 = vmatprep.subr.bf16.mxu0 %v1978
      %2617 = vmatpush1.bf16.msra.mxu0 %v1977
      %2618 = vmatprep.subr.bf16.mxu0 %v1970
      %2619 = vmatpush1.bf16.msra.mxu0 %v1969
      %2620 = vmatprep.subr.bf16.mxu0 %v1962
      %2621 = vmatpush1.bf16.msra.mxu0 %v1961
      %2622 = vmatprep.subr.bf16.mxu0 %v2082
      %2623 = vmatpush2.bf16.msra.mxu0 %v2081
      %2624 = vmatprep.subr.bf16.mxu0 %v2074
      %2625 = vmatpush2.bf16.msra.mxu0 %v2073
      %2626 = vmatprep.subr.bf16.mxu0 %v2066
      %2627 = vmatpush2.bf16.msra.mxu0 %v2065
      %2628 = vmatprep.subr.bf16.mxu0 %v2058
      %2629 = vmatpush2.bf16.msra.mxu0 %v2057
      %2630 = vmatprep.subr.bf16.mxu0 %v2050
      %2631 = vmatpush2.bf16.msra.mxu0 %v2049
      %2632 = vmatprep.subr.bf16.mxu0 %v2042
      %2633 = vmatpush2.bf16.msra.mxu0 %v2041
      %2634 = vmatprep.subr.bf16.mxu0 %v2034
      %2635 = vmatpush2.bf16.msra.mxu0 %v2033
      %2636 = vmatprep.subr.bf16.mxu0 %v2026
      %2637 = vmatpush2.bf16.msra.mxu0 %v2025
      %2638 = vmatprep.mubr.bf16.mxu0 %v758
      %2639 = vmatmul.mubr.bf16.gmra.mxu0 %v757
      %v2640 = vpop.f32.mrf.mxu0
      %v2641 = vadd.f32 %v2588, %v2640
      %v2642 = vpop.f32.mrf.mxu0
      %v2643 = vadd.f32 %v2590, %v2642
      %v2644 = vpop.f32.mrf.mxu0
      %v2645 = vadd.f32 %v2592, %v2644
      %v2646 = vpop.f32.mrf.mxu0
      %v2647 = vadd.f32 %v2594, %v2646
      %2648 = vmatprep.mubr.bf16.mxu0 %v762
      %2649 = vmatmul.mubr.bf16.gmra.mxu0 %v761
      %v2650 = vpop.f32.mrf.mxu0
      %v2651 = vadd.f32 %v2598, %v2650
      %v2652 = vpop.f32.mrf.mxu0
      %v2653 = vadd.f32 %v2600, %v2652
      %v2654 = vpop.f32.mrf.mxu0
      %v2655 = vadd.f32 %v2602, %v2654
      %v2656 = vpop.f32.mrf.mxu0
      %v2657 = vadd.f32 %v2604, %v2656
      %2658 = vdwg.mxu0
      %2659 = vmatprep.subr.bf16.mxu0 %v1892
      %2660 = vmatpush1.bf16.msra.mxu0 %v1891
      %2661 = vmatprep.subr.bf16.mxu0 %v1884
      %2662 = vmatpush1.bf16.msra.mxu0 %v1883
      %2663 = vmatprep.subr.bf16.mxu0 %v1876
      %2664 = vmatpush1.bf16.msra.mxu0 %v1875
      %2665 = vmatprep.subr.bf16.mxu0 %v1868
      %2666 = vmatpush1.bf16.msra.mxu0 %v1867
      %2667 = vmatprep.subr.bf16.mxu0 %v1860
      %2668 = vmatpush1.bf16.msra.mxu0 %v1859
      %2669 = vmatprep.subr.bf16.mxu0 %v1852
      %2670 = vmatpush1.bf16.msra.mxu0 %v1851
      %2671 = vmatprep.subr.bf16.mxu0 %v1844
      %2672 = vmatpush1.bf16.msra.mxu0 %v1843
      %2673 = vmatprep.subr.bf16.mxu0 %v1836
      %2674 = vmatpush1.bf16.msra.mxu0 %v1835
      %2675 = vmatprep.subr.bf16.mxu0 %v1956
      %2676 = vmatpush2.bf16.msra.mxu0 %v1955
      %2677 = vmatprep.subr.bf16.mxu0 %v1948
      %2678 = vmatpush2.bf16.msra.mxu0 %v1947
      %2679 = vmatprep.subr.bf16.mxu0 %v1940
      %2680 = vmatpush2.bf16.msra.mxu0 %v1939
      %2681 = vmatprep.subr.bf16.mxu0 %v1932
      %2682 = vmatpush2.bf16.msra.mxu0 %v1931
      %2683 = vmatprep.subr.bf16.mxu0 %v1924
      %2684 = vmatpush2.bf16.msra.mxu0 %v1923
      %2685 = vmatprep.subr.bf16.mxu0 %v1916
      %2686 = vmatpush2.bf16.msra.mxu0 %v1915
      %2687 = vmatprep.subr.bf16.mxu0 %v1908
      %2688 = vmatpush2.bf16.msra.mxu0 %v1907
      %2689 = vmatprep.subr.bf16.mxu0 %v1900
      %2690 = vmatpush2.bf16.msra.mxu0 %v1899
      %2691 = vmatprep.mubr.bf16.mxu0 %v756
      %2692 = vmatmul.mubr.bf16.gmra.mxu0 %v755
      %v2693 = vpop.f32.mrf.mxu0
      %v2694 = vadd.f32 %v1048, %v2693
      %v2695 = vpop.f32.mrf.mxu0
      %v2696 = vadd.f32 %v1052, %v2695
      %v2697 = vpop.f32.mrf.mxu0
      %v2698 = vadd.f32 %v1048, %v2697
      %v2699 = vpop.f32.mrf.mxu0
      %v2700 = vadd.f32 %v1052, %v2699
      %2701 = vmatprep.mubr.bf16.mxu0 %v760
      %2702 = vmatmul.mubr.bf16.gmra.mxu0 %v759
      %v2703 = vpop.f32.mrf.mxu0
      %v2704 = vadd.f32 %v1048, %v2703
      %v2705 = vpop.f32.mrf.mxu0
      %v2706 = vadd.f32 %v1052, %v2705
      %v2707 = vpop.f32.mrf.mxu0
      %v2708 = vadd.f32 %v1048, %v2707
      %v2709 = vpop.f32.mrf.mxu0
      %v2710 = vadd.f32 %v1052, %v2709
      %2711 = vdwg.mxu0
      %2712 = vmatprep.subr.bf16.mxu0 %v2020
      %2713 = vmatpush1.bf16.msra.mxu0 %v2019
      %2714 = vmatprep.subr.bf16.mxu0 %v2012
      %2715 = vmatpush1.bf16.msra.mxu0 %v2011
      %2716 = vmatprep.subr.bf16.mxu0 %v2004
      %2717 = vmatpush1.bf16.msra.mxu0 %v2003
      %2718 = vmatprep.subr.bf16.mxu0 %v1996
      %2719 = vmatpush1.bf16.msra.mxu0 %v1995
      %2720 = vmatprep.subr.bf16.mxu0 %v1988
      %2721 = vmatpush1.bf16.msra.mxu0 %v1987
      %2722 = vmatprep.subr.bf16.mxu0 %v1980
      %2723 = vmatpush1.bf16.msra.mxu0 %v1979
      %2724 = vmatprep.subr.bf16.mxu0 %v1972
      %2725 = vmatpush1.bf16.msra.mxu0 %v1971
      %2726 = vmatprep.subr.bf16.mxu0 %v1964
      %2727 = vmatpush1.bf16.msra.mxu0 %v1963
      %2728 = vmatprep.subr.bf16.mxu0 %v2084
      %2729 = vmatpush2.bf16.msra.mxu0 %v2083
      %2730 = vmatprep.subr.bf16.mxu0 %v2076
      %2731 = vmatpush2.bf16.msra.mxu0 %v2075
      %2732 = vmatprep.subr.bf16.mxu0 %v2068
      %2733 = vmatpush2.bf16.msra.mxu0 %v2067
      %2734 = vmatprep.subr.bf16.mxu0 %v2060
      %2735 = vmatpush2.bf16.msra.mxu0 %v2059
      %2736 = vmatprep.subr.bf16.mxu0 %v2052
      %2737 = vmatpush2.bf16.msra.mxu0 %v2051
      %2738 = vmatprep.subr.bf16.mxu0 %v2044
      %2739 = vmatpush2.bf16.msra.mxu0 %v2043
      %2740 = vmatprep.subr.bf16.mxu0 %v2036
      %2741 = vmatpush2.bf16.msra.mxu0 %v2035
      %2742 = vmatprep.subr.bf16.mxu0 %v2028
      %2743 = vmatpush2.bf16.msra.mxu0 %v2027
      %2744 = vmatprep.mubr.bf16.mxu0 %v758
      %2745 = vmatmul.mubr.bf16.gmra.mxu0 %v757
      %v2746 = vpop.f32.mrf.mxu0
      %v2747 = vadd.f32 %v2694, %v2746
      %v2748 = vpop.f32.mrf.mxu0
      %v2749 = vadd.f32 %v2696, %v2748
      %v2750 = vpop.f32.mrf.mxu0
      %v2751 = vadd.f32 %v2698, %v2750
      %v2752 = vpop.f32.mrf.mxu0
      %v2753 = vadd.f32 %v2700, %v2752
      %2754 = vmatprep.mubr.bf16.mxu0 %v762
      %2755 = vmatmul.mubr.bf16.gmra.mxu0 %v761
      %v2756 = vpop.f32.mrf.mxu0
      %v2757 = vadd.f32 %v2704, %v2756
      %v2758 = vpop.f32.mrf.mxu0
      %v2759 = vadd.f32 %v2706, %v2758
      %v2760 = vpop.f32.mrf.mxu0
      %v2761 = vadd.f32 %v2708, %v2760
      %v2762 = vpop.f32.mrf.mxu0
      %v2763 = vadd.f32 %v2710, %v2762
      %2764 = vdwg.mxu0
      %v2765 = vmax.f32 %v2429, 0.0
      %v2766 = vmax.f32 %v2431, 0.0
      %v2767 = vmax.f32 %v2535, 0.0
      %v2768 = vmax.f32 %v2537, 0.0
      %v2769 = vmax.f32 %v2641, 0.0
      %v2770 = vmax.f32 %v2643, 0.0
      %v2771 = vmax.f32 %v2747, 0.0
      %v2772 = vmax.f32 %v2749, 0.0
      %v2773 = vmax.f32 %v2433, 0.0
      %v2774 = vmax.f32 %v2435, 0.0
      %v2775 = vmax.f32 %v2539, 0.0
      %v2776 = vmax.f32 %v2541, 0.0
      %v2777 = vmax.f32 %v2645, 0.0
      %v2778 = vmax.f32 %v2647, 0.0
      %v2779 = vmax.f32 %v2751, 0.0
      %v2780 = vmax.f32 %v2753, 0.0
      %v2781 = vmax.f32 %v2439, 0.0
      %v2782 = vmax.f32 %v2441, 0.0
      %v2783 = vmax.f32 %v2545, 0.0
      %v2784 = vmax.f32 %v2547, 0.0
      %v2785 = vmax.f32 %v2651, 0.0
      %v2786 = vmax.f32 %v2653, 0.0
      %v2787 = vmax.f32 %v2757, 0.0
      %v2788 = vmax.f32 %v2759, 0.0
      %v2789 = vmax.f32 %v2443, 0.0
      %v2790 = vmax.f32 %v2445, 0.0
      %v2791 = vmax.f32 %v2549, 0.0
      %v2792 = vmax.f32 %v2551, 0.0
      %v2793 = vmax.f32 %v2655, 0.0
      %v2794 = vmax.f32 %v2657, 0.0
      %v2795 = vmax.f32 %v2761, 0.0
      %v2796 = vmax.f32 %v2763, 0.0
      %v2797 = vpack.c.bf16 %v2773, %v2765
      %v2798 = vpack.c.bf16 %v2774, %v2766
      %v2799 = vpack.c.bf16 %v2775, %v2767
      %v2800 = vpack.c.bf16 %v2776, %v2768
      %v2801 = vpack.c.bf16 %v2777, %v2769
      %v2802 = vpack.c.bf16 %v2778, %v2770
      %v2803 = vpack.c.bf16 %v2779, %v2771
      %v2804 = vpack.c.bf16 %v2780, %v2772
      %v2805 = vpack.c.bf16 %v2789, %v2781
      %v2806 = vpack.c.bf16 %v2790, %v2782
      %v2807 = vpack.c.bf16 %v2791, %v2783
      %v2808 = vpack.c.bf16 %v2792, %v2784
      %v2809 = vpack.c.bf16 %v2793, %v2785
      %v2810 = vpack.c.bf16 %v2794, %v2786
      %v2811 = vpack.c.bf16 %v2795, %v2787
      %v2812 = vpack.c.bf16 %v2796, %v2788
      %v2829 = vunpack.c.l.b16 %v2797
      %v2830 = vunpack.c.l.b16 %v2798
      %v2831 = vunpack.c.l.b16 %v2799
      %v2832 = vunpack.c.l.b16 %v2800
      %v2833 = vunpack.c.l.b16 %v2801
      %v2834 = vunpack.c.l.b16 %v2802
      %v2835 = vunpack.c.l.b16 %v2803
      %v2836 = vunpack.c.l.b16 %v2804
      %v2837 = vunpack.c.h.b16 %v2797
      %v2838 = vunpack.c.h.b16 %v2798
      %v2839 = vunpack.c.h.b16 %v2799
      %v2840 = vunpack.c.h.b16 %v2800
      %v2841 = vunpack.c.h.b16 %v2801
      %v2842 = vunpack.c.h.b16 %v2802
      %v2843 = vunpack.c.h.b16 %v2803
      %v2844 = vunpack.c.h.b16 %v2804
      %v2845 = vunpack.c.l.b16 %v2805
      %v2846 = vunpack.c.l.b16 %v2806
      %v2847 = vunpack.c.l.b16 %v2807
      %v2848 = vunpack.c.l.b16 %v2808
      %v2849 = vunpack.c.l.b16 %v2809
      %v2850 = vunpack.c.l.b16 %v2810
      %v2851 = vunpack.c.l.b16 %v2811
      %v2852 = vunpack.c.l.b16 %v2812
      %v2853 = vunpack.c.h.b16 %v2805
      %v2854 = vunpack.c.h.b16 %v2806
      %v2855 = vunpack.c.h.b16 %v2807
      %v2856 = vunpack.c.h.b16 %v2808
      %v2857 = vunpack.c.h.b16 %v2809
      %v2858 = vunpack.c.h.b16 %v2810
      %v2859 = vunpack.c.h.b16 %v2811
      %v2860 = vunpack.c.h.b16 %v2812
      %v2861 = vpack.c.b16 %v2830, %v2829
      %v2862 = vpack.c.b16 %v2832, %v2831
      %v2863 = vpack.c.b16 %v2834, %v2833
      %v2864 = vpack.c.b16 %v2836, %v2835
      %v2865 = vpack.c.b16 %v2838, %v2837
      %v2866 = vpack.c.b16 %v2840, %v2839
      %v2867 = vpack.c.b16 %v2842, %v2841
      %v2868 = vpack.c.b16 %v2844, %v2843
      %v2869 = vpack.c.b16 %v2846, %v2845
      %v2870 = vpack.c.b16 %v2848, %v2847
      %v2871 = vpack.c.b16 %v2850, %v2849
      %v2872 = vpack.c.b16 %v2852, %v2851
      %v2873 = vpack.c.b16 %v2854, %v2853
      %v2874 = vpack.c.b16 %v2856, %v2855
      %v2875 = vpack.c.b16 %v2858, %v2857
      %v2876 = vpack.c.b16 %v2860, %v2859
      %2893 = vst [vmem:[#allocation2] sm:$0xff] %v2861
      %2894 = vst [vmem:[#allocation2 + $0x8] sm:$0xff] %v2862
      %2895 = vst [vmem:[#allocation2 + $0x10] sm:$0xff] %v2863
      %2896 = vst [vmem:[#allocation2 + $0x18] sm:$0xff] %v2864
      %2897 = vst [vmem:[#allocation2 + $0x20] sm:$0xff] %v2865
      %2898 = vst [vmem:[#allocation2 + $0x28] sm:$0xff] %v2866
      %2899 = vst [vmem:[#allocation2 + $0x30] sm:$0xff] %v2867
      %2900 = vst [vmem:[#allocation2 + $0x38] sm:$0xff] %v2868
      %2901 = vst [vmem:[#allocation2 + $0x40] sm:$0xff] %v2869
      %2902 = vst [vmem:[#allocation2 + $0x48] sm:$0xff] %v2870
      %2903 = vst [vmem:[#allocation2 + $0x50] sm:$0xff] %v2871
      %2904 = vst [vmem:[#allocation2 + $0x58] sm:$0xff] %v2872
      %2905 = vst [vmem:[#allocation2 + $0x60] sm:$0xff] %v2873
      %2906 = vst [vmem:[#allocation2 + $0x68] sm:$0xff] %v2874
      %2907 = vst [vmem:[#allocation2 + $0x70] sm:$0xff] %v2875
      %2908 = vst [vmem:[#allocation2 + $0x78] sm:$0xff] %v2876
    $region41: #{generator_no_user_info.1} parent=1 // pred_fallthru
      _
    %v2909 = vld [vmem:[#allocation2] sm:$0xff]
    %v2910 = vld [vmem:[#allocation2 + $0x8] sm:$0xff]
    %v2911 = vld [vmem:[#allocation2 + $0x10] sm:$0xff]
    %v2912 = vld [vmem:[#allocation2 + $0x18] sm:$0xff]
    %v2913 = vld [vmem:[#allocation2 + $0x20] sm:$0xff]
    %v2914 = vld [vmem:[#allocation2 + $0x28] sm:$0xff]
    %v2915 = vld [vmem:[#allocation2 + $0x30] sm:$0xff]
    %v2916 = vld [vmem:[#allocation2 + $0x38] sm:$0xff]
    %v2917 = vld [vmem:[#allocation2 + $0x40] sm:$0xff]
    %v2918 = vld [vmem:[#allocation2 + $0x48] sm:$0xff]
    %v2919 = vld [vmem:[#allocation2 + $0x50] sm:$0xff]
    %v2920 = vld [vmem:[#allocation2 + $0x58] sm:$0xff]
    %v2921 = vld [vmem:[#allocation2 + $0x60] sm:$0xff]
    %v2922 = vld [vmem:[#allocation2 + $0x68] sm:$0xff]
    %v2923 = vld [vmem:[#allocation2 + $0x70] sm:$0xff]
    %v2924 = vld [vmem:[#allocation2 + $0x78] sm:$0xff]
    %v2925 = vld [vmem:[%s7] sm:$0xf]
    %v2926 = vld [vmem:[%s7 + $0x4] sm:$0xf]
    %v2927 = vld [vmem:[%s7 + $0x8] sm:$0xf]
    %v2928 = vld [vmem:[%s7 + $0xc] sm:$0xf]
    %v2929 = vld [vmem:[%s7 + $0x10] sm:$0xf]
    %v2930 = vld [vmem:[%s7 + $0x14] sm:$0xf]
    %v2931 = vld [vmem:[%s7 + $0x18] sm:$0xf]
    %v2932 = vld [vmem:[%s7 + $0x1c] sm:$0xf]
    %v2933 = vld [vmem:[%s7 + $0x20] sm:$0xf]
    %v2934 = vld [vmem:[%s7 + $0x24] sm:$0xf]
    %v2935 = vld [vmem:[%s7 + $0x28] sm:$0xf]
    %v2936 = vld [vmem:[%s7 + $0x2c] sm:$0xf]
    %v2937 = vld [vmem:[%s7 + $0x30] sm:$0xf]
    %v2938 = vld [vmem:[%s7 + $0x34] sm:$0xf]
    %v2939 = vld [vmem:[%s7 + $0x38] sm:$0xf]
    %v2940 = vld [vmem:[%s7 + $0x3c] sm:$0xf]
    %v2941 = vld [vmem:[%s7 + $0x40] sm:$0xf]
    %v2942 = vld [vmem:[%s7 + $0x44] sm:$0xf]
    %v2943 = vld [vmem:[%s7 + $0x48] sm:$0xf]
    %v2944 = vld [vmem:[%s7 + $0x4c] sm:$0xf]
    %v2945 = vld [vmem:[%s7 + $0x50] sm:$0xf]
    %v2946 = vld [vmem:[%s7 + $0x54] sm:$0xf]
    %v2947 = vld [vmem:[%s7 + $0x58] sm:$0xf]
    %v2948 = vld [vmem:[%s7 + $0x5c] sm:$0xf]
    %v2949 = vld [vmem:[%s7 + $0x60] sm:$0xf]
    %v2950 = vld [vmem:[%s7 + $0x64] sm:$0xf]
    %v2951 = vld [vmem:[%s7 + $0x68] sm:$0xf]
    %v2952 = vld [vmem:[%s7 + $0x6c] sm:$0xf]
    %v2953 = vld [vmem:[%s7 + $0x70] sm:$0xf]
    %v2954 = vld [vmem:[%s7 + $0x74] sm:$0xf]
    %v2955 = vld [vmem:[%s7 + $0x78] sm:$0xf]
    %v2956 = vld [vmem:[%s7 + $0x7c] sm:$0xf]
    %v2957 = vld [vmem:[%s7 + $0x80] sm:$0xf]
    %v2958 = vld [vmem:[%s7 + $0x84] sm:$0xf]
    %v2959 = vld [vmem:[%s7 + $0x88] sm:$0xf]
    %v2960 = vld [vmem:[%s7 + $0x8c] sm:$0xf]
    %v2961 = vld [vmem:[%s7 + $0x90] sm:$0xf]
    %v2962 = vld [vmem:[%s7 + $0x94] sm:$0xf]
    %v2963 = vld [vmem:[%s7 + $0x98] sm:$0xf]
    %v2964 = vld [vmem:[%s7 + $0x9c] sm:$0xf]
    %v2965 = vld [vmem:[%s7 + $0xa0] sm:$0xf]
    %v2966 = vld [vmem:[%s7 + $0xa4] sm:$0xf]
    %v2967 = vld [vmem:[%s7 + $0xa8] sm:$0xf]
    %v2968 = vld [vmem:[%s7 + $0xac] sm:$0xf]
    %v2969 = vld [vmem:[%s7 + $0xb0] sm:$0xf]
    %v2970 = vld [vmem:[%s7 + $0xb4] sm:$0xf]
    %v2971 = vld [vmem:[%s7 + $0xb8] sm:$0xf]
    %v2972 = vld [vmem:[%s7 + $0xbc] sm:$0xf]
    %v2973 = vld [vmem:[%s7 + $0xc0] sm:$0xf]
    %v2974 = vld [vmem:[%s7 + $0xc4] sm:$0xf]
    %v2975 = vld [vmem:[%s7 + $0xc8] sm:$0xf]
    %v2976 = vld [vmem:[%s7 + $0xcc] sm:$0xf]
    %v2977 = vld [vmem:[%s7 + $0xd0] sm:$0xf]
    %v2978 = vld [vmem:[%s7 + $0xd4] sm:$0xf]
    %v2979 = vld [vmem:[%s7 + $0xd8] sm:$0xf]
    %v2980 = vld [vmem:[%s7 + $0xdc] sm:$0xf]
    %v2981 = vld [vmem:[%s7 + $0xe0] sm:$0xf]
    %v2982 = vld [vmem:[%s7 + $0xe4] sm:$0xf]
    %v2983 = vld [vmem:[%s7 + $0xe8] sm:$0xf]
    %v2984 = vld [vmem:[%s7 + $0xec] sm:$0xf]
    %v2985 = vld [vmem:[%s7 + $0xf0] sm:$0xf]
    %v2986 = vld [vmem:[%s7 + $0xf4] sm:$0xf]
    %v2987 = vld [vmem:[%s7 + $0xf8] sm:$0xf]
    %v2988 = vld [vmem:[%s7 + $0xfc] sm:$0xf]
    %v2989 = vld [vmem:[%s7 + $0x100] sm:$0xf]
    %v2990 = vld [vmem:[%s7 + $0x104] sm:$0xf]
    %v2991 = vld [vmem:[%s7 + $0x108] sm:$0xf]
    %v2992 = vld [vmem:[%s7 + $0x10c] sm:$0xf]
    %v2993 = vld [vmem:[%s7 + $0x110] sm:$0xf]
    %v2994 = vld [vmem:[%s7 + $0x114] sm:$0xf]
    %v2995 = vld [vmem:[%s7 + $0x118] sm:$0xf]
    %v2996 = vld [vmem:[%s7 + $0x11c] sm:$0xf]
    %v2997 = vld [vmem:[%s7 + $0x120] sm:$0xf]
    %v2998 = vld [vmem:[%s7 + $0x124] sm:$0xf]
    %v2999 = vld [vmem:[%s7 + $0x128] sm:$0xf]
    %v3000 = vld [vmem:[%s7 + $0x12c] sm:$0xf]
    %v3001 = vld [vmem:[%s7 + $0x130] sm:$0xf]
    %v3002 = vld [vmem:[%s7 + $0x134] sm:$0xf]
    %v3003 = vld [vmem:[%s7 + $0x138] sm:$0xf]
    %v3004 = vld [vmem:[%s7 + $0x13c] sm:$0xf]
    %v3005 = vld [vmem:[%s7 + $0x140] sm:$0xf]
    %v3006 = vld [vmem:[%s7 + $0x144] sm:$0xf]
    %v3007 = vld [vmem:[%s7 + $0x148] sm:$0xf]
    %v3008 = vld [vmem:[%s7 + $0x14c] sm:$0xf]
    %v3009 = vld [vmem:[%s7 + $0x150] sm:$0xf]
    %v3010 = vld [vmem:[%s7 + $0x154] sm:$0xf]
    %v3011 = vld [vmem:[%s7 + $0x158] sm:$0xf]
    %v3012 = vld [vmem:[%s7 + $0x15c] sm:$0xf]
    %v3013 = vld [vmem:[%s7 + $0x160] sm:$0xf]
    %v3014 = vld [vmem:[%s7 + $0x164] sm:$0xf]
    %v3015 = vld [vmem:[%s7 + $0x168] sm:$0xf]
    %v3016 = vld [vmem:[%s7 + $0x16c] sm:$0xf]
    %v3017 = vld [vmem:[%s7 + $0x170] sm:$0xf]
    %v3018 = vld [vmem:[%s7 + $0x174] sm:$0xf]
    %v3019 = vld [vmem:[%s7 + $0x178] sm:$0xf]
    %v3020 = vld [vmem:[%s7 + $0x17c] sm:$0xf]
    %v3021 = vld [vmem:[%s7 + $0x180] sm:$0xf]
    %v3022 = vld [vmem:[%s7 + $0x184] sm:$0xf]
    %v3023 = vld [vmem:[%s7 + $0x188] sm:$0xf]
    %v3024 = vld [vmem:[%s7 + $0x18c] sm:$0xf]
    %v3025 = vld [vmem:[%s7 + $0x190] sm:$0xf]
    %v3026 = vld [vmem:[%s7 + $0x194] sm:$0xf]
    %v3027 = vld [vmem:[%s7 + $0x198] sm:$0xf]
    %v3028 = vld [vmem:[%s7 + $0x19c] sm:$0xf]
    %v3029 = vld [vmem:[%s7 + $0x1a0] sm:$0xf]
    %v3030 = vld [vmem:[%s7 + $0x1a4] sm:$0xf]
    %v3031 = vld [vmem:[%s7 + $0x1a8] sm:$0xf]
    %v3032 = vld [vmem:[%s7 + $0x1ac] sm:$0xf]
    %v3033 = vld [vmem:[%s7 + $0x1b0] sm:$0xf]
    %v3034 = vld [vmem:[%s7 + $0x1b4] sm:$0xf]
    %v3035 = vld [vmem:[%s7 + $0x1b8] sm:$0xf]
    %v3036 = vld [vmem:[%s7 + $0x1bc] sm:$0xf]
    %v3037 = vld [vmem:[%s7 + $0x1c0] sm:$0xf]
    %v3038 = vld [vmem:[%s7 + $0x1c4] sm:$0xf]
    %v3039 = vld [vmem:[%s7 + $0x1c8] sm:$0xf]
    %v3040 = vld [vmem:[%s7 + $0x1cc] sm:$0xf]
    %v3041 = vld [vmem:[%s7 + $0x1d0] sm:$0xf]
    %v3042 = vld [vmem:[%s7 + $0x1d4] sm:$0xf]
    %v3043 = vld [vmem:[%s7 + $0x1d8] sm:$0xf]
    %v3044 = vld [vmem:[%s7 + $0x1dc] sm:$0xf]
    %v3045 = vld [vmem:[%s7 + $0x1e0] sm:$0xf]
    %v3046 = vld [vmem:[%s7 + $0x1e4] sm:$0xf]
    %v3047 = vld [vmem:[%s7 + $0x1e8] sm:$0xf]
    %v3048 = vld [vmem:[%s7 + $0x1ec] sm:$0xf]
    %v3049 = vld [vmem:[%s7 + $0x1f0] sm:$0xf]
    %v3050 = vld [vmem:[%s7 + $0x1f4] sm:$0xf]
    %v3051 = vld [vmem:[%s7 + $0x1f8] sm:$0xf]
    %v3052 = vld [vmem:[%s7 + $0x1fc] sm:$0xf]
    %v3053 = vld [vmem:[%s8] sm:$0x1]
    %v3055 = vlaneseq
    %v3056 = vshrl.u32 %v3055, 7
    %v3057 = vsub.s32 0, %v3056
    %v3058 = vrot.slane %v3053, %v3057
    %v3076 = vunpack.c.l.b16 %v2909
    %v3077 = vunpack.c.h.b16 %v2909
    %v3078 = vunpack.c.l.b16 %v2910
    %v3079 = vunpack.c.h.b16 %v2910
    %v3080 = vunpack.c.l.b16 %v2911
    %v3081 = vunpack.c.h.b16 %v2911
    %v3082 = vunpack.c.l.b16 %v2912
    %v3083 = vunpack.c.h.b16 %v2912
    %v3084 = vunpack.c.l.b16 %v2913
    %v3085 = vunpack.c.h.b16 %v2913
    %v3086 = vunpack.c.l.b16 %v2914
    %v3087 = vunpack.c.h.b16 %v2914
    %v3088 = vunpack.c.l.b16 %v2915
    %v3089 = vunpack.c.h.b16 %v2915
    %v3090 = vunpack.c.l.b16 %v2916
    %v3091 = vunpack.c.h.b16 %v2916
    %v3092 = vunpack.c.l.b16 %v2917
    %v3093 = vunpack.c.h.b16 %v2917
    %v3094 = vunpack.c.l.b16 %v2918
    %v3095 = vunpack.c.h.b16 %v2918
    %v3096 = vunpack.c.l.b16 %v2919
    %v3097 = vunpack.c.h.b16 %v2919
    %v3098 = vunpack.c.l.b16 %v2920
    %v3099 = vunpack.c.h.b16 %v2920
    %v3100 = vunpack.c.l.b16 %v2921
    %v3101 = vunpack.c.h.b16 %v2921
    %v3102 = vunpack.c.l.b16 %v2922
    %v3103 = vunpack.c.h.b16 %v2922
    %v3104 = vunpack.c.l.b16 %v2923
    %v3105 = vunpack.c.h.b16 %v2923
    %v3106 = vunpack.c.l.b16 %v2924
    %v3107 = vunpack.c.h.b16 %v2924
    %v3108 = vpack.c.b16 %v3084, %v3076
    %v3109 = vpack.c.b16 %v3085, %v3077
    %v3110 = vpack.c.b16 %v3086, %v3078
    %v3111 = vpack.c.b16 %v3087, %v3079
    %v3112 = vpack.c.b16 %v3088, %v3080
    %v3113 = vpack.c.b16 %v3089, %v3081
    %v3114 = vpack.c.b16 %v3090, %v3082
    %v3115 = vpack.c.b16 %v3091, %v3083
    %v3116 = vpack.c.b16 %v3100, %v3092
    %v3117 = vpack.c.b16 %v3101, %v3093
    %v3118 = vpack.c.b16 %v3102, %v3094
    %v3119 = vpack.c.b16 %v3103, %v3095
    %v3120 = vpack.c.b16 %v3104, %v3096
    %v3121 = vpack.c.b16 %v3105, %v3097
    %v3122 = vpack.c.b16 %v3106, %v3098
    %v3123 = vpack.c.b16 %v3107, %v3099
    %v3268 = vunpack.c.l.b16 %v2925
    %v3269 = vunpack.c.l.b16 %v2926
    %v3270 = vunpack.c.l.b16 %v2927
    %v3271 = vunpack.c.l.b16 %v2928
    %v3272 = vunpack.c.l.b16 %v2929
    %v3273 = vunpack.c.l.b16 %v2930
    %v3274 = vunpack.c.l.b16 %v2931
    %v3275 = vunpack.c.l.b16 %v2932
    %v3276 = vunpack.c.l.b16 %v2933
    %v3277 = vunpack.c.l.b16 %v2934
    %v3278 = vunpack.c.l.b16 %v2935
    %v3279 = vunpack.c.l.b16 %v2936
    %v3280 = vunpack.c.l.b16 %v2937
    %v3281 = vunpack.c.l.b16 %v2938
    %v3282 = vunpack.c.l.b16 %v2939
    %v3283 = vunpack.c.l.b16 %v2940
    %v3284 = vunpack.c.l.b16 %v2941
    %v3285 = vunpack.c.l.b16 %v2942
    %v3286 = vunpack.c.l.b16 %v2943
    %v3287 = vunpack.c.l.b16 %v2944
    %v3288 = vunpack.c.l.b16 %v2945
    %v3289 = vunpack.c.l.b16 %v2946
    %v3290 = vunpack.c.l.b16 %v2947
    %v3291 = vunpack.c.l.b16 %v2948
    %v3292 = vunpack.c.l.b16 %v2949
    %v3293 = vunpack.c.l.b16 %v2950
    %v3294 = vunpack.c.l.b16 %v2951
    %v3295 = vunpack.c.l.b16 %v2952
    %v3296 = vunpack.c.l.b16 %v2953
    %v3297 = vunpack.c.l.b16 %v2954
    %v3298 = vunpack.c.l.b16 %v2955
    %v3299 = vunpack.c.l.b16 %v2956
    %v3300 = vunpack.c.l.b16 %v2957
    %v3301 = vunpack.c.l.b16 %v2958
    %v3302 = vunpack.c.l.b16 %v2959
    %v3303 = vunpack.c.l.b16 %v2960
    %v3304 = vunpack.c.l.b16 %v2961
    %v3305 = vunpack.c.l.b16 %v2962
    %v3306 = vunpack.c.l.b16 %v2963
    %v3307 = vunpack.c.l.b16 %v2964
    %v3308 = vunpack.c.l.b16 %v2965
    %v3309 = vunpack.c.l.b16 %v2966
    %v3310 = vunpack.c.l.b16 %v2967
    %v3311 = vunpack.c.l.b16 %v2968
    %v3312 = vunpack.c.l.b16 %v2969
    %v3313 = vunpack.c.l.b16 %v2970
    %v3314 = vunpack.c.l.b16 %v2971
    %v3315 = vunpack.c.l.b16 %v2972
    %v3316 = vunpack.c.l.b16 %v2973
    %v3317 = vunpack.c.l.b16 %v2974
    %v3318 = vunpack.c.l.b16 %v2975
    %v3319 = vunpack.c.l.b16 %v2976
    %v3320 = vunpack.c.l.b16 %v2977
    %v3321 = vunpack.c.l.b16 %v2978
    %v3322 = vunpack.c.l.b16 %v2979
    %v3323 = vunpack.c.l.b16 %v2980
    %v3324 = vunpack.c.l.b16 %v2981
    %v3325 = vunpack.c.l.b16 %v2982
    %v3326 = vunpack.c.l.b16 %v2983
    %v3327 = vunpack.c.l.b16 %v2984
    %v3328 = vunpack.c.l.b16 %v2985
    %v3329 = vunpack.c.l.b16 %v2986
    %v3330 = vunpack.c.l.b16 %v2987
    %v3331 = vunpack.c.l.b16 %v2988
    %v3332 = vunpack.c.l.b16 %v2989
    %v3333 = vunpack.c.l.b16 %v2990
    %v3334 = vunpack.c.l.b16 %v2991
    %v3335 = vunpack.c.l.b16 %v2992
    %v3336 = vunpack.c.l.b16 %v2993
    %v3337 = vunpack.c.l.b16 %v2994
    %v3338 = vunpack.c.l.b16 %v2995
    %v3339 = vunpack.c.l.b16 %v2996
    %v3340 = vunpack.c.l.b16 %v2997
    %v3341 = vunpack.c.l.b16 %v2998
    %v3342 = vunpack.c.l.b16 %v2999
    %v3343 = vunpack.c.l.b16 %v3000
    %v3344 = vunpack.c.l.b16 %v3001
    %v3345 = vunpack.c.l.b16 %v3002
    %v3346 = vunpack.c.l.b16 %v3003
    %v3347 = vunpack.c.l.b16 %v3004
    %v3348 = vunpack.c.l.b16 %v3005
    %v3349 = vunpack.c.l.b16 %v3006
    %v3350 = vunpack.c.l.b16 %v3007
    %v3351 = vunpack.c.l.b16 %v3008
    %v3352 = vunpack.c.l.b16 %v3009
    %v3353 = vunpack.c.l.b16 %v3010
    %v3354 = vunpack.c.l.b16 %v3011
    %v3355 = vunpack.c.l.b16 %v3012
    %v3356 = vunpack.c.l.b16 %v3013
    %v3357 = vunpack.c.l.b16 %v3014
    %v3358 = vunpack.c.l.b16 %v3015
    %v3359 = vunpack.c.l.b16 %v3016
    %v3360 = vunpack.c.l.b16 %v3017
    %v3361 = vunpack.c.l.b16 %v3018
    %v3362 = vunpack.c.l.b16 %v3019
    %v3363 = vunpack.c.l.b16 %v3020
    %v3364 = vunpack.c.l.b16 %v3021
    %v3365 = vunpack.c.l.b16 %v3022
    %v3366 = vunpack.c.l.b16 %v3023
    %v3367 = vunpack.c.l.b16 %v3024
    %v3368 = vunpack.c.l.b16 %v3025
    %v3369 = vunpack.c.l.b16 %v3026
    %v3370 = vunpack.c.l.b16 %v3027
    %v3371 = vunpack.c.l.b16 %v3028
    %v3372 = vunpack.c.l.b16 %v3029
    %v3373 = vunpack.c.l.b16 %v3030
    %v3374 = vunpack.c.l.b16 %v3031
    %v3375 = vunpack.c.l.b16 %v3032
    %v3376 = vunpack.c.l.b16 %v3033
    %v3377 = vunpack.c.l.b16 %v3034
    %v3378 = vunpack.c.l.b16 %v3035
    %v3379 = vunpack.c.l.b16 %v3036
    %v3380 = vunpack.c.l.b16 %v3037
    %v3381 = vunpack.c.l.b16 %v3038
    %v3382 = vunpack.c.l.b16 %v3039
    %v3383 = vunpack.c.l.b16 %v3040
    %v3384 = vunpack.c.l.b16 %v3041
    %v3385 = vunpack.c.l.b16 %v3042
    %v3386 = vunpack.c.l.b16 %v3043
    %v3387 = vunpack.c.l.b16 %v3044
    %v3388 = vunpack.c.l.b16 %v3045
    %v3389 = vunpack.c.l.b16 %v3046
    %v3390 = vunpack.c.l.b16 %v3047
    %v3391 = vunpack.c.l.b16 %v3048
    %v3392 = vunpack.c.l.b16 %v3049
    %v3393 = vunpack.c.l.b16 %v3050
    %v3394 = vunpack.c.l.b16 %v3051
    %v3395 = vunpack.c.l.b16 %v3052
    %v3396 = vpack.c.b16 %v3269, %v3268
    %v3397 = vpack.c.b16 %v3271, %v3270
    %v3398 = vpack.c.b16 %v3273, %v3272
    %v3399 = vpack.c.b16 %v3275, %v3274
    %v3400 = vpack.c.b16 %v3277, %v3276
    %v3401 = vpack.c.b16 %v3279, %v3278
    %v3402 = vpack.c.b16 %v3281, %v3280
    %v3403 = vpack.c.b16 %v3283, %v3282
    %v3404 = vpack.c.b16 %v3285, %v3284
    %v3405 = vpack.c.b16 %v3287, %v3286
    %v3406 = vpack.c.b16 %v3289, %v3288
    %v3407 = vpack.c.b16 %v3291, %v3290
    %v3408 = vpack.c.b16 %v3293, %v3292
    %v3409 = vpack.c.b16 %v3295, %v3294
    %v3410 = vpack.c.b16 %v3297, %v3296
    %v3411 = vpack.c.b16 %v3299, %v3298
    %v3412 = vpack.c.b16 %v3301, %v3300
    %v3413 = vpack.c.b16 %v3303, %v3302
    %v3414 = vpack.c.b16 %v3305, %v3304
    %v3415 = vpack.c.b16 %v3307, %v3306
    %v3416 = vpack.c.b16 %v3309, %v3308
    %v3417 = vpack.c.b16 %v3311, %v3310
    %v3418 = vpack.c.b16 %v3313, %v3312
    %v3419 = vpack.c.b16 %v3315, %v3314
    %v3420 = vpack.c.b16 %v3317, %v3316
    %v3421 = vpack.c.b16 %v3319, %v3318
    %v3422 = vpack.c.b16 %v3321, %v3320
    %v3423 = vpack.c.b16 %v3323, %v3322
    %v3424 = vpack.c.b16 %v3325, %v3324
    %v3425 = vpack.c.b16 %v3327, %v3326
    %v3426 = vpack.c.b16 %v3329, %v3328
    %v3427 = vpack.c.b16 %v3331, %v3330
    %v3428 = vpack.c.b16 %v3333, %v3332
    %v3429 = vpack.c.b16 %v3335, %v3334
    %v3430 = vpack.c.b16 %v3337, %v3336
    %v3431 = vpack.c.b16 %v3339, %v3338
    %v3432 = vpack.c.b16 %v3341, %v3340
    %v3433 = vpack.c.b16 %v3343, %v3342
    %v3434 = vpack.c.b16 %v3345, %v3344
    %v3435 = vpack.c.b16 %v3347, %v3346
    %v3436 = vpack.c.b16 %v3349, %v3348
    %v3437 = vpack.c.b16 %v3351, %v3350
    %v3438 = vpack.c.b16 %v3353, %v3352
    %v3439 = vpack.c.b16 %v3355, %v3354
    %v3440 = vpack.c.b16 %v3357, %v3356
    %v3441 = vpack.c.b16 %v3359, %v3358
    %v3442 = vpack.c.b16 %v3361, %v3360
    %v3443 = vpack.c.b16 %v3363, %v3362
    %v3444 = vpack.c.b16 %v3365, %v3364
    %v3445 = vpack.c.b16 %v3367, %v3366
    %v3446 = vpack.c.b16 %v3369, %v3368
    %v3447 = vpack.c.b16 %v3371, %v3370
    %v3448 = vpack.c.b16 %v3373, %v3372
    %v3449 = vpack.c.b16 %v3375, %v3374
    %v3450 = vpack.c.b16 %v3377, %v3376
    %v3451 = vpack.c.b16 %v3379, %v3378
    %v3452 = vpack.c.b16 %v3381, %v3380
    %v3453 = vpack.c.b16 %v3383, %v3382
    %v3454 = vpack.c.b16 %v3385, %v3384
    %v3455 = vpack.c.b16 %v3387, %v3386
    %v3456 = vpack.c.b16 %v3389, %v3388
    %v3457 = vpack.c.b16 %v3391, %v3390
    %v3458 = vpack.c.b16 %v3393, %v3392
    %v3459 = vpack.c.b16 %v3395, %v3394
    %3524 = vmatprep.subr.bf16.mxu0 0
    %3525 = vmatpush1.bf16.msra.mxu0 %v3403
    %3526 = vmatprep.subr.bf16.mxu0 0
    %3527 = vmatpush1.bf16.msra.mxu0 %v3402
    %3528 = vmatprep.subr.bf16.mxu0 0
    %3529 = vmatpush1.bf16.msra.mxu0 %v3401
    %3530 = vmatprep.subr.bf16.mxu0 0
    %3531 = vmatpush1.bf16.msra.mxu0 %v3400
    %3532 = vmatprep.subr.bf16.mxu0 0
    %3533 = vmatpush1.bf16.msra.mxu0 %v3399
    %3534 = vmatprep.subr.bf16.mxu0 0
    %3535 = vmatpush1.bf16.msra.mxu0 %v3398
    %3536 = vmatprep.subr.bf16.mxu0 0
    %3537 = vmatpush1.bf16.msra.mxu0 %v3397
    %3538 = vmatprep.subr.bf16.mxu0 0
    %3539 = vmatpush1.bf16.msra.mxu0 %v3396
    %3540 = vmatprep.subr.bf16.mxu0 0
    %3541 = vmatpush2.bf16.msra.mxu0 %v3411
    %3542 = vmatprep.subr.bf16.mxu0 0
    %3543 = vmatpush2.bf16.msra.mxu0 %v3410
    %3544 = vmatprep.subr.bf16.mxu0 0
    %3545 = vmatpush2.bf16.msra.mxu0 %v3409
    %3546 = vmatprep.subr.bf16.mxu0 0
    %3547 = vmatpush2.bf16.msra.mxu0 %v3408
    %3548 = vmatprep.subr.bf16.mxu0 0
    %3549 = vmatpush2.bf16.msra.mxu0 %v3407
    %3550 = vmatprep.subr.bf16.mxu0 0
    %3551 = vmatpush2.bf16.msra.mxu0 %v3406
    %3552 = vmatprep.subr.bf16.mxu0 0
    %3553 = vmatpush2.bf16.msra.mxu0 %v3405
    %3554 = vmatprep.subr.bf16.mxu0 0
    %3555 = vmatpush2.bf16.msra.mxu0 %v3404
    %3556 = vmatprep.mubr.bf16.mxu0 %v3109
    %3557 = vmatmul.mubr.bf16.gmra.mxu0 %v3108
    %v3558 = vpop.f32.mrf.mxu0
    %v3559 = vadd.f32 %v3058, %v3558
    %v3560 = vpop.f32.mrf.mxu0
    %v3561 = vpop.f32.mrf.mxu0
    %v3562 = vadd.f32 %v3058, %v3561
    %v3563 = vpop.f32.mrf.mxu0
    %3564 = vmatprep.mubr.bf16.mxu0 %v3117
    %3565 = vmatmul.mubr.bf16.gmra.mxu0 %v3116
    %v3566 = vpop.f32.mrf.mxu0
    %v3567 = vadd.f32 %v3058, %v3566
    %v3568 = vpop.f32.mrf.mxu0
    %v3569 = vpop.f32.mrf.mxu0
    %v3570 = vadd.f32 %v3058, %v3569
    %v3571 = vpop.f32.mrf.mxu0
    %3572 = vdwg.mxu0
    %3573 = vmatprep.subr.bf16.mxu0 0
    %3574 = vmatpush1.bf16.msra.mxu0 %v3419
    %3575 = vmatprep.subr.bf16.mxu0 0
    %3576 = vmatpush1.bf16.msra.mxu0 %v3418
    %3577 = vmatprep.subr.bf16.mxu0 0
    %3578 = vmatpush1.bf16.msra.mxu0 %v3417
    %3579 = vmatprep.subr.bf16.mxu0 0
    %3580 = vmatpush1.bf16.msra.mxu0 %v3416
    %3581 = vmatprep.subr.bf16.mxu0 0
    %3582 = vmatpush1.bf16.msra.mxu0 %v3415
    %3583 = vmatprep.subr.bf16.mxu0 0
    %3584 = vmatpush1.bf16.msra.mxu0 %v3414
    %3585 = vmatprep.subr.bf16.mxu0 0
    %3586 = vmatpush1.bf16.msra.mxu0 %v3413
    %3587 = vmatprep.subr.bf16.mxu0 0
    %3588 = vmatpush1.bf16.msra.mxu0 %v3412
    %3589 = vmatprep.subr.bf16.mxu0 0
    %3590 = vmatpush2.bf16.msra.mxu0 %v3427
    %3591 = vmatprep.subr.bf16.mxu0 0
    %3592 = vmatpush2.bf16.msra.mxu0 %v3426
    %3593 = vmatprep.subr.bf16.mxu0 0
    %3594 = vmatpush2.bf16.msra.mxu0 %v3425
    %3595 = vmatprep.subr.bf16.mxu0 0
    %3596 = vmatpush2.bf16.msra.mxu0 %v3424
    %3597 = vmatprep.subr.bf16.mxu0 0
    %3598 = vmatpush2.bf16.msra.mxu0 %v3423
    %3599 = vmatprep.subr.bf16.mxu0 0
    %3600 = vmatpush2.bf16.msra.mxu0 %v3422
    %3601 = vmatprep.subr.bf16.mxu0 0
    %3602 = vmatpush2.bf16.msra.mxu0 %v3421
    %3603 = vmatprep.subr.bf16.mxu0 0
    %3604 = vmatpush2.bf16.msra.mxu0 %v3420
    %3605 = vmatprep.mubr.bf16.mxu0 %v3111
    %3606 = vmatmul.mubr.bf16.gmra.mxu0 %v3110
    %v3607 = vpop.f32.mrf.mxu0
    %v3608 = vadd.f32 %v3559, %v3607
    %v3609 = vpop.f32.mrf.mxu0
    %v3610 = vpop.f32.mrf.mxu0
    %v3611 = vadd.f32 %v3562, %v3610
    %v3612 = vpop.f32.mrf.mxu0
    %3613 = vmatprep.mubr.bf16.mxu0 %v3119
    %3614 = vmatmul.mubr.bf16.gmra.mxu0 %v3118
    %v3615 = vpop.f32.mrf.mxu0
    %v3616 = vadd.f32 %v3567, %v3615
    %v3617 = vpop.f32.mrf.mxu0
    %v3618 = vpop.f32.mrf.mxu0
    %v3619 = vadd.f32 %v3570, %v3618
    %v3620 = vpop.f32.mrf.mxu0
    %3621 = vdwg.mxu0
    %3622 = vmatprep.subr.bf16.mxu0 0
    %3623 = vmatpush1.bf16.msra.mxu0 %v3435
    %3624 = vmatprep.subr.bf16.mxu0 0
    %3625 = vmatpush1.bf16.msra.mxu0 %v3434
    %3626 = vmatprep.subr.bf16.mxu0 0
    %3627 = vmatpush1.bf16.msra.mxu0 %v3433
    %3628 = vmatprep.subr.bf16.mxu0 0
    %3629 = vmatpush1.bf16.msra.mxu0 %v3432
    %3630 = vmatprep.subr.bf16.mxu0 0
    %3631 = vmatpush1.bf16.msra.mxu0 %v3431
    %3632 = vmatprep.subr.bf16.mxu0 0
    %3633 = vmatpush1.bf16.msra.mxu0 %v3430
    %3634 = vmatprep.subr.bf16.mxu0 0
    %3635 = vmatpush1.bf16.msra.mxu0 %v3429
    %3636 = vmatprep.subr.bf16.mxu0 0
    %3637 = vmatpush1.bf16.msra.mxu0 %v3428
    %3638 = vmatprep.subr.bf16.mxu0 0
    %3639 = vmatpush2.bf16.msra.mxu0 %v3443
    %3640 = vmatprep.subr.bf16.mxu0 0
    %3641 = vmatpush2.bf16.msra.mxu0 %v3442
    %3642 = vmatprep.subr.bf16.mxu0 0
    %3643 = vmatpush2.bf16.msra.mxu0 %v3441
    %3644 = vmatprep.subr.bf16.mxu0 0
    %3645 = vmatpush2.bf16.msra.mxu0 %v3440
    %3646 = vmatprep.subr.bf16.mxu0 0
    %3647 = vmatpush2.bf16.msra.mxu0 %v3439
    %3648 = vmatprep.subr.bf16.mxu0 0
    %3649 = vmatpush2.bf16.msra.mxu0 %v3438
    %3650 = vmatprep.subr.bf16.mxu0 0
    %3651 = vmatpush2.bf16.msra.mxu0 %v3437
    %3652 = vmatprep.subr.bf16.mxu0 0
    %3653 = vmatpush2.bf16.msra.mxu0 %v3436
    %3654 = vmatprep.mubr.bf16.mxu0 %v3113
    %3655 = vmatmul.mubr.bf16.gmra.mxu0 %v3112
    %v3656 = vpop.f32.mrf.mxu0
    %v3657 = vadd.f32 %v3608, %v3656
    %v3658 = vpop.f32.mrf.mxu0
    %v3659 = vpop.f32.mrf.mxu0
    %v3660 = vadd.f32 %v3611, %v3659
    %v3661 = vpop.f32.mrf.mxu0
    %3662 = vmatprep.mubr.bf16.mxu0 %v3121
    %3663 = vmatmul.mubr.bf16.gmra.mxu0 %v3120
    %v3664 = vpop.f32.mrf.mxu0
    %v3665 = vadd.f32 %v3616, %v3664
    %v3666 = vpop.f32.mrf.mxu0
    %v3667 = vpop.f32.mrf.mxu0
    %v3668 = vadd.f32 %v3619, %v3667
    %v3669 = vpop.f32.mrf.mxu0
    %3670 = vdwg.mxu0
    %3671 = vmatprep.subr.bf16.mxu0 0
    %3672 = vmatpush1.bf16.msra.mxu0 %v3451
    %3673 = vmatprep.subr.bf16.mxu0 0
    %3674 = vmatpush1.bf16.msra.mxu0 %v3450
    %3675 = vmatprep.subr.bf16.mxu0 0
    %3676 = vmatpush1.bf16.msra.mxu0 %v3449
    %3677 = vmatprep.subr.bf16.mxu0 0
    %3678 = vmatpush1.bf16.msra.mxu0 %v3448
    %3679 = vmatprep.subr.bf16.mxu0 0
    %3680 = vmatpush1.bf16.msra.mxu0 %v3447
    %3681 = vmatprep.subr.bf16.mxu0 0
    %3682 = vmatpush1.bf16.msra.mxu0 %v3446
    %3683 = vmatprep.subr.bf16.mxu0 0
    %3684 = vmatpush1.bf16.msra.mxu0 %v3445
    %3685 = vmatprep.subr.bf16.mxu0 0
    %3686 = vmatpush1.bf16.msra.mxu0 %v3444
    %3687 = vmatprep.subr.bf16.mxu0 0
    %3688 = vmatpush2.bf16.msra.mxu0 %v3459
    %3689 = vmatprep.subr.bf16.mxu0 0
    %3690 = vmatpush2.bf16.msra.mxu0 %v3458
    %3691 = vmatprep.subr.bf16.mxu0 0
    %3692 = vmatpush2.bf16.msra.mxu0 %v3457
    %3693 = vmatprep.subr.bf16.mxu0 0
    %3694 = vmatpush2.bf16.msra.mxu0 %v3456
    %3695 = vmatprep.subr.bf16.mxu0 0
    %3696 = vmatpush2.bf16.msra.mxu0 %v3455
    %3697 = vmatprep.subr.bf16.mxu0 0
    %3698 = vmatpush2.bf16.msra.mxu0 %v3454
    %3699 = vmatprep.subr.bf16.mxu0 0
    %3700 = vmatpush2.bf16.msra.mxu0 %v3453
    %3701 = vmatprep.subr.bf16.mxu0 0
    %3702 = vmatpush2.bf16.msra.mxu0 %v3452
    %3703 = vmatprep.mubr.bf16.mxu0 %v3115
    %3704 = vmatmul.mubr.bf16.gmra.mxu0 %v3114
    %v3705 = vpop.f32.mrf.mxu0
    %v3706 = vadd.f32 %v3657, %v3705
    %v3707 = vpop.f32.mrf.mxu0
    %v3708 = vpop.f32.mrf.mxu0
    %v3709 = vadd.f32 %v3660, %v3708
    %v3710 = vpop.f32.mrf.mxu0
    %3711 = vmatprep.mubr.bf16.mxu0 %v3123
    %3712 = vmatmul.mubr.bf16.gmra.mxu0 %v3122
    %v3713 = vpop.f32.mrf.mxu0
    %v3714 = vadd.f32 %v3665, %v3713
    %v3715 = vpop.f32.mrf.mxu0
    %v3716 = vpop.f32.mrf.mxu0
    %v3717 = vadd.f32 %v3668, %v3716
    %v3718 = vpop.f32.mrf.mxu0
    %3719 = vdwg.mxu0
    %v3720 = vsub.f32 0.0, %v3706
    %v3721 = vsub.f32 0.0, %v3709
    %v3722 = vsub.f32 0.0, %v3714
    %v3723 = vsub.f32 0.0, %v3717
    %v3724 = vmul.f32 %v3720, 1.442695
    %v3725 = vpow.pop %v3724
    %v3726 = vmul.f32 %v3721, 1.442695
    %v3727 = vpow.pop %v3726
    %v3728 = vmul.f32 %v3722, 1.442695
    %v3729 = vpow.pop %v3728
    %v3730 = vmul.f32 %v3723, 1.442695
    %v3731 = vpow.pop %v3730
    %v3732 = vadd.f32 %v3725, 1.0
    %v3733 = vadd.f32 %v3727, 1.0
    %v3734 = vadd.f32 %v3729, 1.0
    %v3735 = vadd.f32 %v3731, 1.0
    %v3736 = vrcp.pop %v3732
    %v3737 = vrcp.pop %v3733
    %v3738 = vrcp.pop %v3734
    %v3739 = vrcp.pop %v3735
    %3740 = vst [vmem:[#allocation3] sm:$0xff] %v3736
    %3741 = vst [vmem:[#allocation3 + $0x8] sm:$0xff] %v3737
    %3742 = vst [vmem:[#allocation3 + $0x10] sm:$0xff] %v3738
    %3743 = vst [vmem:[#allocation3 + $0x18] sm:$0xff] %v3739
    // Predicated region
    $region42: #{generator_no_user_info.1} parent=1 // pred_check
      _
    $region43: #{generator_no_user_info.1} parent=1 // pred_check_branch
      %3745 = sbr.rel (0) target = $region45
    $region44: #{generator_no_user_info.1} parent=1 // pred_region
      %s3747 = ssub.s32 512, 512
      %3748 = vsyncadd [#allocation4], %s3747
      %s3749 = sshll.u32 [#allocation3], 4
      %s3750 = int_to_ptr.vmem [resolvable:$true] %s3749
      %3755 = dma.vmem_to_hbm [thread:$0]  %s3750, 512, %s9, [#allocation4], 128, 128, 8
    $region45: #{generator_no_user_info.1} parent=1 // pred_fallthru
      _
    // Predicated region
    $region46: #{generator_no_user_info.1} parent=1 // pred_check
      _
    $region47: #{generator_no_user_info.1} parent=1 // pred_check_branch
      %3757 = sbr.rel (0) target = $region49
    $region48: #{generator_no_user_info.1} parent=1 // pred_region
      %3758 = dma.done [#allocation4], 512
    $region49: #{generator_no_user_info.1} parent=1 // pred_fallthru
      _
    %3759 = vsyncpa [#allocation4], 1

</llo_original>
